<compile_context>
chip_gen: v7x
topology: tpu7x:2x2x1
jax: 0.10.0
libtpu: 0.0.40
codegen_flags: <defaults>
</compile_context>

<pallas_src>
import jax
import jax.numpy as jnp
import numpy as np
from jax import lax
from jax.experimental import pallas as pl
from jax.experimental.pallas import tpu as pltpu

MAX_LENGTH = 10      # L
HIDDEN = 32          # H
OUTPUT = 48          # V (vocab size)
LANES = 128          # packed lane width
NGROUPS = 4          # number of fused weight groups


# ---------------------------------------------------------------------------
# Kernel: the entire T-step decode in one invocation.
# ---------------------------------------------------------------------------
def attn_decoder_kernel(emb_ref, enc_ref, h0_ref, w_ref, b_ref, out_ref):
    H, L, V = HIDDEN, MAX_LENGTH, OUTPUT
    T = emb_ref.shape[0]

    # Hoist all weight / bias / encoder loads out of the time loop.
    w_full = w_ref[...]                       # (4, 2H, 128)
    b_full = b_ref[...]                       # (4, 1, 128)
    wA = w_full[0]                            # (2H, 128)  fused [w_hh | attn]
    wB = w_full[1]                            # (2H, 128)  fused [comb_e ; comb_a]
    wI = w_full[2, 0:H, :]                    # (H, 128)   w_ih gates
    wO = w_full[3, 0:H, :]                    # (H, 128)   w_out
    bA = b_full[0]                            # (1, 128)
    bB = b_full[1]
    bI = b_full[2]
    bO = b_full[3]
    enc = enc_ref[...]                        # (L, H)

    # Zero the resident output block once (padding lanes stay deterministic).
    out_ref[...] = jnp.zeros_like(out_ref)

    def step(t, hid):
        emb = emb_ref[pl.ds(t, 1), :]                         # (1, H)
        # TODO(synk): dropout on the embedding is eval-mode identity (no RNG).

        # Fused pass 1: [emb | hid] @ wA + bA
        #   lanes 0:3H   -> hid @ w_hh + b_hh   (gate order r|z|n)
        #   lanes 3H:3H+L-> attn logits (emb + hid parts summed inside the MXU)
        lhs1 = jnp.concatenate([emb, hid], axis=1)            # (1, 2H)
        gA = jnp.dot(lhs1, wA, preferred_element_type=jnp.float32) + bA

        attn_logits = gA[:, 3 * H:3 * H + L]                  # (1, L)
        m = jnp.max(attn_logits, axis=1, keepdims=True)
        e = jnp.exp(attn_logits - m)
        attn_w = e * pl.reciprocal(jnp.sum(e, axis=1, keepdims=True),
                                   approx=True)               # (1, L)

        # attn_applied = attn_weights @ encoder_outputs
        attn_applied = jnp.dot(attn_w, enc,
                               preferred_element_type=jnp.float32)   # (1, H)

        # Fused pass 2: attn_combine(cat(emb, attn_applied)) on lanes 0:H.
        lhs2 = jnp.concatenate([emb, attn_applied], axis=1)   # (1, 2H)
        gB = jnp.dot(lhs2, wB, preferred_element_type=jnp.float32) + bB
        x = jnp.maximum(gB[:, 0:H], 0.0)                      # relu, (1, H)

        # GRU step.  gi gates live on the same lanes as the gA gates, so the
        # i+h add is a single aligned full-vreg add.
        gi = jnp.dot(x, wI, preferred_element_type=jnp.float32) + bI   # (1,128)
        g = gi + gA
        rz = jax.nn.sigmoid(g[:, 0:2 * H])
        r = rz[:, 0:H]
        z = rz[:, H:2 * H]
        n = jnp.tanh(gi[:, 2 * H:3 * H] + r * gA[:, 2 * H:3 * H])
        h_new = (1.0 - z) * n + z * hid                       # (1, H)

        # output = log_softmax(out(gru_output))
        lg = jnp.dot(h_new, wO, preferred_element_type=jnp.float32) + bO
        logits = lg[:, 0:V]
        m2 = jnp.max(logits, axis=1, keepdims=True)
        shifted = logits - m2
        lse = jnp.log(jnp.sum(jnp.exp(shifted), axis=1, keepdims=True))
        logp = shifted - lse                                  # (1, V)

        # Static-lane-sliced stores into the resident output row t.
        out_ref[pl.ds(t, 1), 0:V] = logp
        out_ref[pl.ds(t, 1), V:V + H] = h_new
        out_ref[pl.ds(t, 1), V + H:V + H + L] = attn_w
        return h_new

    lax.fori_loop(0, T, step, h0_ref[...], unroll=True)


# ---------------------------------------------------------------------------
# Parameter construction / packing.
# ---------------------------------------------------------------------------
def make_params(key):
    ks = jax.random.split(key, 12)

    def init(k, shape, scale=0.1):
        return (scale * jax.random.normal(k, shape)).astype(jnp.float32)

    H, L, V = HIDDEN, MAX_LENGTH, OUTPUT
    return {
        "embedding": init(ks[0], (V, H)),
        # attn: Linear(2H -> L), split into embedded / hidden halves.
        "w_attn_e": init(ks[1], (H, L)),
        "w_attn_h": init(ks[2], (H, L)),
        "b_attn":   init(ks[3], (1, L)),
        # attn_combine: Linear(2H -> H), split into embedded / attn_applied.
        "w_comb_e": init(ks[4], (H, H)),
        "w_comb_a": init(ks[5], (H, H)),
        "b_comb":   init(ks[6], (1, H)),
        # GRU (single layer, single step): gate columns ordered [r | z | n].
        "w_ih": init(ks[7], (H, 3 * H)),
        "b_ih": init(ks[8], (1, 3 * H)),
        "w_hh": init(ks[9], (H, 3 * H)),
        "b_hh": init(ks[10], (1, 3 * H)),
        # out: Linear(H -> V).
        "w_out": init(ks[11], (H, V)),
        "b_out": jnp.zeros((1, V), jnp.float32),
    }


def pack_params(p):
    """Pack per-layer weights/biases into lane-aligned 128-wide MXU slabs."""
    H, L, V = HIDDEN, MAX_LENGTH, OUTPUT
    W = jnp.zeros((NGROUPS, 2 * H, LANES), jnp.float32)
    B = jnp.zeros((NGROUPS, 1, LANES), jnp.float32)

    # group 0: LHS = [emb | hid]
    #   lanes 0:96   -> w_hh gates (hid rows only), bias b_hh
    #   lanes 96:106 -> attention (emb rows = w_attn_e, hid rows = w_attn_h)
    W = W.at[0, H:2 * H, 0:3 * H].set(p["w_hh"])
    B = B.at[0, :, 0:3 * H].set(p["b_hh"])
    W = W.at[0, 0:H, 3 * H:3 * H + L].set(p["w_attn_e"])
    W = W.at[0, H:2 * H, 3 * H:3 * H + L].set(p["w_attn_h"])
    B = B.at[0, :, 3 * H:3 * H + L].set(p["b_attn"])

    # group 1: LHS = [emb | attn_applied] -> lanes 0:32 = attn_combine
    W = W.at[1, 0:H, 0:H].set(p["w_comb_e"])
    W = W.at[1, H:2 * H, 0:H].set(p["w_comb_a"])
    B = B.at[1, :, 0:H].set(p["b_comb"])

    # group 2: w_ih gates at lanes 0:96 (same lanes as group 0 gates).
    W = W.at[2, 0:H, 0:3 * H].set(p["w_ih"])
    B = B.at[2, :, 0:3 * H].set(p["b_ih"])

    # group 3: w_out at lanes 0:48.
    W = W.at[3, 0:H, 0:V].set(p["w_out"])
    B = B.at[3, :, 0:V].set(p["b_out"])
    return W, B


# ---------------------------------------------------------------------------
# Wrappers.
# ---------------------------------------------------------------------------
def _decode_impl(tokens, hidden, encoder_outputs, emb_table, w_slab, b_slab):
    """Run T decoder steps (teacher-forced token sequence) in ONE pallas_call."""
    T = tokens.shape[0]
    h0 = hidden.reshape(1, HIDDEN).astype(jnp.float32)
    # Pre-gather embedding rows outside the kernel (one-time XLA gather):
    # avoids data-dependent (potentially OOB) VMEM indexing in the kernel.
    emb_rows = emb_table[tokens.astype(jnp.int32)].astype(jnp.float32)   # (T, H)

    vmem = pltpu.MemorySpace.VMEM
    packed = pl.pallas_call(
        attn_decoder_kernel,
        out_shape=jax.ShapeDtypeStruct((T, LANES), jnp.float32),
        in_specs=[
            pl.BlockSpec(memory_space=vmem),   # emb_rows
            pl.BlockSpec(memory_space=vmem),   # encoder_outputs
            pl.BlockSpec(memory_space=vmem),   # h0
            pl.BlockSpec(memory_space=vmem),   # w_slab
            pl.BlockSpec(memory_space=vmem),   # b_slab
        ],
        out_specs=pl.BlockSpec(memory_space=vmem),
    )(emb_rows, encoder_outputs.astype(jnp.float32), h0, w_slab, b_slab)

    logp = packed[:, 0:OUTPUT]                                        # (T, V)
    hseq = packed[:, OUTPUT:OUTPUT + HIDDEN]                          # (T, H)
    attnw = packed[:, OUTPUT + HIDDEN:OUTPUT + HIDDEN + MAX_LENGTH]   # (T, L)
    return logp, hseq, attnw


attn_decoder_decode = jax.jit(_decode_impl)


@jax.jit
def attn_decoder_forward(token, hidden, encoder_outputs, emb_table, w_slab, b_slab):
    """Single-step forward matching the PyTorch module interface/shapes."""
    tokens = jnp.reshape(token, (1,)).astype(jnp.int32)
    logp, hseq, attnw = _decode_impl(tokens, hidden, encoder_outputs,
                                     emb_table, w_slab, b_slab)
    return logp[0:1], hseq[-1].reshape(1, 1, HIDDEN), attnw[0:1]


# ---------------------------------------------------------------------------
# Pure-JAX reference (mirrors the PyTorch forward, eval-mode dropout).
# ---------------------------------------------------------------------------
def reference_decode(params, tokens, hidden, encoder_outputs):
    H = HIDDEN
    hid = hidden.reshape(1, H)
    logps, hs, attns = [], [], []
    for t in range(tokens.shape[0]):
        emb = params["embedding"][tokens[t]].reshape(1, H)
        attn_logits = (emb @ params["w_attn_e"] + hid @ params["w_attn_h"]
                       + params["b_attn"])
        attn_w = jax.nn.softmax(attn_logits, axis=1)
        attn_applied = attn_w @ encoder_outputs
        comb = (emb @ params["w_comb_e"] + attn_applied @ params["w_comb_a"]
                + params["b_comb"])
        x = jax.nn.relu(comb)
        gi = x @ params["w_ih"] + params["b_ih"]
        gh = hid @ params["w_hh"] + params["b_hh"]
        r = jax.nn.sigmoid(gi[:, :H] + gh[:, :H])
        z = jax.nn.sigmoid(gi[:, H:2 * H] + gh[:, H:2 * H])
        n = jnp.tanh(gi[:, 2 * H:] + r * gh[:, 2 * H:])
        hid = (1.0 - z) * n + z * hid
        logits = hid @ params["w_out"] + params["b_out"]
        logps.append(jax.nn.log_softmax(logits, axis=1))
        hs.append(hid)
        attns.append(attn_w)
    return (jnp.concatenate(logps, 0), jnp.concatenate(hs, 0),
            jnp.concatenate(attns, 0))


if __name__ == "__main__":
    key = jax.random.PRNGKey(0)
    pkey, ekey, tkey = jax.random.split(key, 3)

    params = make_params(pkey)
    w_slab, b_slab = pack_params(params)

    encoder_outputs = (0.1 * jax.random.normal(
        ekey, (MAX_LENGTH, HIDDEN))).astype(jnp.float32)
    hidden0 = jnp.zeros((1, 1, HIDDEN), dtype=jnp.float32)        # initHidden()

    # --- fused multi-step decode (the performance path) ---------------------
    T = 8
    tokens = jax.random.randint(tkey, (T,), 0, OUTPUT, dtype=jnp.int32)
    logp_seq, h_seq, attn_seq = attn_decoder_decode(
        tokens, hidden0, encoder_outputs, params["embedding"], w_slab, b_slab)
    jax.block_until_ready((logp_seq, h_seq, attn_seq))

    ref_logp, ref_h, ref_attn = reference_decode(
        params, tokens, hidden0, encoder_outputs)
    np.testing.assert_allclose(np.asarray(logp_seq), np.asarray(ref_logp),
                               atol=2e-3, rtol=2e-3)
    np.testing.assert_allclose(np.asarray(h_seq), np.asarray(ref_h),
                               atol=2e-3, rtol=2e-3)
    np.testing.assert_allclose(np.asarray(attn_seq), np.asarray(ref_attn),
                               atol=2e-3, rtol=2e-3)

    # --- single-step forward matching the PyTorch module interface ----------
    logp, new_hidden, attn_weights = attn_decoder_forward(
        tokens[0], hidden0, encoder_outputs, params["embedding"], w_slab, b_slab)
    jax.block_until_ready((logp, new_hidden, attn_weights))

    assert logp.shape == (1, OUTPUT)
    assert new_hidden.shape == (1, 1, HIDDEN)
    assert attn_weights.shape == (1, MAX_LENGTH)
    assert logp_seq.shape == (T, OUTPUT)
    assert h_seq.shape == (T, HIDDEN)
    assert attn_seq.shape == (T, MAX_LENGTH)

    print("KERNEL_OK")
</pallas_src>

<mosaic_0001>
module attributes {stable_mosaic.version = 11 : i64} {
  func.func @attn_decoder_kernel(%arg0: memref<8x32xf32, #tpu.memory_space<vmem>>, %arg1: memref<10x32xf32, #tpu.memory_space<vmem>>, %arg2: memref<1x32xf32, #tpu.memory_space<vmem>>, %arg3: memref<4x64x128xf32, #tpu.memory_space<vmem>>, %arg4: memref<4x1x128xf32, #tpu.memory_space<vmem>>, %arg5: memref<8x128xf32, #tpu.memory_space<vmem>>) attributes {dimension_semantics = [], scalar_prefetch = 0 : i64, scratch_operands = 0 : i64, tpu.core_type = #tpu.core_type<tc>} {
    %c0 = arith.constant 0 : index
    %c0_0 = arith.constant 0 : index
    %c0_1 = arith.constant 0 : index
    %0 = vector.load %arg3[%c0, %c0_0, %c0_1] : memref<4x64x128xf32, #tpu.memory_space<vmem>>, vector<4x64x128xf32>
    %c0_2 = arith.constant 0 : index
    %c0_3 = arith.constant 0 : index
    %c0_4 = arith.constant 0 : index
    %1 = vector.load %arg4[%c0_2, %c0_3, %c0_4] : memref<4x1x128xf32, #tpu.memory_space<vmem>>, vector<4x1x128xf32>
    %2 = vector.extract_strided_slice %0 {offsets = [0, 0, 0], sizes = [1, 64, 128], strides = [1, 1, 1]} : vector<4x64x128xf32> to vector<1x64x128xf32>
    %3 = vector.shape_cast %2 : vector<1x64x128xf32> to vector<64x128xf32>
    %4 = vector.extract_strided_slice %0 {offsets = [1, 0, 0], sizes = [1, 64, 128], strides = [1, 1, 1]} : vector<4x64x128xf32> to vector<1x64x128xf32>
    %5 = vector.shape_cast %4 : vector<1x64x128xf32> to vector<64x128xf32>
    %6 = vector.extract_strided_slice %0 {offsets = [2, 0, 0], sizes = [1, 32, 128], strides = [1, 1, 1]} : vector<4x64x128xf32> to vector<1x32x128xf32>
    %7 = vector.shape_cast %6 : vector<1x32x128xf32> to vector<32x128xf32>
    %8 = vector.extract_strided_slice %0 {offsets = [3, 0, 0], sizes = [1, 32, 128], strides = [1, 1, 1]} : vector<4x64x128xf32> to vector<1x32x128xf32>
    %9 = vector.shape_cast %8 : vector<1x32x128xf32> to vector<32x128xf32>
    %10 = vector.extract_strided_slice %1 {offsets = [0, 0, 0], sizes = [1, 1, 128], strides = [1, 1, 1]} : vector<4x1x128xf32> to vector<1x1x128xf32>
    %11 = vector.shape_cast %10 : vector<1x1x128xf32> to vector<1x128xf32>
    %12 = vector.extract_strided_slice %1 {offsets = [1, 0, 0], sizes = [1, 1, 128], strides = [1, 1, 1]} : vector<4x1x128xf32> to vector<1x1x128xf32>
    %13 = vector.shape_cast %12 : vector<1x1x128xf32> to vector<1x128xf32>
    %14 = vector.extract_strided_slice %1 {offsets = [2, 0, 0], sizes = [1, 1, 128], strides = [1, 1, 1]} : vector<4x1x128xf32> to vector<1x1x128xf32>
    %15 = vector.shape_cast %14 : vector<1x1x128xf32> to vector<1x128xf32>
    %16 = vector.extract_strided_slice %1 {offsets = [3, 0, 0], sizes = [1, 1, 128], strides = [1, 1, 1]} : vector<4x1x128xf32> to vector<1x1x128xf32>
    %17 = vector.shape_cast %16 : vector<1x1x128xf32> to vector<1x128xf32>
    %c0_5 = arith.constant 0 : index
    %c0_6 = arith.constant 0 : index
    %18 = vector.load %arg1[%c0_5, %c0_6] : memref<10x32xf32, #tpu.memory_space<vmem>>, vector<10x32xf32>
    %cst = arith.constant 0.000000e+00 : f32
    %19 = vector.broadcast %cst : f32 to vector<8x128xf32>
    %c0_7 = arith.constant 0 : index
    %c0_8 = arith.constant 0 : index
    %20 = vector.load %arg5[%c0_7, %c0_8] : memref<8x128xf32, #tpu.memory_space<vmem>>, vector<8x128xf32>
    tpu.vector_store %arg5[%c0_7, %c0_8], %19 {strides = array<i32>} : memref<8x128xf32, #tpu.memory_space<vmem>>, vector<8x128xf32>,
    %c0_9 = arith.constant 0 : index
    %c0_10 = arith.constant 0 : index
    %21 = vector.load %arg2[%c0_9, %c0_10] : memref<1x32xf32, #tpu.memory_space<vmem>>, vector<1x32xf32>
    %c0_i32 = arith.constant 0 : i32
    %22 = arith.index_cast %c0_i32 : i32 to index
    %c0_11 = arith.constant 0 : index
    %23 = vector.load %arg0[%22, %c0_11] : memref<8x32xf32, #tpu.memory_space<vmem>>, vector<1x32xf32>
    %24 = tpu.concatenate %23, %21 in 1 : vector<1x32xf32>, vector<1x32xf32> -> vector<1x64xf32>
    %cst_12 = arith.constant dense<0.000000e+00> : vector<1x128xf32>
    %25 = tpu.matmul %24, %3, %cst_12 {dimension_numbers = #tpu.dot_dimension_numbers<[1], [0], [0], [1], [0, 0, 1, 1], [], []>} : vector<1x64xf32>, vector<64x128xf32>, vector<1x128xf32> -> vector<1x128xf32>
    %26 = arith.addf %25, %11 : vector<1x128xf32>
    %27 = vector.extract_strided_slice %26 {offsets = [0, 96], sizes = [1, 10], strides = [1, 1]} : vector<1x128xf32> to vector<1x10xf32>
    %cst_13 = arith.constant dense<0xFF800000> : vector<1xf32>
    %28 = vector.multi_reduction <maximumf>, %27, %cst_13 [1] : vector<1x10xf32> to vector<1xf32>
    %29 = vector.shape_cast %28 : vector<1xf32> to vector<1x1xf32>
    %30 = vector.broadcast %29 : vector<1x1xf32> to vector<1x10xf32>
    %31 = arith.subf %27, %30 : vector<1x10xf32>
    %32 = math.exp %31 : vector<1x10xf32>
    %cst_14 = arith.constant dense<0.000000e+00> : vector<1xf32>
    %33 = vector.multi_reduction <add>, %32, %cst_14 [1] : vector<1x10xf32> to vector<1xf32>
    %34 = vector.shape_cast %33 : vector<1xf32> to vector<1x1xf32>
    %35 = tpu.reciprocal %34 {approx = true} : vector<1x1xf32> -> vector<1x1xf32>
    %36 = vector.broadcast %35 : vector<1x1xf32> to vector<1x10xf32>
    %37 = arith.mulf %32, %36 : vector<1x10xf32>
    %cst_15 = arith.constant dense<0.000000e+00> : vector<1x32xf32>
    %38 = tpu.matmul %37, %18, %cst_15 {dimension_numbers = #tpu.dot_dimension_numbers<[1], [0], [0], [1], [0, 0, 1, 1], [], []>} : vector<1x10xf32>, vector<10x32xf32>, vector<1x32xf32> -> vector<1x32xf32>
    %39 = tpu.concatenate %23, %38 in 1 : vector<1x32xf32>, vector<1x32xf32> -> vector<1x64xf32>
    %cst_16 = arith.constant dense<0.000000e+00> : vector<1x128xf32>
    %40 = tpu.matmul %39, %5, %cst_16 {dimension_numbers = #tpu.dot_dimension_numbers<[1], [0], [0], [1], [0, 0, 1, 1], [], []>} : vector<1x64xf32>, vector<64x128xf32>, vector<1x128xf32> -> vector<1x128xf32>
    %41 = arith.addf %40, %13 : vector<1x128xf32>
    %42 = vector.extract_strided_slice %41 {offsets = [0, 0], sizes = [1, 32], strides = [1, 1]} : vector<1x128xf32> to vector<1x32xf32>
    %cst_17 = arith.constant 0.000000e+00 : f32
    %43 = vector.broadcast %cst_17 : f32 to vector<1x32xf32>
    %44 = arith.maximumf %42, %43 : vector<1x32xf32>
    %cst_18 = arith.constant dense<0.000000e+00> : vector<1x128xf32>
    %45 = tpu.matmul %44, %7, %cst_18 {dimension_numbers = #tpu.dot_dimension_numbers<[1], [0], [0], [1], [0, 0, 1, 1], [], []>} : vector<1x32xf32>, vector<32x128xf32>, vector<1x128xf32> -> vector<1x128xf32>
    %46 = arith.addf %45, %15 : vector<1x128xf32>
    %47 = arith.addf %46, %26 : vector<1x128xf32>
    %48 = vector.extract_strided_slice %47 {offsets = [0, 0], sizes = [1, 64], strides = [1, 1]} : vector<1x128xf32> to vector<1x64xf32>
    %49 = arith.negf %48 : vector<1x64xf32>
    %50 = math.exp %49 : vector<1x64xf32>
    %cst_19 = arith.constant 1.000000e+00 : f32
    %51 = vector.broadcast %cst_19 : f32 to vector<1x64xf32>
    %52 = arith.addf %51, %50 : vector<1x64xf32>
    %53 = arith.divf %51, %52 : vector<1x64xf32>
    %54 = vector.extract_strided_slice %53 {offsets = [0, 0], sizes = [1, 32], strides = [1, 1]} : vector<1x64xf32> to vector<1x32xf32>
    %55 = vector.extract_strided_slice %53 {offsets = [0, 32], sizes = [1, 32], strides = [1, 1]} : vector<1x64xf32> to vector<1x32xf32>
    %56 = vector.extract_strided_slice %46 {offsets = [0, 64], sizes = [1, 32], strides = [1, 1]} : vector<1x128xf32> to vector<1x32xf32>
    %57 = vector.extract_strided_slice %26 {offsets = [0, 64], sizes = [1, 32], strides = [1, 1]} : vector<1x128xf32> to vector<1x32xf32>
    %58 = arith.mulf %54, %57 : vector<1x32xf32>
    %59 = arith.addf %56, %58 : vector<1x32xf32>
    %60 = math.tanh %59 : vector<1x32xf32>
    %cst_20 = arith.constant 1.000000e+00 : f32
    %61 = vector.broadcast %cst_20 : f32 to vector<1x32xf32>
    %62 = arith.subf %61, %55 : vector<1x32xf32>
    %63 = arith.mulf %62, %60 : vector<1x32xf32>
    %64 = arith.mulf %55, %21 : vector<1x32xf32>
    %65 = arith.addf %63, %64 : vector<1x32xf32>
    %cst_21 = arith.constant dense<0.000000e+00> : vector<1x128xf32>
    %66 = tpu.matmul %65, %9, %cst_21 {dimension_numbers = #tpu.dot_dimension_numbers<[1], [0], [0], [1], [0, 0, 1, 1], [], []>} : vector<1x32xf32>, vector<32x128xf32>, vector<1x128xf32> -> vector<1x128xf32>
    %67 = arith.addf %66, %17 : vector<1x128xf32>
    %68 = vector.extract_strided_slice %67 {offsets = [0, 0], sizes = [1, 48], strides = [1, 1]} : vector<1x128xf32> to vector<1x48xf32>
    %cst_22 = arith.constant dense<0xFF800000> : vector<1xf32>
    %69 = vector.multi_reduction <maximumf>, %68, %cst_22 [1] : vector<1x48xf32> to vector<1xf32>
    %70 = vector.shape_cast %69 : vector<1xf32> to vector<1x1xf32>
    %71 = vector.broadcast %70 : vector<1x1xf32> to vector<1x48xf32>
    %72 = arith.subf %68, %71 : vector<1x48xf32>
    %73 = math.exp %72 : vector<1x48xf32>
    %cst_23 = arith.constant dense<0.000000e+00> : vector<1xf32>
    %74 = vector.multi_reduction <add>, %73, %cst_23 [1] : vector<1x48xf32> to vector<1xf32>
    %75 = vector.shape_cast %74 : vector<1xf32> to vector<1x1xf32>
    %76 = math.log %75 : vector<1x1xf32>
    %77 = vector.broadcast %76 : vector<1x1xf32> to vector<1x48xf32>
    %78 = arith.subf %72, %77 : vector<1x48xf32>
    %79 = arith.index_cast %c0_i32 : i32 to index
    %c0_24 = arith.constant 0 : index
    %80 = vector.load %arg5[%79, %c0_24] : memref<8x128xf32, #tpu.memory_space<vmem>>, vector<1x48xf32>
    tpu.vector_store %arg5[%79, %c0_24], %78 {strides = array<i32>} : memref<8x128xf32, #tpu.memory_space<vmem>>, vector<1x48xf32>,
    %81 = arith.index_cast %c0_i32 : i32 to index
    %c48 = arith.constant 48 : index
    %82 = vector.load %arg5[%81, %c48] : memref<8x128xf32, #tpu.memory_space<vmem>>, vector<1x32xf32>
    tpu.vector_store %arg5[%81, %c48], %65 {strides = array<i32>} : memref<8x128xf32, #tpu.memory_space<vmem>>, vector<1x32xf32>,
    %83 = arith.index_cast %c0_i32 : i32 to index
    %c80 = arith.constant 80 : index
    %84 = vector.load %arg5[%83, %c80] : memref<8x128xf32, #tpu.memory_space<vmem>>, vector<1x10xf32>
    tpu.vector_store %arg5[%83, %c80], %37 {strides = array<i32>} : memref<8x128xf32, #tpu.memory_space<vmem>>, vector<1x10xf32>,
    %c1_i32 = arith.constant 1 : i32
    %85 = arith.index_cast %c1_i32 : i32 to index
    %c0_25 = arith.constant 0 : index
    %86 = vector.load %arg0[%85, %c0_25] : memref<8x32xf32, #tpu.memory_space<vmem>>, vector<1x32xf32>
    %87 = tpu.concatenate %86, %65 in 1 : vector<1x32xf32>, vector<1x32xf32> -> vector<1x64xf32>
    %cst_26 = arith.constant dense<0.000000e+00> : vector<1x128xf32>
    %88 = tpu.matmul %87, %3, %cst_26 {dimension_numbers = #tpu.dot_dimension_numbers<[1], [0], [0], [1], [0, 0, 1, 1], [], []>} : vector<1x64xf32>, vector<64x128xf32>, vector<1x128xf32> -> vector<1x128xf32>
    %89 = arith.addf %88, %11 : vector<1x128xf32>
    %90 = vector.extract_strided_slice %89 {offsets = [0, 96], sizes = [1, 10], strides = [1, 1]} : vector<1x128xf32> to vector<1x10xf32>
    %cst_27 = arith.constant dense<0xFF800000> : vector<1xf32>
    %91 = vector.multi_reduction <maximumf>, %90, %cst_27 [1] : vector<1x10xf32> to vector<1xf32>
    %92 = vector.shape_cast %91 : vector<1xf32> to vector<1x1xf32>
    %93 = vector.broadcast %92 : vector<1x1xf32> to vector<1x10xf32>
    %94 = arith.subf %90, %93 : vector<1x10xf32>
    %95 = math.exp %94 : vector<1x10xf32>
    %cst_28 = arith.constant dense<0.000000e+00> : vector<1xf32>
    %96 = vector.multi_reduction <add>, %95, %cst_28 [1] : vector<1x10xf32> to vector<1xf32>
    %97 = vector.shape_cast %96 : vector<1xf32> to vector<1x1xf32>
    %98 = tpu.reciprocal %97 {approx = true} : vector<1x1xf32> -> vector<1x1xf32>
    %99 = vector.broadcast %98 : vector<1x1xf32> to vector<1x10xf32>
    %100 = arith.mulf %95, %99 : vector<1x10xf32>
    %cst_29 = arith.constant dense<0.000000e+00> : vector<1x32xf32>
    %101 = tpu.matmul %100, %18, %cst_29 {dimension_numbers = #tpu.dot_dimension_numbers<[1], [0], [0], [1], [0, 0, 1, 1], [], []>} : vector<1x10xf32>, vector<10x32xf32>, vector<1x32xf32> -> vector<1x32xf32>
    %102 = tpu.concatenate %86, %101 in 1 : vector<1x32xf32>, vector<1x32xf32> -> vector<1x64xf32>
    %cst_30 = arith.constant dense<0.000000e+00> : vector<1x128xf32>
    %103 = tpu.matmul %102, %5, %cst_30 {dimension_numbers = #tpu.dot_dimension_numbers<[1], [0], [0], [1], [0, 0, 1, 1], [], []>} : vector<1x64xf32>, vector<64x128xf32>, vector<1x128xf32> -> vector<1x128xf32>
    %104 = arith.addf %103, %13 : vector<1x128xf32>
    %105 = vector.extract_strided_slice %104 {offsets = [0, 0], sizes = [1, 32], strides = [1, 1]} : vector<1x128xf32> to vector<1x32xf32>
    %cst_31 = arith.constant 0.000000e+00 : f32
    %106 = vector.broadcast %cst_31 : f32 to vector<1x32xf32>
    %107 = arith.maximumf %105, %106 : vector<1x32xf32>
    %cst_32 = arith.constant dense<0.000000e+00> : vector<1x128xf32>
    %108 = tpu.matmul %107, %7, %cst_32 {dimension_numbers = #tpu.dot_dimension_numbers<[1], [0], [0], [1], [0, 0, 1, 1], [], []>} : vector<1x32xf32>, vector<32x128xf32>, vector<1x128xf32> -> vector<1x128xf32>
    %109 = arith.addf %108, %15 : vector<1x128xf32>
    %110 = arith.addf %109, %89 : vector<1x128xf32>
    %111 = vector.extract_strided_slice %110 {offsets = [0, 0], sizes = [1, 64], strides = [1, 1]} : vector<1x128xf32> to vector<1x64xf32>
    %112 = arith.negf %111 : vector<1x64xf32>
    %113 = math.exp %112 : vector<1x64xf32>
    %cst_33 = arith.constant 1.000000e+00 : f32
    %114 = vector.broadcast %cst_33 : f32 to vector<1x64xf32>
    %115 = arith.addf %114, %113 : vector<1x64xf32>
    %116 = arith.divf %114, %115 : vector<1x64xf32>
    %117 = vector.extract_strided_slice %116 {offsets = [0, 0], sizes = [1, 32], strides = [1, 1]} : vector<1x64xf32> to vector<1x32xf32>
    %118 = vector.extract_strided_slice %116 {offsets = [0, 32], sizes = [1, 32], strides = [1, 1]} : vector<1x64xf32> to vector<1x32xf32>
    %119 = vector.extract_strided_slice %109 {offsets = [0, 64], sizes = [1, 32], strides = [1, 1]} : vector<1x128xf32> to vector<1x32xf32>
    %120 = vector.extract_strided_slice %89 {offsets = [0, 64], sizes = [1, 32], strides = [1, 1]} : vector<1x128xf32> to vector<1x32xf32>
    %121 = arith.mulf %117, %120 : vector<1x32xf32>
    %122 = arith.addf %119, %121 : vector<1x32xf32>
    %123 = math.tanh %122 : vector<1x32xf32>
    %cst_34 = arith.constant 1.000000e+00 : f32
    %124 = vector.broadcast %cst_34 : f32 to vector<1x32xf32>
    %125 = arith.subf %124, %118 : vector<1x32xf32>
    %126 = arith.mulf %125, %123 : vector<1x32xf32>
    %127 = arith.mulf %118, %65 : vector<1x32xf32>
    %128 = arith.addf %126, %127 : vector<1x32xf32>
    %cst_35 = arith.constant dense<0.000000e+00> : vector<1x128xf32>
    %129 = tpu.matmul %128, %9, %cst_35 {dimension_numbers = #tpu.dot_dimension_numbers<[1], [0], [0], [1], [0, 0, 1, 1], [], []>} : vector<1x32xf32>, vector<32x128xf32>, vector<1x128xf32> -> vector<1x128xf32>
    %130 = arith.addf %129, %17 : vector<1x128xf32>
    %131 = vector.extract_strided_slice %130 {offsets = [0, 0], sizes = [1, 48], strides = [1, 1]} : vector<1x128xf32> to vector<1x48xf32>
    %cst_36 = arith.constant dense<0xFF800000> : vector<1xf32>
    %132 = vector.multi_reduction <maximumf>, %131, %cst_36 [1] : vector<1x48xf32> to vector<1xf32>
    %133 = vector.shape_cast %132 : vector<1xf32> to vector<1x1xf32>
    %134 = vector.broadcast %133 : vector<1x1xf32> to vector<1x48xf32>
    %135 = arith.subf %131, %134 : vector<1x48xf32>
    %136 = math.exp %135 : vector<1x48xf32>
    %cst_37 = arith.constant dense<0.000000e+00> : vector<1xf32>
    %137 = vector.multi_reduction <add>, %136, %cst_37 [1] : vector<1x48xf32> to vector<1xf32>
    %138 = vector.shape_cast %137 : vector<1xf32> to vector<1x1xf32>
    %139 = math.log %138 : vector<1x1xf32>
    %140 = vector.broadcast %139 : vector<1x1xf32> to vector<1x48xf32>
    %141 = arith.subf %135, %140 : vector<1x48xf32>
    %142 = arith.index_cast %c1_i32 : i32 to index
    %c0_38 = arith.constant 0 : index
    %143 = vector.load %arg5[%142, %c0_38] : memref<8x128xf32, #tpu.memory_space<vmem>>, vector<1x48xf32>
    tpu.vector_store %arg5[%142, %c0_38], %141 {strides = array<i32>} : memref<8x128xf32, #tpu.memory_space<vmem>>, vector<1x48xf32>,
    %144 = arith.index_cast %c1_i32 : i32 to index
    %c48_39 = arith.constant 48 : index
    %145 = vector.load %arg5[%144, %c48_39] : memref<8x128xf32, #tpu.memory_space<vmem>>, vector<1x32xf32>
    tpu.vector_store %arg5[%144, %c48_39], %128 {strides = array<i32>} : memref<8x128xf32, #tpu.memory_space<vmem>>, vector<1x32xf32>,
    %146 = arith.index_cast %c1_i32 : i32 to index
    %c80_40 = arith.constant 80 : index
    %147 = vector.load %arg5[%146, %c80_40] : memref<8x128xf32, #tpu.memory_space<vmem>>, vector<1x10xf32>
    tpu.vector_store %arg5[%146, %c80_40], %100 {strides = array<i32>} : memref<8x128xf32, #tpu.memory_space<vmem>>, vector<1x10xf32>,
    %c2_i32 = arith.constant 2 : i32
    %148 = arith.index_cast %c2_i32 : i32 to index
    %c0_41 = arith.constant 0 : index
    %149 = vector.load %arg0[%148, %c0_41] : memref<8x32xf32, #tpu.memory_space<vmem>>, vector<1x32xf32>
    %150 = tpu.concatenate %149, %128 in 1 : vector<1x32xf32>, vector<1x32xf32> -> vector<1x64xf32>
    %cst_42 = arith.constant dense<0.000000e+00> : vector<1x128xf32>
    %151 = tpu.matmul %150, %3, %cst_42 {dimension_numbers = #tpu.dot_dimension_numbers<[1], [0], [0], [1], [0, 0, 1, 1], [], []>} : vector<1x64xf32>, vector<64x128xf32>, vector<1x128xf32> -> vector<1x128xf32>
    %152 = arith.addf %151, %11 : vector<1x128xf32>
    %153 = vector.extract_strided_slice %152 {offsets = [0, 96], sizes = [1, 10], strides = [1, 1]} : vector<1x128xf32> to vector<1x10xf32>
    %cst_43 = arith.constant dense<0xFF800000> : vector<1xf32>
    %154 = vector.multi_reduction <maximumf>, %153, %cst_43 [1] : vector<1x10xf32> to vector<1xf32>
    %155 = vector.shape_cast %154 : vector<1xf32> to vector<1x1xf32>
    %156 = vector.broadcast %155 : vector<1x1xf32> to vector<1x10xf32>
    %157 = arith.subf %153, %156 : vector<1x10xf32>
    %158 = math.exp %157 : vector<1x10xf32>
    %cst_44 = arith.constant dense<0.000000e+00> : vector<1xf32>
    %159 = vector.multi_reduction <add>, %158, %cst_44 [1] : vector<1x10xf32> to vector<1xf32>
    %160 = vector.shape_cast %159 : vector<1xf32> to vector<1x1xf32>
    %161 = tpu.reciprocal %160 {approx = true} : vector<1x1xf32> -> vector<1x1xf32>
    %162 = vector.broadcast %161 : vector<1x1xf32> to vector<1x10xf32>
    %163 = arith.mulf %158, %162 : vector<1x10xf32>
    %cst_45 = arith.constant dense<0.000000e+00> : vector<1x32xf32>
    %164 = tpu.matmul %163, %18, %cst_45 {dimension_numbers = #tpu.dot_dimension_numbers<[1], [0], [0], [1], [0, 0, 1, 1], [], []>} : vector<1x10xf32>, vector<10x32xf32>, vector<1x32xf32> -> vector<1x32xf32>
    %165 = tpu.concatenate %149, %164 in 1 : vector<1x32xf32>, vector<1x32xf32> -> vector<1x64xf32>
    %cst_46 = arith.constant dense<0.000000e+00> : vector<1x128xf32>
    %166 = tpu.matmul %165, %5, %cst_46 {dimension_numbers = #tpu.dot_dimension_numbers<[1], [0], [0], [1], [0, 0, 1, 1], [], []>} : vector<1x64xf32>, vector<64x128xf32>, vector<1x128xf32> -> vector<1x128xf32>
    %167 = arith.addf %166, %13 : vector<1x128xf32>
    %168 = vector.extract_strided_slice %167 {offsets = [0, 0], sizes = [1, 32], strides = [1, 1]} : vector<1x128xf32> to vector<1x32xf32>
    %cst_47 = arith.constant 0.000000e+00 : f32
    %169 = vector.broadcast %cst_47 : f32 to vector<1x32xf32>
    %170 = arith.maximumf %168, %169 : vector<1x32xf32>
    %cst_48 = arith.constant dense<0.000000e+00> : vector<1x128xf32>
    %171 = tpu.matmul %170, %7, %cst_48 {dimension_numbers = #tpu.dot_dimension_numbers<[1], [0], [0], [1], [0, 0, 1, 1], [], []>} : vector<1x32xf32>, vector<32x128xf32>, vector<1x128xf32> -> vector<1x128xf32>
    %172 = arith.addf %171, %15 : vector<1x128xf32>
    %173 = arith.addf %172, %152 : vector<1x128xf32>
    %174 = vector.extract_strided_slice %173 {offsets = [0, 0], sizes = [1, 64], strides = [1, 1]} : vector<1x128xf32> to vector<1x64xf32>
    %175 = arith.negf %174 : vector<1x64xf32>
    %176 = math.exp %175 : vector<1x64xf32>
    %cst_49 = arith.constant 1.000000e+00 : f32
    %177 = vector.broadcast %cst_49 : f32 to vector<1x64xf32>
    %178 = arith.addf %177, %176 : vector<1x64xf32>
    %179 = arith.divf %177, %178 : vector<1x64xf32>
    %180 = vector.extract_strided_slice %179 {offsets = [0, 0], sizes = [1, 32], strides = [1, 1]} : vector<1x64xf32> to vector<1x32xf32>
    %181 = vector.extract_strided_slice %179 {offsets = [0, 32], sizes = [1, 32], strides = [1, 1]} : vector<1x64xf32> to vector<1x32xf32>
    %182 = vector.extract_strided_slice %172 {offsets = [0, 64], sizes = [1, 32], strides = [1, 1]} : vector<1x128xf32> to vector<1x32xf32>
    %183 = vector.extract_strided_slice %152 {offsets = [0, 64], sizes = [1, 32], strides = [1, 1]} : vector<1x128xf32> to vector<1x32xf32>
    %184 = arith.mulf %180, %183 : vector<1x32xf32>
    %185 = arith.addf %182, %184 : vector<1x32xf32>
    %186 = math.tanh %185 : vector<1x32xf32>
    %cst_50 = arith.constant 1.000000e+00 : f32
    %187 = vector.broadcast %cst_50 : f32 to vector<1x32xf32>
    %188 = arith.subf %187, %181 : vector<1x32xf32>
    %189 = arith.mulf %188, %186 : vector<1x32xf32>
    %190 = arith.mulf %181, %128 : vector<1x32xf32>
    %191 = arith.addf %189, %190 : vector<1x32xf32>
    %cst_51 = arith.constant dense<0.000000e+00> : vector<1x128xf32>
    %192 = tpu.matmul %191, %9, %cst_51 {dimension_numbers = #tpu.dot_dimension_numbers<[1], [0], [0], [1], [0, 0, 1, 1], [], []>} : vector<1x32xf32>, vector<32x128xf32>, vector<1x128xf32> -> vector<1x128xf32>
    %193 = arith.addf %192, %17 : vector<1x128xf32>
    %194 = vector.extract_strided_slice %193 {offsets = [0, 0], sizes = [1, 48], strides = [1, 1]} : vector<1x128xf32> to vector<1x48xf32>
    %cst_52 = arith.constant dense<0xFF800000> : vector<1xf32>
    %195 = vector.multi_reduction <maximumf>, %194, %cst_52 [1] : vector<1x48xf32> to vector<1xf32>
    %196 = vector.shape_cast %195 : vector<1xf32> to vector<1x1xf32>
    %197 = vector.broadcast %196 : vector<1x1xf32> to vector<1x48xf32>
    %198 = arith.subf %194, %197 : vector<1x48xf32>
    %199 = math.exp %198 : vector<1x48xf32>
    %cst_53 = arith.constant dense<0.000000e+00> : vector<1xf32>
    %200 = vector.multi_reduction <add>, %199, %cst_53 [1] : vector<1x48xf32> to vector<1xf32>
    %201 = vector.shape_cast %200 : vector<1xf32> to vector<1x1xf32>
    %202 = math.log %201 : vector<1x1xf32>
    %203 = vector.broadcast %202 : vector<1x1xf32> to vector<1x48xf32>
    %204 = arith.subf %198, %203 : vector<1x48xf32>
    %205 = arith.index_cast %c2_i32 : i32 to index
    %c0_54 = arith.constant 0 : index
    %206 = vector.load %arg5[%205, %c0_54] : memref<8x128xf32, #tpu.memory_space<vmem>>, vector<1x48xf32>
    tpu.vector_store %arg5[%205, %c0_54], %204 {strides = array<i32>} : memref<8x128xf32, #tpu.memory_space<vmem>>, vector<1x48xf32>,
    %207 = arith.index_cast %c2_i32 : i32 to index
    %c48_55 = arith.constant 48 : index
    %208 = vector.load %arg5[%207, %c48_55] : memref<8x128xf32, #tpu.memory_space<vmem>>, vector<1x32xf32>
    tpu.vector_store %arg5[%207, %c48_55], %191 {strides = array<i32>} : memref<8x128xf32, #tpu.memory_space<vmem>>, vector<1x32xf32>,
    %209 = arith.index_cast %c2_i32 : i32 to index
    %c80_56 = arith.constant 80 : index
    %210 = vector.load %arg5[%209, %c80_56] : memref<8x128xf32, #tpu.memory_space<vmem>>, vector<1x10xf32>
    tpu.vector_store %arg5[%209, %c80_56], %163 {strides = array<i32>} : memref<8x128xf32, #tpu.memory_space<vmem>>, vector<1x10xf32>,
    %c3_i32 = arith.constant 3 : i32
    %211 = arith.index_cast %c3_i32 : i32 to index
    %c0_57 = arith.constant 0 : index
    %212 = vector.load %arg0[%211, %c0_57] : memref<8x32xf32, #tpu.memory_space<vmem>>, vector<1x32xf32>
    %213 = tpu.concatenate %212, %191 in 1 : vector<1x32xf32>, vector<1x32xf32> -> vector<1x64xf32>
    %cst_58 = arith.constant dense<0.000000e+00> : vector<1x128xf32>
    %214 = tpu.matmul %213, %3, %cst_58 {dimension_numbers = #tpu.dot_dimension_numbers<[1], [0], [0], [1], [0, 0, 1, 1], [], []>} : vector<1x64xf32>, vector<64x128xf32>, vector<1x128xf32> -> vector<1x128xf32>
    %215 = arith.addf %214, %11 : vector<1x128xf32>
    %216 = vector.extract_strided_slice %215 {offsets = [0, 96], sizes = [1, 10], strides = [1, 1]} : vector<1x128xf32> to vector<1x10xf32>
    %cst_59 = arith.constant dense<0xFF800000> : vector<1xf32>
    %217 = vector.multi_reduction <maximumf>, %216, %cst_59 [1] : vector<1x10xf32> to vector<1xf32>
    %218 = vector.shape_cast %217 : vector<1xf32> to vector<1x1xf32>
    %219 = vector.broadcast %218 : vector<1x1xf32> to vector<1x10xf32>
    %220 = arith.subf %216, %219 : vector<1x10xf32>
    %221 = math.exp %220 : vector<1x10xf32>
    %cst_60 = arith.constant dense<0.000000e+00> : vector<1xf32>
    %222 = vector.multi_reduction <add>, %221, %cst_60 [1] : vector<1x10xf32> to vector<1xf32>
    %223 = vector.shape_cast %222 : vector<1xf32> to vector<1x1xf32>
    %224 = tpu.reciprocal %223 {approx = true} : vector<1x1xf32> -> vector<1x1xf32>
    %225 = vector.broadcast %224 : vector<1x1xf32> to vector<1x10xf32>
    %226 = arith.mulf %221, %225 : vector<1x10xf32>
    %cst_61 = arith.constant dense<0.000000e+00> : vector<1x32xf32>
    %227 = tpu.matmul %226, %18, %cst_61 {dimension_numbers = #tpu.dot_dimension_numbers<[1], [0], [0], [1], [0, 0, 1, 1], [], []>} : vector<1x10xf32>, vector<10x32xf32>, vector<1x32xf32> -> vector<1x32xf32>
    %228 = tpu.concatenate %212, %227 in 1 : vector<1x32xf32>, vector<1x32xf32> -> vector<1x64xf32>
    %cst_62 = arith.constant dense<0.000000e+00> : vector<1x128xf32>
    %229 = tpu.matmul %228, %5, %cst_62 {dimension_numbers = #tpu.dot_dimension_numbers<[1], [0], [0], [1], [0, 0, 1, 1], [], []>} : vector<1x64xf32>, vector<64x128xf32>, vector<1x128xf32> -> vector<1x128xf32>
    %230 = arith.addf %229, %13 : vector<1x128xf32>
    %231 = vector.extract_strided_slice %230 {offsets = [0, 0], sizes = [1, 32], strides = [1, 1]} : vector<1x128xf32> to vector<1x32xf32>
    %cst_63 = arith.constant 0.000000e+00 : f32
    %232 = vector.broadcast %cst_63 : f32 to vector<1x32xf32>
    %233 = arith.maximumf %231, %232 : vector<1x32xf32>
    %cst_64 = arith.constant dense<0.000000e+00> : vector<1x128xf32>
    %234 = tpu.matmul %233, %7, %cst_64 {dimension_numbers = #tpu.dot_dimension_numbers<[1], [0], [0], [1], [0, 0, 1, 1], [], []>} : vector<1x32xf32>, vector<32x128xf32>, vector<1x128xf32> -> vector<1x128xf32>
    %235 = arith.addf %234, %15 : vector<1x128xf32>
    %236 = arith.addf %235, %215 : vector<1x128xf32>
    %237 = vector.extract_strided_slice %236 {offsets = [0, 0], sizes = [1, 64], strides = [1, 1]} : vector<1x128xf32> to vector<1x64xf32>
    %238 = arith.negf %237 : vector<1x64xf32>
    %239 = math.exp %238 : vector<1x64xf32>
    %cst_65 = arith.constant 1.000000e+00 : f32
    %240 = vector.broadcast %cst_65 : f32 to vector<1x64xf32>
    %241 = arith.addf %240, %239 : vector<1x64xf32>
    %242 = arith.divf %240, %241 : vector<1x64xf32>
    %243 = vector.extract_strided_slice %242 {offsets = [0, 0], sizes = [1, 32], strides = [1, 1]} : vector<1x64xf32> to vector<1x32xf32>
    %244 = vector.extract_strided_slice %242 {offsets = [0, 32], sizes = [1, 32], strides = [1, 1]} : vector<1x64xf32> to vector<1x32xf32>
    %245 = vector.extract_strided_slice %235 {offsets = [0, 64], sizes = [1, 32], strides = [1, 1]} : vector<1x128xf32> to vector<1x32xf32>
    %246 = vector.extract_strided_slice %215 {offsets = [0, 64], sizes = [1, 32], strides = [1, 1]} : vector<1x128xf32> to vector<1x32xf32>
    %247 = arith.mulf %243, %246 : vector<1x32xf32>
    %248 = arith.addf %245, %247 : vector<1x32xf32>
    %249 = math.tanh %248 : vector<1x32xf32>
    %cst_66 = arith.constant 1.000000e+00 : f32
    %250 = vector.broadcast %cst_66 : f32 to vector<1x32xf32>
    %251 = arith.subf %250, %244 : vector<1x32xf32>
    %252 = arith.mulf %251, %249 : vector<1x32xf32>
    %253 = arith.mulf %244, %191 : vector<1x32xf32>
    %254 = arith.addf %252, %253 : vector<1x32xf32>
    %cst_67 = arith.constant dense<0.000000e+00> : vector<1x128xf32>
    %255 = tpu.matmul %254, %9, %cst_67 {dimension_numbers = #tpu.dot_dimension_numbers<[1], [0], [0], [1], [0, 0, 1, 1], [], []>} : vector<1x32xf32>, vector<32x128xf32>, vector<1x128xf32> -> vector<1x128xf32>
    %256 = arith.addf %255, %17 : vector<1x128xf32>
    %257 = vector.extract_strided_slice %256 {offsets = [0, 0], sizes = [1, 48], strides = [1, 1]} : vector<1x128xf32> to vector<1x48xf32>
    %cst_68 = arith.constant dense<0xFF800000> : vector<1xf32>
    %258 = vector.multi_reduction <maximumf>, %257, %cst_68 [1] : vector<1x48xf32> to vector<1xf32>
    %259 = vector.shape_cast %258 : vector<1xf32> to vector<1x1xf32>
    %260 = vector.broadcast %259 : vector<1x1xf32> to vector<1x48xf32>
    %261 = arith.subf %257, %260 : vector<1x48xf32>
    %262 = math.exp %261 : vector<1x48xf32>
    %cst_69 = arith.constant dense<0.000000e+00> : vector<1xf32>
    %263 = vector.multi_reduction <add>, %262, %cst_69 [1] : vector<1x48xf32> to vector<1xf32>
    %264 = vector.shape_cast %263 : vector<1xf32> to vector<1x1xf32>
    %265 = math.log %264 : vector<1x1xf32>
    %266 = vector.broadcast %265 : vector<1x1xf32> to vector<1x48xf32>
    %267 = arith.subf %261, %266 : vector<1x48xf32>
    %268 = arith.index_cast %c3_i32 : i32 to index
    %c0_70 = arith.constant 0 : index
    %269 = vector.load %arg5[%268, %c0_70] : memref<8x128xf32, #tpu.memory_space<vmem>>, vector<1x48xf32>
    tpu.vector_store %arg5[%268, %c0_70], %267 {strides = array<i32>} : memref<8x128xf32, #tpu.memory_space<vmem>>, vector<1x48xf32>,
    %270 = arith.index_cast %c3_i32 : i32 to index
    %c48_71 = arith.constant 48 : index
    %271 = vector.load %arg5[%270, %c48_71] : memref<8x128xf32, #tpu.memory_space<vmem>>, vector<1x32xf32>
    tpu.vector_store %arg5[%270, %c48_71], %254 {strides = array<i32>} : memref<8x128xf32, #tpu.memory_space<vmem>>, vector<1x32xf32>,
    %272 = arith.index_cast %c3_i32 : i32 to index
    %c80_72 = arith.constant 80 : index
    %273 = vector.load %arg5[%272, %c80_72] : memref<8x128xf32, #tpu.memory_space<vmem>>, vector<1x10xf32>
    tpu.vector_store %arg5[%272, %c80_72], %226 {strides = array<i32>} : memref<8x128xf32, #tpu.memory_space<vmem>>, vector<1x10xf32>,
    %c4_i32 = arith.constant 4 : i32
    %274 = arith.index_cast %c4_i32 : i32 to index
    %c0_73 = arith.constant 0 : index
    %275 = vector.load %arg0[%274, %c0_73] : memref<8x32xf32, #tpu.memory_space<vmem>>, vector<1x32xf32>
    %276 = tpu.concatenate %275, %254 in 1 : vector<1x32xf32>, vector<1x32xf32> -> vector<1x64xf32>
    %cst_74 = arith.constant dense<0.000000e+00> : vector<1x128xf32>
    %277 = tpu.matmul %276, %3, %cst_74 {dimension_numbers = #tpu.dot_dimension_numbers<[1], [0], [0], [1], [0, 0, 1, 1], [], []>} : vector<1x64xf32>, vector<64x128xf32>, vector<1x128xf32> -> vector<1x128xf32>
    %278 = arith.addf %277, %11 : vector<1x128xf32>
    %279 = vector.extract_strided_slice %278 {offsets = [0, 96], sizes = [1, 10], strides = [1, 1]} : vector<1x128xf32> to vector<1x10xf32>
    %cst_75 = arith.constant dense<0xFF800000> : vector<1xf32>
    %280 = vector.multi_reduction <maximumf>, %279, %cst_75 [1] : vector<1x10xf32> to vector<1xf32>
    %281 = vector.shape_cast %280 : vector<1xf32> to vector<1x1xf32>
    %282 = vector.broadcast %281 : vector<1x1xf32> to vector<1x10xf32>
    %283 = arith.subf %279, %282 : vector<1x10xf32>
    %284 = math.exp %283 : vector<1x10xf32>
    %cst_76 = arith.constant dense<0.000000e+00> : vector<1xf32>
    %285 = vector.multi_reduction <add>, %284, %cst_76 [1] : vector<1x10xf32> to vector<1xf32>
    %286 = vector.shape_cast %285 : vector<1xf32> to vector<1x1xf32>
    %287 = tpu.reciprocal %286 {approx = true} : vector<1x1xf32> -> vector<1x1xf32>
    %288 = vector.broadcast %287 : vector<1x1xf32> to vector<1x10xf32>
    %289 = arith.mulf %284, %288 : vector<1x10xf32>
    %cst_77 = arith.constant dense<0.000000e+00> : vector<1x32xf32>
    %290 = tpu.matmul %289, %18, %cst_77 {dimension_numbers = #tpu.dot_dimension_numbers<[1], [0], [0], [1], [0, 0, 1, 1], [], []>} : vector<1x10xf32>, vector<10x32xf32>, vector<1x32xf32> -> vector<1x32xf32>
    %291 = tpu.concatenate %275, %290 in 1 : vector<1x32xf32>, vector<1x32xf32> -> vector<1x64xf32>
    %cst_78 = arith.constant dense<0.000000e+00> : vector<1x128xf32>
    %292 = tpu.matmul %291, %5, %cst_78 {dimension_numbers = #tpu.dot_dimension_numbers<[1], [0], [0], [1], [0, 0, 1, 1], [], []>} : vector<1x64xf32>, vector<64x128xf32>, vector<1x128xf32> -> vector<1x128xf32>
    %293 = arith.addf %292, %13 : vector<1x128xf32>
    %294 = vector.extract_strided_slice %293 {offsets = [0, 0], sizes = [1, 32], strides = [1, 1]} : vector<1x128xf32> to vector<1x32xf32>
    %cst_79 = arith.constant 0.000000e+00 : f32
    %295 = vector.broadcast %cst_79 : f32 to vector<1x32xf32>
    %296 = arith.maximumf %294, %295 : vector<1x32xf32>
    %cst_80 = arith.constant dense<0.000000e+00> : vector<1x128xf32>
    %297 = tpu.matmul %296, %7, %cst_80 {dimension_numbers = #tpu.dot_dimension_numbers<[1], [0], [0], [1], [0, 0, 1, 1], [], []>} : vector<1x32xf32>, vector<32x128xf32>, vector<1x128xf32> -> vector<1x128xf32>
    %298 = arith.addf %297, %15 : vector<1x128xf32>
    %299 = arith.addf %298, %278 : vector<1x128xf32>
    %300 = vector.extract_strided_slice %299 {offsets = [0, 0], sizes = [1, 64], strides = [1, 1]} : vector<1x128xf32> to vector<1x64xf32>
    %301 = arith.negf %300 : vector<1x64xf32>
    %302 = math.exp %301 : vector<1x64xf32>
    %cst_81 = arith.constant 1.000000e+00 : f32
    %303 = vector.broadcast %cst_81 : f32 to vector<1x64xf32>
    %304 = arith.addf %303, %302 : vector<1x64xf32>
    %305 = arith.divf %303, %304 : vector<1x64xf32>
    %306 = vector.extract_strided_slice %305 {offsets = [0, 0], sizes = [1, 32], strides = [1, 1]} : vector<1x64xf32> to vector<1x32xf32>
    %307 = vector.extract_strided_slice %305 {offsets = [0, 32], sizes = [1, 32], strides = [1, 1]} : vector<1x64xf32> to vector<1x32xf32>
    %308 = vector.extract_strided_slice %298 {offsets = [0, 64], sizes = [1, 32], strides = [1, 1]} : vector<1x128xf32> to vector<1x32xf32>
    %309 = vector.extract_strided_slice %278 {offsets = [0, 64], sizes = [1, 32], strides = [1, 1]} : vector<1x128xf32> to vector<1x32xf32>
    %310 = arith.mulf %306, %309 : vector<1x32xf32>
    %311 = arith.addf %308, %310 : vector<1x32xf32>
    %312 = math.tanh %311 : vector<1x32xf32>
    %cst_82 = arith.constant 1.000000e+00 : f32
    %313 = vector.broadcast %cst_82 : f32 to vector<1x32xf32>
    %314 = arith.subf %313, %307 : vector<1x32xf32>
    %315 = arith.mulf %314, %312 : vector<1x32xf32>
    %316 = arith.mulf %307, %254 : vector<1x32xf32>
    %317 = arith.addf %315, %316 : vector<1x32xf32>
    %cst_83 = arith.constant dense<0.000000e+00> : vector<1x128xf32>
    %318 = tpu.matmul %317, %9, %cst_83 {dimension_numbers = #tpu.dot_dimension_numbers<[1], [0], [0], [1], [0, 0, 1, 1], [], []>} : vector<1x32xf32>, vector<32x128xf32>, vector<1x128xf32> -> vector<1x128xf32>
    %319 = arith.addf %318, %17 : vector<1x128xf32>
    %320 = vector.extract_strided_slice %319 {offsets = [0, 0], sizes = [1, 48], strides = [1, 1]} : vector<1x128xf32> to vector<1x48xf32>
    %cst_84 = arith.constant dense<0xFF800000> : vector<1xf32>
    %321 = vector.multi_reduction <maximumf>, %320, %cst_84 [1] : vector<1x48xf32> to vector<1xf32>
    %322 = vector.shape_cast %321 : vector<1xf32> to vector<1x1xf32>
    %323 = vector.broadcast %322 : vector<1x1xf32> to vector<1x48xf32>
    %324 = arith.subf %320, %323 : vector<1x48xf32>
    %325 = math.exp %324 : vector<1x48xf32>
    %cst_85 = arith.constant dense<0.000000e+00> : vector<1xf32>
    %326 = vector.multi_reduction <add>, %325, %cst_85 [1] : vector<1x48xf32> to vector<1xf32>
    %327 = vector.shape_cast %326 : vector<1xf32> to vector<1x1xf32>
    %328 = math.log %327 : vector<1x1xf32>
    %329 = vector.broadcast %328 : vector<1x1xf32> to vector<1x48xf32>
    %330 = arith.subf %324, %329 : vector<1x48xf32>
    %331 = arith.index_cast %c4_i32 : i32 to index
    %c0_86 = arith.constant 0 : index
    %332 = vector.load %arg5[%331, %c0_86] : memref<8x128xf32, #tpu.memory_space<vmem>>, vector<1x48xf32>
    tpu.vector_store %arg5[%331, %c0_86], %330 {strides = array<i32>} : memref<8x128xf32, #tpu.memory_space<vmem>>, vector<1x48xf32>,
    %333 = arith.index_cast %c4_i32 : i32 to index
    %c48_87 = arith.constant 48 : index
    %334 = vector.load %arg5[%333, %c48_87] : memref<8x128xf32, #tpu.memory_space<vmem>>, vector<1x32xf32>
    tpu.vector_store %arg5[%333, %c48_87], %317 {strides = array<i32>} : memref<8x128xf32, #tpu.memory_space<vmem>>, vector<1x32xf32>,
    %335 = arith.index_cast %c4_i32 : i32 to index
    %c80_88 = arith.constant 80 : index
    %336 = vector.load %arg5[%335, %c80_88] : memref<8x128xf32, #tpu.memory_space<vmem>>, vector<1x10xf32>
    tpu.vector_store %arg5[%335, %c80_88], %289 {strides = array<i32>} : memref<8x128xf32, #tpu.memory_space<vmem>>, vector<1x10xf32>,
    %c5_i32 = arith.constant 5 : i32
    %337 = arith.index_cast %c5_i32 : i32 to index
    %c0_89 = arith.constant 0 : index
    %338 = vector.load %arg0[%337, %c0_89] : memref<8x32xf32, #tpu.memory_space<vmem>>, vector<1x32xf32>
    %339 = tpu.concatenate %338, %317 in 1 : vector<1x32xf32>, vector<1x32xf32> -> vector<1x64xf32>
    %cst_90 = arith.constant dense<0.000000e+00> : vector<1x128xf32>
    %340 = tpu.matmul %339, %3, %cst_90 {dimension_numbers = #tpu.dot_dimension_numbers<[1], [0], [0], [1], [0, 0, 1, 1], [], []>} : vector<1x64xf32>, vector<64x128xf32>, vector<1x128xf32> -> vector<1x128xf32>
    %341 = arith.addf %340, %11 : vector<1x128xf32>
    %342 = vector.extract_strided_slice %341 {offsets = [0, 96], sizes = [1, 10], strides = [1, 1]} : vector<1x128xf32> to vector<1x10xf32>
    %cst_91 = arith.constant dense<0xFF800000> : vector<1xf32>
    %343 = vector.multi_reduction <maximumf>, %342, %cst_91 [1] : vector<1x10xf32> to vector<1xf32>
    %344 = vector.shape_cast %343 : vector<1xf32> to vector<1x1xf32>
    %345 = vector.broadcast %344 : vector<1x1xf32> to vector<1x10xf32>
    %346 = arith.subf %342, %345 : vector<1x10xf32>
    %347 = math.exp %346 : vector<1x10xf32>
    %cst_92 = arith.constant dense<0.000000e+00> : vector<1xf32>
    %348 = vector.multi_reduction <add>, %347, %cst_92 [1] : vector<1x10xf32> to vector<1xf32>
    %349 = vector.shape_cast %348 : vector<1xf32> to vector<1x1xf32>
    %350 = tpu.reciprocal %349 {approx = true} : vector<1x1xf32> -> vector<1x1xf32>
    %351 = vector.broadcast %350 : vector<1x1xf32> to vector<1x10xf32>
    %352 = arith.mulf %347, %351 : vector<1x10xf32>
    %cst_93 = arith.constant dense<0.000000e+00> : vector<1x32xf32>
    %353 = tpu.matmul %352, %18, %cst_93 {dimension_numbers = #tpu.dot_dimension_numbers<[1], [0], [0], [1], [0, 0, 1, 1], [], []>} : vector<1x10xf32>, vector<10x32xf32>, vector<1x32xf32> -> vector<1x32xf32>
    %354 = tpu.concatenate %338, %353 in 1 : vector<1x32xf32>, vector<1x32xf32> -> vector<1x64xf32>
    %cst_94 = arith.constant dense<0.000000e+00> : vector<1x128xf32>
    %355 = tpu.matmul %354, %5, %cst_94 {dimension_numbers = #tpu.dot_dimension_numbers<[1], [0], [0], [1], [0, 0, 1, 1], [], []>} : vector<1x64xf32>, vector<64x128xf32>, vector<1x128xf32> -> vector<1x128xf32>
    %356 = arith.addf %355, %13 : vector<1x128xf32>
    %357 = vector.extract_strided_slice %356 {offsets = [0, 0], sizes = [1, 32], strides = [1, 1]} : vector<1x128xf32> to vector<1x32xf32>
    %cst_95 = arith.constant 0.000000e+00 : f32
    %358 = vector.broadcast %cst_95 : f32 to vector<1x32xf32>
    %359 = arith.maximumf %357, %358 : vector<1x32xf32>
    %cst_96 = arith.constant dense<0.000000e+00> : vector<1x128xf32>
    %360 = tpu.matmul %359, %7, %cst_96 {dimension_numbers = #tpu.dot_dimension_numbers<[1], [0], [0], [1], [0, 0, 1, 1], [], []>} : vector<1x32xf32>, vector<32x128xf32>, vector<1x128xf32> -> vector<1x128xf32>
    %361 = arith.addf %360, %15 : vector<1x128xf32>
    %362 = arith.addf %361, %341 : vector<1x128xf32>
    %363 = vector.extract_strided_slice %362 {offsets = [0, 0], sizes = [1, 64], strides = [1, 1]} : vector<1x128xf32> to vector<1x64xf32>
    %364 = arith.negf %363 : vector<1x64xf32>
    %365 = math.exp %364 : vector<1x64xf32>
    %cst_97 = arith.constant 1.000000e+00 : f32
    %366 = vector.broadcast %cst_97 : f32 to vector<1x64xf32>
    %367 = arith.addf %366, %365 : vector<1x64xf32>
    %368 = arith.divf %366, %367 : vector<1x64xf32>
    %369 = vector.extract_strided_slice %368 {offsets = [0, 0], sizes = [1, 32], strides = [1, 1]} : vector<1x64xf32> to vector<1x32xf32>
    %370 = vector.extract_strided_slice %368 {offsets = [0, 32], sizes = [1, 32], strides = [1, 1]} : vector<1x64xf32> to vector<1x32xf32>
    %371 = vector.extract_strided_slice %361 {offsets = [0, 64], sizes = [1, 32], strides = [1, 1]} : vector<1x128xf32> to vector<1x32xf32>
    %372 = vector.extract_strided_slice %341 {offsets = [0, 64], sizes = [1, 32], strides = [1, 1]} : vector<1x128xf32> to vector<1x32xf32>
    %373 = arith.mulf %369, %372 : vector<1x32xf32>
    %374 = arith.addf %371, %373 : vector<1x32xf32>
    %375 = math.tanh %374 : vector<1x32xf32>
    %cst_98 = arith.constant 1.000000e+00 : f32
    %376 = vector.broadcast %cst_98 : f32 to vector<1x32xf32>
    %377 = arith.subf %376, %370 : vector<1x32xf32>
    %378 = arith.mulf %377, %375 : vector<1x32xf32>
    %379 = arith.mulf %370, %317 : vector<1x32xf32>
    %380 = arith.addf %378, %379 : vector<1x32xf32>
    %cst_99 = arith.constant dense<0.000000e+00> : vector<1x128xf32>
    %381 = tpu.matmul %380, %9, %cst_99 {dimension_numbers = #tpu.dot_dimension_numbers<[1], [0], [0], [1], [0, 0, 1, 1], [], []>} : vector<1x32xf32>, vector<32x128xf32>, vector<1x128xf32> -> vector<1x128xf32>
    %382 = arith.addf %381, %17 : vector<1x128xf32>
    %383 = vector.extract_strided_slice %382 {offsets = [0, 0], sizes = [1, 48], strides = [1, 1]} : vector<1x128xf32> to vector<1x48xf32>
    %cst_100 = arith.constant dense<0xFF800000> : vector<1xf32>
    %384 = vector.multi_reduction <maximumf>, %383, %cst_100 [1] : vector<1x48xf32> to vector<1xf32>
    %385 = vector.shape_cast %384 : vector<1xf32> to vector<1x1xf32>
    %386 = vector.broadcast %385 : vector<1x1xf32> to vector<1x48xf32>
    %387 = arith.subf %383, %386 : vector<1x48xf32>
    %388 = math.exp %387 : vector<1x48xf32>
    %cst_101 = arith.constant dense<0.000000e+00> : vector<1xf32>
    %389 = vector.multi_reduction <add>, %388, %cst_101 [1] : vector<1x48xf32> to vector<1xf32>
    %390 = vector.shape_cast %389 : vector<1xf32> to vector<1x1xf32>
    %391 = math.log %390 : vector<1x1xf32>
    %392 = vector.broadcast %391 : vector<1x1xf32> to vector<1x48xf32>
    %393 = arith.subf %387, %392 : vector<1x48xf32>
    %394 = arith.index_cast %c5_i32 : i32 to index
    %c0_102 = arith.constant 0 : index
    %395 = vector.load %arg5[%394, %c0_102] : memref<8x128xf32, #tpu.memory_space<vmem>>, vector<1x48xf32>
    tpu.vector_store %arg5[%394, %c0_102], %393 {strides = array<i32>} : memref<8x128xf32, #tpu.memory_space<vmem>>, vector<1x48xf32>,
    %396 = arith.index_cast %c5_i32 : i32 to index
    %c48_103 = arith.constant 48 : index
    %397 = vector.load %arg5[%396, %c48_103] : memref<8x128xf32, #tpu.memory_space<vmem>>, vector<1x32xf32>
    tpu.vector_store %arg5[%396, %c48_103], %380 {strides = array<i32>} : memref<8x128xf32, #tpu.memory_space<vmem>>, vector<1x32xf32>,
    %398 = arith.index_cast %c5_i32 : i32 to index
    %c80_104 = arith.constant 80 : index
    %399 = vector.load %arg5[%398, %c80_104] : memref<8x128xf32, #tpu.memory_space<vmem>>, vector<1x10xf32>
    tpu.vector_store %arg5[%398, %c80_104], %352 {strides = array<i32>} : memref<8x128xf32, #tpu.memory_space<vmem>>, vector<1x10xf32>,
    %c6_i32 = arith.constant 6 : i32
    %400 = arith.index_cast %c6_i32 : i32 to index
    %c0_105 = arith.constant 0 : index
    %401 = vector.load %arg0[%400, %c0_105] : memref<8x32xf32, #tpu.memory_space<vmem>>, vector<1x32xf32>
    %402 = tpu.concatenate %401, %380 in 1 : vector<1x32xf32>, vector<1x32xf32> -> vector<1x64xf32>
    %cst_106 = arith.constant dense<0.000000e+00> : vector<1x128xf32>
    %403 = tpu.matmul %402, %3, %cst_106 {dimension_numbers = #tpu.dot_dimension_numbers<[1], [0], [0], [1], [0, 0, 1, 1], [], []>} : vector<1x64xf32>, vector<64x128xf32>, vector<1x128xf32> -> vector<1x128xf32>
    %404 = arith.addf %403, %11 : vector<1x128xf32>
    %405 = vector.extract_strided_slice %404 {offsets = [0, 96], sizes = [1, 10], strides = [1, 1]} : vector<1x128xf32> to vector<1x10xf32>
    %cst_107 = arith.constant dense<0xFF800000> : vector<1xf32>
    %406 = vector.multi_reduction <maximumf>, %405, %cst_107 [1] : vector<1x10xf32> to vector<1xf32>
    %407 = vector.shape_cast %406 : vector<1xf32> to vector<1x1xf32>
    %408 = vector.broadcast %407 : vector<1x1xf32> to vector<1x10xf32>
    %409 = arith.subf %405, %408 : vector<1x10xf32>
    %410 = math.exp %409 : vector<1x10xf32>
    %cst_108 = arith.constant dense<0.000000e+00> : vector<1xf32>
    %411 = vector.multi_reduction <add>, %410, %cst_108 [1] : vector<1x10xf32> to vector<1xf32>
    %412 = vector.shape_cast %411 : vector<1xf32> to vector<1x1xf32>
    %413 = tpu.reciprocal %412 {approx = true} : vector<1x1xf32> -> vector<1x1xf32>
    %414 = vector.broadcast %413 : vector<1x1xf32> to vector<1x10xf32>
    %415 = arith.mulf %410, %414 : vector<1x10xf32>
    %cst_109 = arith.constant dense<0.000000e+00> : vector<1x32xf32>
    %416 = tpu.matmul %415, %18, %cst_109 {dimension_numbers = #tpu.dot_dimension_numbers<[1], [0], [0], [1], [0, 0, 1, 1], [], []>} : vector<1x10xf32>, vector<10x32xf32>, vector<1x32xf32> -> vector<1x32xf32>
    %417 = tpu.concatenate %401, %416 in 1 : vector<1x32xf32>, vector<1x32xf32> -> vector<1x64xf32>
    %cst_110 = arith.constant dense<0.000000e+00> : vector<1x128xf32>
    %418 = tpu.matmul %417, %5, %cst_110 {dimension_numbers = #tpu.dot_dimension_numbers<[1], [0], [0], [1], [0, 0, 1, 1], [], []>} : vector<1x64xf32>, vector<64x128xf32>, vector<1x128xf32> -> vector<1x128xf32>
    %419 = arith.addf %418, %13 : vector<1x128xf32>
    %420 = vector.extract_strided_slice %419 {offsets = [0, 0], sizes = [1, 32], strides = [1, 1]} : vector<1x128xf32> to vector<1x32xf32>
    %cst_111 = arith.constant 0.000000e+00 : f32
    %421 = vector.broadcast %cst_111 : f32 to vector<1x32xf32>
    %422 = arith.maximumf %420, %421 : vector<1x32xf32>
    %cst_112 = arith.constant dense<0.000000e+00> : vector<1x128xf32>
    %423 = tpu.matmul %422, %7, %cst_112 {dimension_numbers = #tpu.dot_dimension_numbers<[1], [0], [0], [1], [0, 0, 1, 1], [], []>} : vector<1x32xf32>, vector<32x128xf32>, vector<1x128xf32> -> vector<1x128xf32>
    %424 = arith.addf %423, %15 : vector<1x128xf32>
    %425 = arith.addf %424, %404 : vector<1x128xf32>
    %426 = vector.extract_strided_slice %425 {offsets = [0, 0], sizes = [1, 64], strides = [1, 1]} : vector<1x128xf32> to vector<1x64xf32>
    %427 = arith.negf %426 : vector<1x64xf32>
    %428 = math.exp %427 : vector<1x64xf32>
    %cst_113 = arith.constant 1.000000e+00 : f32
    %429 = vector.broadcast %cst_113 : f32 to vector<1x64xf32>
    %430 = arith.addf %429, %428 : vector<1x64xf32>
    %431 = arith.divf %429, %430 : vector<1x64xf32>
    %432 = vector.extract_strided_slice %431 {offsets = [0, 0], sizes = [1, 32], strides = [1, 1]} : vector<1x64xf32> to vector<1x32xf32>
    %433 = vector.extract_strided_slice %431 {offsets = [0, 32], sizes = [1, 32], strides = [1, 1]} : vector<1x64xf32> to vector<1x32xf32>
    %434 = vector.extract_strided_slice %424 {offsets = [0, 64], sizes = [1, 32], strides = [1, 1]} : vector<1x128xf32> to vector<1x32xf32>
    %435 = vector.extract_strided_slice %404 {offsets = [0, 64], sizes = [1, 32], strides = [1, 1]} : vector<1x128xf32> to vector<1x32xf32>
    %436 = arith.mulf %432, %435 : vector<1x32xf32>
    %437 = arith.addf %434, %436 : vector<1x32xf32>
    %438 = math.tanh %437 : vector<1x32xf32>
    %cst_114 = arith.constant 1.000000e+00 : f32
    %439 = vector.broadcast %cst_114 : f32 to vector<1x32xf32>
    %440 = arith.subf %439, %433 : vector<1x32xf32>
    %441 = arith.mulf %440, %438 : vector<1x32xf32>
    %442 = arith.mulf %433, %380 : vector<1x32xf32>
    %443 = arith.addf %441, %442 : vector<1x32xf32>
    %cst_115 = arith.constant dense<0.000000e+00> : vector<1x128xf32>
    %444 = tpu.matmul %443, %9, %cst_115 {dimension_numbers = #tpu.dot_dimension_numbers<[1], [0], [0], [1], [0, 0, 1, 1], [], []>} : vector<1x32xf32>, vector<32x128xf32>, vector<1x128xf32> -> vector<1x128xf32>
    %445 = arith.addf %444, %17 : vector<1x128xf32>
    %446 = vector.extract_strided_slice %445 {offsets = [0, 0], sizes = [1, 48], strides = [1, 1]} : vector<1x128xf32> to vector<1x48xf32>
    %cst_116 = arith.constant dense<0xFF800000> : vector<1xf32>
    %447 = vector.multi_reduction <maximumf>, %446, %cst_116 [1] : vector<1x48xf32> to vector<1xf32>
    %448 = vector.shape_cast %447 : vector<1xf32> to vector<1x1xf32>
    %449 = vector.broadcast %448 : vector<1x1xf32> to vector<1x48xf32>
    %450 = arith.subf %446, %449 : vector<1x48xf32>
    %451 = math.exp %450 : vector<1x48xf32>
    %cst_117 = arith.constant dense<0.000000e+00> : vector<1xf32>
    %452 = vector.multi_reduction <add>, %451, %cst_117 [1] : vector<1x48xf32> to vector<1xf32>
    %453 = vector.shape_cast %452 : vector<1xf32> to vector<1x1xf32>
    %454 = math.log %453 : vector<1x1xf32>
    %455 = vector.broadcast %454 : vector<1x1xf32> to vector<1x48xf32>
    %456 = arith.subf %450, %455 : vector<1x48xf32>
    %457 = arith.index_cast %c6_i32 : i32 to index
    %c0_118 = arith.constant 0 : index
    %458 = vector.load %arg5[%457, %c0_118] : memref<8x128xf32, #tpu.memory_space<vmem>>, vector<1x48xf32>
    tpu.vector_store %arg5[%457, %c0_118], %456 {strides = array<i32>} : memref<8x128xf32, #tpu.memory_space<vmem>>, vector<1x48xf32>,
    %459 = arith.index_cast %c6_i32 : i32 to index
    %c48_119 = arith.constant 48 : index
    %460 = vector.load %arg5[%459, %c48_119] : memref<8x128xf32, #tpu.memory_space<vmem>>, vector<1x32xf32>
    tpu.vector_store %arg5[%459, %c48_119], %443 {strides = array<i32>} : memref<8x128xf32, #tpu.memory_space<vmem>>, vector<1x32xf32>,
    %461 = arith.index_cast %c6_i32 : i32 to index
    %c80_120 = arith.constant 80 : index
    %462 = vector.load %arg5[%461, %c80_120] : memref<8x128xf32, #tpu.memory_space<vmem>>, vector<1x10xf32>
    tpu.vector_store %arg5[%461, %c80_120], %415 {strides = array<i32>} : memref<8x128xf32, #tpu.memory_space<vmem>>, vector<1x10xf32>,
    %c7_i32 = arith.constant 7 : i32
    %463 = arith.index_cast %c7_i32 : i32 to index
    %c0_121 = arith.constant 0 : index
    %464 = vector.load %arg0[%463, %c0_121] : memref<8x32xf32, #tpu.memory_space<vmem>>, vector<1x32xf32>
    %465 = tpu.concatenate %464, %443 in 1 : vector<1x32xf32>, vector<1x32xf32> -> vector<1x64xf32>
    %cst_122 = arith.constant dense<0.000000e+00> : vector<1x128xf32>
    %466 = tpu.matmul %465, %3, %cst_122 {dimension_numbers = #tpu.dot_dimension_numbers<[1], [0], [0], [1], [0, 0, 1, 1], [], []>} : vector<1x64xf32>, vector<64x128xf32>, vector<1x128xf32> -> vector<1x128xf32>
    %467 = arith.addf %466, %11 : vector<1x128xf32>
    %468 = vector.extract_strided_slice %467 {offsets = [0, 96], sizes = [1, 10], strides = [1, 1]} : vector<1x128xf32> to vector<1x10xf32>
    %cst_123 = arith.constant dense<0xFF800000> : vector<1xf32>
    %469 = vector.multi_reduction <maximumf>, %468, %cst_123 [1] : vector<1x10xf32> to vector<1xf32>
    %470 = vector.shape_cast %469 : vector<1xf32> to vector<1x1xf32>
    %471 = vector.broadcast %470 : vector<1x1xf32> to vector<1x10xf32>
    %472 = arith.subf %468, %471 : vector<1x10xf32>
    %473 = math.exp %472 : vector<1x10xf32>
    %cst_124 = arith.constant dense<0.000000e+00> : vector<1xf32>
    %474 = vector.multi_reduction <add>, %473, %cst_124 [1] : vector<1x10xf32> to vector<1xf32>
    %475 = vector.shape_cast %474 : vector<1xf32> to vector<1x1xf32>
    %476 = tpu.reciprocal %475 {approx = true} : vector<1x1xf32> -> vector<1x1xf32>
    %477 = vector.broadcast %476 : vector<1x1xf32> to vector<1x10xf32>
    %478 = arith.mulf %473, %477 : vector<1x10xf32>
    %cst_125 = arith.constant dense<0.000000e+00> : vector<1x32xf32>
    %479 = tpu.matmul %478, %18, %cst_125 {dimension_numbers = #tpu.dot_dimension_numbers<[1], [0], [0], [1], [0, 0, 1, 1], [], []>} : vector<1x10xf32>, vector<10x32xf32>, vector<1x32xf32> -> vector<1x32xf32>
    %480 = tpu.concatenate %464, %479 in 1 : vector<1x32xf32>, vector<1x32xf32> -> vector<1x64xf32>
    %cst_126 = arith.constant dense<0.000000e+00> : vector<1x128xf32>
    %481 = tpu.matmul %480, %5, %cst_126 {dimension_numbers = #tpu.dot_dimension_numbers<[1], [0], [0], [1], [0, 0, 1, 1], [], []>} : vector<1x64xf32>, vector<64x128xf32>, vector<1x128xf32> -> vector<1x128xf32>
    %482 = arith.addf %481, %13 : vector<1x128xf32>
    %483 = vector.extract_strided_slice %482 {offsets = [0, 0], sizes = [1, 32], strides = [1, 1]} : vector<1x128xf32> to vector<1x32xf32>
    %cst_127 = arith.constant 0.000000e+00 : f32
    %484 = vector.broadcast %cst_127 : f32 to vector<1x32xf32>
    %485 = arith.maximumf %483, %484 : vector<1x32xf32>
    %cst_128 = arith.constant dense<0.000000e+00> : vector<1x128xf32>
    %486 = tpu.matmul %485, %7, %cst_128 {dimension_numbers = #tpu.dot_dimension_numbers<[1], [0], [0], [1], [0, 0, 1, 1], [], []>} : vector<1x32xf32>, vector<32x128xf32>, vector<1x128xf32> -> vector<1x128xf32>
    %487 = arith.addf %486, %15 : vector<1x128xf32>
    %488 = arith.addf %487, %467 : vector<1x128xf32>
    %489 = vector.extract_strided_slice %488 {offsets = [0, 0], sizes = [1, 64], strides = [1, 1]} : vector<1x128xf32> to vector<1x64xf32>
    %490 = arith.negf %489 : vector<1x64xf32>
    %491 = math.exp %490 : vector<1x64xf32>
    %cst_129 = arith.constant 1.000000e+00 : f32
    %492 = vector.broadcast %cst_129 : f32 to vector<1x64xf32>
    %493 = arith.addf %492, %491 : vector<1x64xf32>
    %494 = arith.divf %492, %493 : vector<1x64xf32>
    %495 = vector.extract_strided_slice %494 {offsets = [0, 0], sizes = [1, 32], strides = [1, 1]} : vector<1x64xf32> to vector<1x32xf32>
    %496 = vector.extract_strided_slice %494 {offsets = [0, 32], sizes = [1, 32], strides = [1, 1]} : vector<1x64xf32> to vector<1x32xf32>
    %497 = vector.extract_strided_slice %487 {offsets = [0, 64], sizes = [1, 32], strides = [1, 1]} : vector<1x128xf32> to vector<1x32xf32>
    %498 = vector.extract_strided_slice %467 {offsets = [0, 64], sizes = [1, 32], strides = [1, 1]} : vector<1x128xf32> to vector<1x32xf32>
    %499 = arith.mulf %495, %498 : vector<1x32xf32>
    %500 = arith.addf %497, %499 : vector<1x32xf32>
    %501 = math.tanh %500 : vector<1x32xf32>
    %cst_130 = arith.constant 1.000000e+00 : f32
    %502 = vector.broadcast %cst_130 : f32 to vector<1x32xf32>
    %503 = arith.subf %502, %496 : vector<1x32xf32>
    %504 = arith.mulf %503, %501 : vector<1x32xf32>
    %505 = arith.mulf %496, %443 : vector<1x32xf32>
    %506 = arith.addf %504, %505 : vector<1x32xf32>
    %cst_131 = arith.constant dense<0.000000e+00> : vector<1x128xf32>
    %507 = tpu.matmul %506, %9, %cst_131 {dimension_numbers = #tpu.dot_dimension_numbers<[1], [0], [0], [1], [0, 0, 1, 1], [], []>} : vector<1x32xf32>, vector<32x128xf32>, vector<1x128xf32> -> vector<1x128xf32>
    %508 = arith.addf %507, %17 : vector<1x128xf32>
    %509 = vector.extract_strided_slice %508 {offsets = [0, 0], sizes = [1, 48], strides = [1, 1]} : vector<1x128xf32> to vector<1x48xf32>
    %cst_132 = arith.constant dense<0xFF800000> : vector<1xf32>
    %510 = vector.multi_reduction <maximumf>, %509, %cst_132 [1] : vector<1x48xf32> to vector<1xf32>
    %511 = vector.shape_cast %510 : vector<1xf32> to vector<1x1xf32>
    %512 = vector.broadcast %511 : vector<1x1xf32> to vector<1x48xf32>
    %513 = arith.subf %509, %512 : vector<1x48xf32>
    %514 = math.exp %513 : vector<1x48xf32>
    %cst_133 = arith.constant dense<0.000000e+00> : vector<1xf32>
    %515 = vector.multi_reduction <add>, %514, %cst_133 [1] : vector<1x48xf32> to vector<1xf32>
    %516 = vector.shape_cast %515 : vector<1xf32> to vector<1x1xf32>
    %517 = math.log %516 : vector<1x1xf32>
    %518 = vector.broadcast %517 : vector<1x1xf32> to vector<1x48xf32>
    %519 = arith.subf %513, %518 : vector<1x48xf32>
    %520 = arith.index_cast %c7_i32 : i32 to index
    %c0_134 = arith.constant 0 : index
    %521 = vector.load %arg5[%520, %c0_134] : memref<8x128xf32, #tpu.memory_space<vmem>>, vector<1x48xf32>
    tpu.vector_store %arg5[%520, %c0_134], %519 {strides = array<i32>} : memref<8x128xf32, #tpu.memory_space<vmem>>, vector<1x48xf32>,
    %522 = arith.index_cast %c7_i32 : i32 to index
    %c48_135 = arith.constant 48 : index
    %523 = vector.load %arg5[%522, %c48_135] : memref<8x128xf32, #tpu.memory_space<vmem>>, vector<1x32xf32>
    tpu.vector_store %arg5[%522, %c48_135], %506 {strides = array<i32>} : memref<8x128xf32, #tpu.memory_space<vmem>>, vector<1x32xf32>,
    %524 = arith.index_cast %c7_i32 : i32 to index
    %c80_136 = arith.constant 80 : index
    %525 = vector.load %arg5[%524, %c80_136] : memref<8x128xf32, #tpu.memory_space<vmem>>, vector<1x10xf32>
    tpu.vector_store %arg5[%524, %c80_136], %478 {strides = array<i32>} : memref<8x128xf32, #tpu.memory_space<vmem>>, vector<1x10xf32>,
    %c8_i32 = arith.constant 8 : i32
    return
  }
}

</mosaic_0001>

<llo_original>
// kernel: _decode_impl.1
$region0: #{_decode_impl.1}
  #allocation0 [shape = 'u32[]', space=smem, size = 0x4, offset = 0x4, fixed_abs, tag = 'smem constant byte address 0x4 - core index']
  #allocation1 [shape = 'u32[144,128]{1,0:T(1,128)}', space=vmem, size = 0x12000, scoped, tag = 'internal scratch']
  %s0 = inlined_call_operand.vmem [shape: f32[8,32], index: 0, kind: input, shape index: {}]
  %s1 = inlined_call_operand.vmem [shape: f32[10,32], index: 1, kind: input, shape index: {}]
  %s2 = inlined_call_operand.vmem [shape: f32[1,32], index: 2, kind: input, shape index: {}]
  %s3 = inlined_call_operand.hbm [shape: f32[4,64,128], index: 3, kind: input, shape index: {}]
  %s4 = inlined_call_operand.vmem [shape: f32[4,1,128], index: 4, kind: input, shape index: {}]
  %s5 = inlined_call_operand.vmem [shape: f32[8,128], index: 5, kind: output, shape index: {}]
  %s6 = sld [smem:[#allocation0]]
  $region34: #{_decode_impl.1} parent=0
    _
  %s8 = ssub.s32 1, %s6
  %s9 = scalar_select 0, %s8, %s6
  $region1: #{_decode_impl.1} parent=0
    #allocation2 [shape = 'u8[131072]{0}', space=vmem, size = 0x20000, scoped, tag = 'input window, operand 3, single buffered']
    #allocation3 [shape = 's32[1]{0}', space=sflag, size = 0x4, scoped, tag = 'scoped memory for _decode_impl.1']
    %10 = vsyncpa [#allocation3], 0
    // Predicated region
    $region2: #{_decode_impl.1} parent=1 // pred_check
      _
    $region3: #{_decode_impl.1} parent=1 // pred_check_branch
      %12 = sbr.rel (0) target = $region5
    $region4: #{_decode_impl.1} parent=1 // pred_region
      _
    $region5: #{_decode_impl.1} parent=1 // pred_fallthru
      _
    // Predicated region
    $region6: #{_decode_impl.1} parent=1 // pred_check
      _
    $region7: #{_decode_impl.1} parent=1 // pred_check_branch
      %14 = sbr.rel (0) target = $region9
    $region8: #{_decode_impl.1} parent=1 // pred_region
      _
    $region9: #{_decode_impl.1} parent=1 // pred_fallthru
      _
    // Predicated region
    $region10: #{_decode_impl.1} parent=1 // pred_check
      _
    $region11: #{_decode_impl.1} parent=1 // pred_check_branch
      %16 = sbr.rel (0) target = $region13
    $region12: #{_decode_impl.1} parent=1 // pred_region
      _
    $region13: #{_decode_impl.1} parent=1 // pred_fallthru
      _
    // Predicated region
    $region14: #{_decode_impl.1} parent=1 // pred_check
      _
    $region15: #{_decode_impl.1} parent=1 // pred_check_branch
      %18 = sbr.rel (0) target = $region17
    $region16: #{_decode_impl.1} parent=1 // pred_region
      %s20 = ssub.s32 4096, 4096
      %21 = vsyncadd [#allocation3], %s20
      %s22 = sshll.u32 [#allocation2], 4
      %s23 = int_to_ptr.vmem [resolvable:$true] %s22
      %28 = dma.hbm_to_vmem [thread:$0]  %s3, 4096, %s23, [#allocation3], 128, 128, 8
    $region17: #{_decode_impl.1} parent=1 // pred_fallthru
      _
    // Predicated region
    $region18: #{_decode_impl.1} parent=1 // pred_check
      _
    $region19: #{_decode_impl.1} parent=1 // pred_check_branch
      %30 = sbr.rel (0) target = $region21
    $region20: #{_decode_impl.1} parent=1 // pred_region
      _
    $region21: #{_decode_impl.1} parent=1 // pred_fallthru
      _
    // Predicated region
    $region22: #{_decode_impl.1} parent=1 // pred_check
      _
    $region23: #{_decode_impl.1} parent=1 // pred_check_branch
      %32 = sbr.rel (0) target = $region25
    $region24: #{_decode_impl.1} parent=1 // pred_region
      %33 = dma.done [#allocation3], 4096
    $region25: #{_decode_impl.1} parent=1 // pred_fallthru
      _
    %v34 = vld [vmem:[#allocation2] sm:$0xff]
    %v35 = vld [vmem:[#allocation2 + $0x8] sm:$0xff]
    %v36 = vld [vmem:[#allocation2 + $0x10] sm:$0xff]
    %v37 = vld [vmem:[#allocation2 + $0x18] sm:$0xff]
    %v38 = vld [vmem:[#allocation2 + $0x20] sm:$0xff]
    %v39 = vld [vmem:[#allocation2 + $0x28] sm:$0xff]
    %v40 = vld [vmem:[#allocation2 + $0x30] sm:$0xff]
    %v41 = vld [vmem:[#allocation2 + $0x38] sm:$0xff]
    %v42 = vld [vmem:[#allocation2 + $0x40] sm:$0xff]
    %v43 = vld [vmem:[#allocation2 + $0x48] sm:$0xff]
    %v44 = vld [vmem:[#allocation2 + $0x50] sm:$0xff]
    %v45 = vld [vmem:[#allocation2 + $0x58] sm:$0xff]
    %v46 = vld [vmem:[#allocation2 + $0x60] sm:$0xff]
    %v47 = vld [vmem:[#allocation2 + $0x68] sm:$0xff]
    %v48 = vld [vmem:[#allocation2 + $0x70] sm:$0xff]
    %v49 = vld [vmem:[#allocation2 + $0x78] sm:$0xff]
    %v50 = vld [vmem:[#allocation2 + $0x80] sm:$0xff]
    %v51 = vld [vmem:[#allocation2 + $0x88] sm:$0xff]
    %v52 = vld [vmem:[#allocation2 + $0x90] sm:$0xff]
    %v53 = vld [vmem:[#allocation2 + $0x98] sm:$0xff]
    %v54 = vld [vmem:[#allocation2 + $0xc0] sm:$0xff]
    %v55 = vld [vmem:[#allocation2 + $0xc8] sm:$0xff]
    %v56 = vld [vmem:[#allocation2 + $0xd0] sm:$0xff]
    %v57 = vld [vmem:[#allocation2 + $0xd8] sm:$0xff]
    %v58 = vld [vmem:[%s4] sm:$0x1]
    %v59 = vld [vmem:[%s4 + $0x1] sm:$0x1]
    %v60 = vld [vmem:[%s4 + $0x2] sm:$0x1]
    %v61 = vld [vmem:[%s4 + $0x3] sm:$0x1]
    %v62 = vld [vmem:[%s1] sm:$0xff]
    %v63 = vld [vmem:[%s1 + $0x8] sm:$0x3]
    %64 = vst [vmem:[%s5] sm:$0xff] 0.0
    %v65 = vld [vmem:[%s2] sm:$0x1]
    %v66 = vld [vmem:[%s0] sm:$0x1]
    %v68 = vlaneseq
    %v69 = vshrl.u32 %v68, 7
    %v70 = vsub.s32 0, %v69
    %v71 = vrot.slane %v65, %v70
    %72 = vrot.lane.b32.xlu0 %v71, 32
    %v73 = vpop.permute.xlu0 %72
    %vm75 = vcmask 261120
    %v76 = vsel %vm75, %v66, %v73
    %vm77 = vcmask 523264
    %v79 = vsel %vm77, %v76, 0
    %81 = vmatprep.subr.mxu0 0.0
    %82 = vmatpush1.msra.mxu0 %v34
    %83 = vmatprep.subr.mxu0 0.0
    %84 = vmatpush1.msra.mxu0 %v35
    %85 = vmatprep.subr.mxu0 0.0
    %86 = vmatpush1.msra.mxu0 %v36
    %87 = vmatprep.subr.mxu0 0.0
    %88 = vmatpush1.msra.mxu0 %v37
    %89 = vmatprep.subr.mxu0 0.0
    %90 = vmatpush1.msra.mxu0 %v38
    %91 = vmatprep.subr.mxu0 0.0
    %92 = vmatpush1.msra.mxu0 %v39
    %93 = vmatprep.subr.mxu0 0.0
    %94 = vmatpush1.msra.mxu0 %v40
    %95 = vmatprep.subr.mxu0 0.0
    %96 = vmatpush1.msra.mxu0 %v41
    %97 = vmatprep.subr.mxu0 0.0
    %98 = vmatpush1.msra.mxu0 0.0
    %99 = vmatprep.subr.mxu0 0.0
    %100 = vmatpush1.msra.mxu0 0.0
    %101 = vmatprep.subr.mxu0 0.0
    %102 = vmatpush1.msra.mxu0 0.0
    %103 = vmatprep.subr.mxu0 0.0
    %104 = vmatpush1.msra.mxu0 0.0
    %105 = vmatprep.subr.mxu0 0.0
    %106 = vmatpush1.msra.mxu0 0.0
    %107 = vmatprep.subr.mxu0 0.0
    %108 = vmatpush1.msra.mxu0 0.0
    %109 = vmatprep.subr.mxu0 0.0
    %110 = vmatpush1.msra.mxu0 0.0
    %111 = vmatprep.subr.mxu0 0.0
    %112 = vmatpush1.msra.mxu0 0.0
    %113 = vmatprep.subr.mxu0 0.0
    %114 = vmatpush1.msra.mxu0 0.0
    %115 = vmatprep.subr.mxu0 0.0
    %116 = vmatpush1.msra.mxu0 0.0
    %117 = vmatprep.subr.mxu0 0.0
    %118 = vmatpush1.msra.mxu0 0.0
    %119 = vmatprep.subr.mxu0 0.0
    %120 = vmatpush1.msra.mxu0 0.0
    %121 = vmatprep.subr.mxu0 0.0
    %122 = vmatpush1.msra.mxu0 0.0
    %123 = vmatprep.subr.mxu0 0.0
    %124 = vmatpush1.msra.mxu0 0.0
    %125 = vmatprep.subr.mxu0 0.0
    %126 = vmatpush1.msra.mxu0 0.0
    %127 = vmatprep.subr.mxu0 0.0
    %128 = vmatpush1.msra.mxu0 0.0
    %129 = vmatprep.subr.mxu0 0.0
    %130 = vmatpush1.msra.mxu0 0.0
    %131 = vmatprep.subr.mxu0 0.0
    %132 = vmatpush1.msra.mxu0 0.0
    %133 = vmatprep.subr.mxu0 0.0
    %134 = vmatpush1.msra.mxu0 0.0
    %135 = vmatprep.subr.mxu0 0.0
    %136 = vmatpush1.msra.mxu0 0.0
    %137 = vmatprep.subr.mxu0 0.0
    %138 = vmatpush1.msra.mxu0 0.0
    %139 = vmatprep.subr.mxu0 0.0
    %140 = vmatpush1.msra.mxu0 0.0
    %141 = vmatprep.subr.mxu0 0.0
    %142 = vmatpush1.msra.mxu0 0.0
    %143 = vmatprep.subr.mxu0 0.0
    %144 = vmatpush1.msra.mxu0 0.0
    %145 = vmatprep.mubr.f32.mxu0 0.0
    %146 = vmatmul.mubr.f32.gmra.mrb[0].mxu0 %v79
    %v147 = vpop.f32.mrb[0].mxu0
    %v148 = vadd.f32 %v58, %v147
    %v149 = vpop.f32.mrb[0].mxu0
    %150 = vdwg.mxu0
    %vm151 = vcmask 860928
    %v152 = vsel %vm151, %v148, -inf
    %153 = vmax.xlane.f32.xlu0 %v152
    %v154 = vpop.xlane.xlu0 %153
    %v155 = vsub.f32 %v148, %v154
    %v156 = vmul.f32 %v155, 1.442695
    %v157 = vpow.pop %v156
    %159 = vrot.lane.b32.xlu0 %v157, 32
    %v160 = vpop.permute.xlu0 %159
    %vm162 = vcmask 73728
    %v163 = vsel %vm162, %v160, 0.0
    %164 = vadd.xlane.f32.xlu0 %v163
    %v165 = vpop.xlane.xlu0 %164
    %v166 = vrcp.pop %v165
    %v167 = vmul.f32 %v157, %v166
    %169 = vrot.lane.b32.xlu0 %v167, 32
    %v170 = vpop.permute.xlu0 %169
    %vm171 = vcmask 80896
    %v172 = vsel %vm171, %v170, 0
    %vm174 = vcmask 1041408
    %v176 = vsel %vm174, %v63, 0
    %178 = vmatprep.subr.mxu0 0.0
    %179 = vmatpush1.msra.mxu0 %v62
    %180 = vmatprep.subr.mxu0 0.0
    %181 = vmatpush1.msra.mxu0 %v176
    %182 = vmatprep.subr.mxu0 0.0
    %183 = vmatpush1.msra.mxu0 0.0
    %184 = vmatprep.subr.mxu0 0.0
    %185 = vmatpush1.msra.mxu0 0.0
    %186 = vmatprep.subr.mxu0 0.0
    %187 = vmatpush1.msra.mxu0 0.0
    %188 = vmatprep.subr.mxu0 0.0
    %189 = vmatpush1.msra.mxu0 0.0
    %190 = vmatprep.subr.mxu0 0.0
    %191 = vmatpush1.msra.mxu0 0.0
    %192 = vmatprep.subr.mxu0 0.0
    %193 = vmatpush1.msra.mxu0 0.0
    %194 = vmatprep.subr.mxu0 0.0
    %195 = vmatpush1.msra.mxu0 0.0
    %196 = vmatprep.subr.mxu0 0.0
    %197 = vmatpush1.msra.mxu0 0.0
    %198 = vmatprep.subr.mxu0 0.0
    %199 = vmatpush1.msra.mxu0 0.0
    %200 = vmatprep.subr.mxu0 0.0
    %201 = vmatpush1.msra.mxu0 0.0
    %202 = vmatprep.subr.mxu0 0.0
    %203 = vmatpush1.msra.mxu0 0.0
    %204 = vmatprep.subr.mxu0 0.0
    %205 = vmatpush1.msra.mxu0 0.0
    %206 = vmatprep.subr.mxu0 0.0
    %207 = vmatpush1.msra.mxu0 0.0
    %208 = vmatprep.subr.mxu0 0.0
    %209 = vmatpush1.msra.mxu0 0.0
    %210 = vmatprep.subr.mxu0 0.0
    %211 = vmatpush1.msra.mxu0 0.0
    %212 = vmatprep.subr.mxu0 0.0
    %213 = vmatpush1.msra.mxu0 0.0
    %214 = vmatprep.subr.mxu0 0.0
    %215 = vmatpush1.msra.mxu0 0.0
    %216 = vmatprep.subr.mxu0 0.0
    %217 = vmatpush1.msra.mxu0 0.0
    %218 = vmatprep.subr.mxu0 0.0
    %219 = vmatpush1.msra.mxu0 0.0
    %220 = vmatprep.subr.mxu0 0.0
    %221 = vmatpush1.msra.mxu0 0.0
    %222 = vmatprep.subr.mxu0 0.0
    %223 = vmatpush1.msra.mxu0 0.0
    %224 = vmatprep.subr.mxu0 0.0
    %225 = vmatpush1.msra.mxu0 0.0
    %226 = vmatprep.subr.mxu0 0.0
    %227 = vmatpush1.msra.mxu0 0.0
    %228 = vmatprep.subr.mxu0 0.0
    %229 = vmatpush1.msra.mxu0 0.0
    %230 = vmatprep.subr.mxu0 0.0
    %231 = vmatpush1.msra.mxu0 0.0
    %232 = vmatprep.subr.mxu0 0.0
    %233 = vmatpush1.msra.mxu0 0.0
    %234 = vmatprep.subr.mxu0 0.0
    %235 = vmatpush1.msra.mxu0 0.0
    %236 = vmatprep.subr.mxu0 0.0
    %237 = vmatpush1.msra.mxu0 0.0
    %238 = vmatprep.subr.mxu0 0.0
    %239 = vmatpush1.msra.mxu0 0.0
    %240 = vmatprep.subr.mxu0 0.0
    %241 = vmatpush1.msra.mxu0 0.0
    %242 = vmatprep.mubr.f32.mxu0 0.0
    %243 = vmatmul.mubr.f32.gmra.mrb[0].mxu0 %v172
    %v244 = vpop.f32.mrb[0].mxu0
    %v245 = vadd.f32 0.0, %v244
    %v246 = vpop.f32.mrb[0].mxu0
    %247 = vdwg.mxu0
    %249 = vrot.lane.b32.xlu0 %v245, 32
    %v250 = vpop.permute.xlu0 %249
    %v252 = vsel %vm75, %v66, %v250
    %v254 = vsel %vm77, %v252, 0
    %256 = vmatprep.subr.mxu0 0.0
    %257 = vmatpush1.msra.mxu0 %v42
    %258 = vmatprep.subr.mxu0 0.0
    %259 = vmatpush1.msra.mxu0 %v43
    %260 = vmatprep.subr.mxu0 0.0
    %261 = vmatpush1.msra.mxu0 %v44
    %262 = vmatprep.subr.mxu0 0.0
    %263 = vmatpush1.msra.mxu0 %v45
    %264 = vmatprep.subr.mxu0 0.0
    %265 = vmatpush1.msra.mxu0 %v46
    %266 = vmatprep.subr.mxu0 0.0
    %267 = vmatpush1.msra.mxu0 %v47
    %268 = vmatprep.subr.mxu0 0.0
    %269 = vmatpush1.msra.mxu0 %v48
    %270 = vmatprep.subr.mxu0 0.0
    %271 = vmatpush1.msra.mxu0 %v49
    %272 = vmatprep.subr.mxu0 0.0
    %273 = vmatpush1.msra.mxu0 0.0
    %274 = vmatprep.subr.mxu0 0.0
    %275 = vmatpush1.msra.mxu0 0.0
    %276 = vmatprep.subr.mxu0 0.0
    %277 = vmatpush1.msra.mxu0 0.0
    %278 = vmatprep.subr.mxu0 0.0
    %279 = vmatpush1.msra.mxu0 0.0
    %280 = vmatprep.subr.mxu0 0.0
    %281 = vmatpush1.msra.mxu0 0.0
    %282 = vmatprep.subr.mxu0 0.0
    %283 = vmatpush1.msra.mxu0 0.0
    %284 = vmatprep.subr.mxu0 0.0
    %285 = vmatpush1.msra.mxu0 0.0
    %286 = vmatprep.subr.mxu0 0.0
    %287 = vmatpush1.msra.mxu0 0.0
    %288 = vmatprep.subr.mxu0 0.0
    %289 = vmatpush1.msra.mxu0 0.0
    %290 = vmatprep.subr.mxu0 0.0
    %291 = vmatpush1.msra.mxu0 0.0
    %292 = vmatprep.subr.mxu0 0.0
    %293 = vmatpush1.msra.mxu0 0.0
    %294 = vmatprep.subr.mxu0 0.0
    %295 = vmatpush1.msra.mxu0 0.0
    %296 = vmatprep.subr.mxu0 0.0
    %297 = vmatpush1.msra.mxu0 0.0
    %298 = vmatprep.subr.mxu0 0.0
    %299 = vmatpush1.msra.mxu0 0.0
    %300 = vmatprep.subr.mxu0 0.0
    %301 = vmatpush1.msra.mxu0 0.0
    %302 = vmatprep.subr.mxu0 0.0
    %303 = vmatpush1.msra.mxu0 0.0
    %304 = vmatprep.subr.mxu0 0.0
    %305 = vmatpush1.msra.mxu0 0.0
    %306 = vmatprep.subr.mxu0 0.0
    %307 = vmatpush1.msra.mxu0 0.0
    %308 = vmatprep.subr.mxu0 0.0
    %309 = vmatpush1.msra.mxu0 0.0
    %310 = vmatprep.subr.mxu0 0.0
    %311 = vmatpush1.msra.mxu0 0.0
    %312 = vmatprep.subr.mxu0 0.0
    %313 = vmatpush1.msra.mxu0 0.0
    %314 = vmatprep.subr.mxu0 0.0
    %315 = vmatpush1.msra.mxu0 0.0
    %316 = vmatprep.subr.mxu0 0.0
    %317 = vmatpush1.msra.mxu0 0.0
    %318 = vmatprep.subr.mxu0 0.0
    %319 = vmatpush1.msra.mxu0 0.0
    %320 = vmatprep.mubr.f32.mxu0 0.0
    %321 = vmatmul.mubr.f32.gmra.mrb[0].mxu0 %v254
    %v322 = vpop.f32.mrb[0].mxu0
    %v323 = vadd.f32 %v59, %v322
    %v324 = vpop.f32.mrb[0].mxu0
    %325 = vdwg.mxu0
    %v326 = vmax.f32 %v323, 0.0
    %v328 = vsel %vm75, %v326, 0
    %330 = vmatprep.subr.mxu0 0.0
    %331 = vmatpush1.msra.mxu0 %v50
    %332 = vmatprep.subr.mxu0 0.0
    %333 = vmatpush1.msra.mxu0 %v51
    %334 = vmatprep.subr.mxu0 0.0
    %335 = vmatpush1.msra.mxu0 %v52
    %336 = vmatprep.subr.mxu0 0.0
    %337 = vmatpush1.msra.mxu0 %v53
    %338 = vmatprep.subr.mxu0 0.0
    %339 = vmatpush1.msra.mxu0 0.0
    %340 = vmatprep.subr.mxu0 0.0
    %341 = vmatpush1.msra.mxu0 0.0
    %342 = vmatprep.subr.mxu0 0.0
    %343 = vmatpush1.msra.mxu0 0.0
    %344 = vmatprep.subr.mxu0 0.0
    %345 = vmatpush1.msra.mxu0 0.0
    %346 = vmatprep.subr.mxu0 0.0
    %347 = vmatpush1.msra.mxu0 0.0
    %348 = vmatprep.subr.mxu0 0.0
    %349 = vmatpush1.msra.mxu0 0.0
    %350 = vmatprep.subr.mxu0 0.0
    %351 = vmatpush1.msra.mxu0 0.0
    %352 = vmatprep.subr.mxu0 0.0
    %353 = vmatpush1.msra.mxu0 0.0
    %354 = vmatprep.subr.mxu0 0.0
    %355 = vmatpush1.msra.mxu0 0.0
    %356 = vmatprep.subr.mxu0 0.0
    %357 = vmatpush1.msra.mxu0 0.0
    %358 = vmatprep.subr.mxu0 0.0
    %359 = vmatpush1.msra.mxu0 0.0
    %360 = vmatprep.subr.mxu0 0.0
    %361 = vmatpush1.msra.mxu0 0.0
    %362 = vmatprep.subr.mxu0 0.0
    %363 = vmatpush1.msra.mxu0 0.0
    %364 = vmatprep.subr.mxu0 0.0
    %365 = vmatpush1.msra.mxu0 0.0
    %366 = vmatprep.subr.mxu0 0.0
    %367 = vmatpush1.msra.mxu0 0.0
    %368 = vmatprep.subr.mxu0 0.0
    %369 = vmatpush1.msra.mxu0 0.0
    %370 = vmatprep.subr.mxu0 0.0
    %371 = vmatpush1.msra.mxu0 0.0
    %372 = vmatprep.subr.mxu0 0.0
    %373 = vmatpush1.msra.mxu0 0.0
    %374 = vmatprep.subr.mxu0 0.0
    %375 = vmatpush1.msra.mxu0 0.0
    %376 = vmatprep.subr.mxu0 0.0
    %377 = vmatpush1.msra.mxu0 0.0
    %378 = vmatprep.subr.mxu0 0.0
    %379 = vmatpush1.msra.mxu0 0.0
    %380 = vmatprep.subr.mxu0 0.0
    %381 = vmatpush1.msra.mxu0 0.0
    %382 = vmatprep.subr.mxu0 0.0
    %383 = vmatpush1.msra.mxu0 0.0
    %384 = vmatprep.subr.mxu0 0.0
    %385 = vmatpush1.msra.mxu0 0.0
    %386 = vmatprep.subr.mxu0 0.0
    %387 = vmatpush1.msra.mxu0 0.0
    %388 = vmatprep.subr.mxu0 0.0
    %389 = vmatpush1.msra.mxu0 0.0
    %390 = vmatprep.subr.mxu0 0.0
    %391 = vmatpush1.msra.mxu0 0.0
    %392 = vmatprep.subr.mxu0 0.0
    %393 = vmatpush1.msra.mxu0 0.0
    %394 = vmatprep.mubr.f32.mxu0 0.0
    %395 = vmatmul.mubr.f32.gmra.mrb[0].mxu0 %v328
    %v396 = vpop.f32.mrb[0].mxu0
    %v397 = vadd.f32 %v60, %v396
    %v398 = vpop.f32.mrb[0].mxu0
    %399 = vdwg.mxu0
    %v400 = vadd.f32 %v397, %v148
    %v401 = vxor.u32 %v400, 2147483648
    %v402 = vmul.f32 %v401, 1.442695
    %v403 = vpow.pop %v402
    %v404 = vadd.f32 %v403, 1.0
    %v405 = vrcp.pop %v404
    %v406 = vmul.f32 1.0, %v405
    %408 = vrot.lane.b32.xlu0 %v148, 64
    %v409 = vpop.permute.xlu0 %408
    %v411 = vmul.f32 %v406, %v409
    %413 = vrot.lane.b32.xlu0 %v411, 64
    %v414 = vpop.permute.xlu0 %413
    %v416 = vadd.f32 %v397, %v414
    %v417 = vtanh.pop %v416
    %v418 = vsub.f32 1.0, %v406
    %420 = vrot.lane.b32.xlu0 %v417, 96
    %v421 = vpop.permute.xlu0 %420
    %v423 = vmul.f32 %v418, %v421
    %v424 = vmul.f32 %v406, %v73
    %v425 = vadd.f32 %v423, %v424
    %427 = vrot.lane.b32.xlu0 %v425, 96
    %v428 = vpop.permute.xlu0 %427
    %v429 = vsel %vm75, %v428, 0
    %431 = vmatprep.subr.mxu0 0.0
    %432 = vmatpush1.msra.mxu0 %v54
    %433 = vmatprep.subr.mxu0 0.0
    %434 = vmatpush1.msra.mxu0 %v55
    %435 = vmatprep.subr.mxu0 0.0
    %436 = vmatpush1.msra.mxu0 %v56
    %437 = vmatprep.subr.mxu0 0.0
    %438 = vmatpush1.msra.mxu0 %v57
    %439 = vmatprep.subr.mxu0 0.0
    %440 = vmatpush1.msra.mxu0 0.0
    %441 = vmatprep.subr.mxu0 0.0
    %442 = vmatpush1.msra.mxu0 0.0
    %443 = vmatprep.subr.mxu0 0.0
    %444 = vmatpush1.msra.mxu0 0.0
    %445 = vmatprep.subr.mxu0 0.0
    %446 = vmatpush1.msra.mxu0 0.0
    %447 = vmatprep.subr.mxu0 0.0
    %448 = vmatpush1.msra.mxu0 0.0
    %449 = vmatprep.subr.mxu0 0.0
    %450 = vmatpush1.msra.mxu0 0.0
    %451 = vmatprep.subr.mxu0 0.0
    %452 = vmatpush1.msra.mxu0 0.0
    %453 = vmatprep.subr.mxu0 0.0
    %454 = vmatpush1.msra.mxu0 0.0
    %455 = vmatprep.subr.mxu0 0.0
    %456 = vmatpush1.msra.mxu0 0.0
    %457 = vmatprep.subr.mxu0 0.0
    %458 = vmatpush1.msra.mxu0 0.0
    %459 = vmatprep.subr.mxu0 0.0
    %460 = vmatpush1.msra.mxu0 0.0
    %461 = vmatprep.subr.mxu0 0.0
    %462 = vmatpush1.msra.mxu0 0.0
    %463 = vmatprep.subr.mxu0 0.0
    %464 = vmatpush1.msra.mxu0 0.0
    %465 = vmatprep.subr.mxu0 0.0
    %466 = vmatpush1.msra.mxu0 0.0
    %467 = vmatprep.subr.mxu0 0.0
    %468 = vmatpush1.msra.mxu0 0.0
    %469 = vmatprep.subr.mxu0 0.0
    %470 = vmatpush1.msra.mxu0 0.0
    %471 = vmatprep.subr.mxu0 0.0
    %472 = vmatpush1.msra.mxu0 0.0
    %473 = vmatprep.subr.mxu0 0.0
    %474 = vmatpush1.msra.mxu0 0.0
    %475 = vmatprep.subr.mxu0 0.0
    %476 = vmatpush1.msra.mxu0 0.0
    %477 = vmatprep.subr.mxu0 0.0
    %478 = vmatpush1.msra.mxu0 0.0
    %479 = vmatprep.subr.mxu0 0.0
    %480 = vmatpush1.msra.mxu0 0.0
    %481 = vmatprep.subr.mxu0 0.0
    %482 = vmatpush1.msra.mxu0 0.0
    %483 = vmatprep.subr.mxu0 0.0
    %484 = vmatpush1.msra.mxu0 0.0
    %485 = vmatprep.subr.mxu0 0.0
    %486 = vmatpush1.msra.mxu0 0.0
    %487 = vmatprep.subr.mxu0 0.0
    %488 = vmatpush1.msra.mxu0 0.0
    %489 = vmatprep.subr.mxu0 0.0
    %490 = vmatpush1.msra.mxu0 0.0
    %491 = vmatprep.subr.mxu0 0.0
    %492 = vmatpush1.msra.mxu0 0.0
    %493 = vmatprep.subr.mxu0 0.0
    %494 = vmatpush1.msra.mxu0 0.0
    %495 = vmatprep.mubr.f32.mxu0 0.0
    %496 = vmatmul.mubr.f32.gmra.mrb[0].mxu0 %v429
    %v497 = vpop.f32.mrb[0].mxu0
    %v498 = vadd.f32 %v61, %v497
    %v499 = vpop.f32.mrb[0].mxu0
    %500 = vdwg.mxu0
    %vm501 = vcmask 385024
    %v502 = vsel %vm501, %v498, -inf
    %503 = vmax.xlane.f32.xlu0 %v502
    %v504 = vpop.xlane.xlu0 %503
    %v505 = vsub.f32 %v498, %v504
    %v506 = vmul.f32 %v505, 1.442695
    %v507 = vpow.pop %v506
    %v508 = vsel %vm501, %v507, 0.0
    %509 = vadd.xlane.f32.xlu0 %v508
    %v510 = vpop.xlane.xlu0 %509
    %v511 = vlog2.pop %v510
    %v512 = vmul.f32 %v511, 0.6931472
    %v513 = vsub.f32 %v505, %v512
    %514 = vst.msk [vmem:[%s5] sm:$0x1] %vm501, %v513
    %515 = vrot.lane.b32.xlu0 %v425, 16
    %v516 = vpop.permute.xlu0 %515
    %vm518 = vcmask 647552
    %519 = vst.msk [vmem:[%s5] sm:$0x1] %vm518, %v516
    %520 = vrot.lane.b32.xlu0 %v167, 112
    %v521 = vpop.permute.xlu0 %520
    %vm523 = vcmask 729728
    %524 = vst.msk [vmem:[%s5] sm:$0x1] %vm523, %v521
    %v525 = vld [vmem:[%s0 + $0x1] sm:$0x1]
    %v526 = vsel %vm75, %v525, %v425
    %v528 = vsel %vm77, %v526, 0
    %530 = vmatprep.subr.mxu0 0.0
    %531 = vmatpush1.msra.mxu0 %v34
    %532 = vmatprep.subr.mxu0 0.0
    %533 = vmatpush1.msra.mxu0 %v35
    %534 = vmatprep.subr.mxu0 0.0
    %535 = vmatpush1.msra.mxu0 %v36
    %536 = vmatprep.subr.mxu0 0.0
    %537 = vmatpush1.msra.mxu0 %v37
    %538 = vmatprep.subr.mxu0 0.0
    %539 = vmatpush1.msra.mxu0 %v38
    %540 = vmatprep.subr.mxu0 0.0
    %541 = vmatpush1.msra.mxu0 %v39
    %542 = vmatprep.subr.mxu0 0.0
    %543 = vmatpush1.msra.mxu0 %v40
    %544 = vmatprep.subr.mxu0 0.0
    %545 = vmatpush1.msra.mxu0 %v41
    %546 = vmatprep.subr.mxu0 0.0
    %547 = vmatpush1.msra.mxu0 0.0
    %548 = vmatprep.subr.mxu0 0.0
    %549 = vmatpush1.msra.mxu0 0.0
    %550 = vmatprep.subr.mxu0 0.0
    %551 = vmatpush1.msra.mxu0 0.0
    %552 = vmatprep.subr.mxu0 0.0
    %553 = vmatpush1.msra.mxu0 0.0
    %554 = vmatprep.subr.mxu0 0.0
    %555 = vmatpush1.msra.mxu0 0.0
    %556 = vmatprep.subr.mxu0 0.0
    %557 = vmatpush1.msra.mxu0 0.0
    %558 = vmatprep.subr.mxu0 0.0
    %559 = vmatpush1.msra.mxu0 0.0
    %560 = vmatprep.subr.mxu0 0.0
    %561 = vmatpush1.msra.mxu0 0.0
    %562 = vmatprep.subr.mxu0 0.0
    %563 = vmatpush1.msra.mxu0 0.0
    %564 = vmatprep.subr.mxu0 0.0
    %565 = vmatpush1.msra.mxu0 0.0
    %566 = vmatprep.subr.mxu0 0.0
    %567 = vmatpush1.msra.mxu0 0.0
    %568 = vmatprep.subr.mxu0 0.0
    %569 = vmatpush1.msra.mxu0 0.0
    %570 = vmatprep.subr.mxu0 0.0
    %571 = vmatpush1.msra.mxu0 0.0
    %572 = vmatprep.subr.mxu0 0.0
    %573 = vmatpush1.msra.mxu0 0.0
    %574 = vmatprep.subr.mxu0 0.0
    %575 = vmatpush1.msra.mxu0 0.0
    %576 = vmatprep.subr.mxu0 0.0
    %577 = vmatpush1.msra.mxu0 0.0
    %578 = vmatprep.subr.mxu0 0.0
    %579 = vmatpush1.msra.mxu0 0.0
    %580 = vmatprep.subr.mxu0 0.0
    %581 = vmatpush1.msra.mxu0 0.0
    %582 = vmatprep.subr.mxu0 0.0
    %583 = vmatpush1.msra.mxu0 0.0
    %584 = vmatprep.subr.mxu0 0.0
    %585 = vmatpush1.msra.mxu0 0.0
    %586 = vmatprep.subr.mxu0 0.0
    %587 = vmatpush1.msra.mxu0 0.0
    %588 = vmatprep.subr.mxu0 0.0
    %589 = vmatpush1.msra.mxu0 0.0
    %590 = vmatprep.subr.mxu0 0.0
    %591 = vmatpush1.msra.mxu0 0.0
    %592 = vmatprep.subr.mxu0 0.0
    %593 = vmatpush1.msra.mxu0 0.0
    %594 = vmatprep.mubr.f32.mxu0 0.0
    %595 = vmatmul.mubr.f32.gmra.mrb[0].mxu0 %v528
    %v596 = vpop.f32.mrb[0].mxu0
    %v597 = vadd.f32 %v58, %v596
    %v598 = vpop.f32.mrb[0].mxu0
    %599 = vdwg.mxu0
    %v600 = vsel %vm151, %v597, -inf
    %601 = vmax.xlane.f32.xlu0 %v600
    %v602 = vpop.xlane.xlu0 %601
    %v603 = vsub.f32 %v597, %v602
    %v604 = vmul.f32 %v603, 1.442695
    %v605 = vpow.pop %v604
    %607 = vrot.lane.b32.xlu0 %v605, 32
    %v608 = vpop.permute.xlu0 %607
    %v610 = vsel %vm162, %v608, 0.0
    %611 = vadd.xlane.f32.xlu0 %v610
    %v612 = vpop.xlane.xlu0 %611
    %v613 = vrcp.pop %v612
    %v614 = vmul.f32 %v605, %v613
    %616 = vrot.lane.b32.xlu0 %v614, 32
    %v617 = vpop.permute.xlu0 %616
    %v618 = vsel %vm171, %v617, 0
    %620 = vmatprep.subr.mxu0 0.0
    %621 = vmatpush1.msra.mxu0 %v62
    %622 = vmatprep.subr.mxu0 0.0
    %623 = vmatpush1.msra.mxu0 %v176
    %624 = vmatprep.subr.mxu0 0.0
    %625 = vmatpush1.msra.mxu0 0.0
    %626 = vmatprep.subr.mxu0 0.0
    %627 = vmatpush1.msra.mxu0 0.0
    %628 = vmatprep.subr.mxu0 0.0
    %629 = vmatpush1.msra.mxu0 0.0
    %630 = vmatprep.subr.mxu0 0.0
    %631 = vmatpush1.msra.mxu0 0.0
    %632 = vmatprep.subr.mxu0 0.0
    %633 = vmatpush1.msra.mxu0 0.0
    %634 = vmatprep.subr.mxu0 0.0
    %635 = vmatpush1.msra.mxu0 0.0
    %636 = vmatprep.subr.mxu0 0.0
    %637 = vmatpush1.msra.mxu0 0.0
    %638 = vmatprep.subr.mxu0 0.0
    %639 = vmatpush1.msra.mxu0 0.0
    %640 = vmatprep.subr.mxu0 0.0
    %641 = vmatpush1.msra.mxu0 0.0
    %642 = vmatprep.subr.mxu0 0.0
    %643 = vmatpush1.msra.mxu0 0.0
    %644 = vmatprep.subr.mxu0 0.0
    %645 = vmatpush1.msra.mxu0 0.0
    %646 = vmatprep.subr.mxu0 0.0
    %647 = vmatpush1.msra.mxu0 0.0
    %648 = vmatprep.subr.mxu0 0.0
    %649 = vmatpush1.msra.mxu0 0.0
    %650 = vmatprep.subr.mxu0 0.0
    %651 = vmatpush1.msra.mxu0 0.0
    %652 = vmatprep.subr.mxu0 0.0
    %653 = vmatpush1.msra.mxu0 0.0
    %654 = vmatprep.subr.mxu0 0.0
    %655 = vmatpush1.msra.mxu0 0.0
    %656 = vmatprep.subr.mxu0 0.0
    %657 = vmatpush1.msra.mxu0 0.0
    %658 = vmatprep.subr.mxu0 0.0
    %659 = vmatpush1.msra.mxu0 0.0
    %660 = vmatprep.subr.mxu0 0.0
    %661 = vmatpush1.msra.mxu0 0.0
    %662 = vmatprep.subr.mxu0 0.0
    %663 = vmatpush1.msra.mxu0 0.0
    %664 = vmatprep.subr.mxu0 0.0
    %665 = vmatpush1.msra.mxu0 0.0
    %666 = vmatprep.subr.mxu0 0.0
    %667 = vmatpush1.msra.mxu0 0.0
    %668 = vmatprep.subr.mxu0 0.0
    %669 = vmatpush1.msra.mxu0 0.0
    %670 = vmatprep.subr.mxu0 0.0
    %671 = vmatpush1.msra.mxu0 0.0
    %672 = vmatprep.subr.mxu0 0.0
    %673 = vmatpush1.msra.mxu0 0.0
    %674 = vmatprep.subr.mxu0 0.0
    %675 = vmatpush1.msra.mxu0 0.0
    %676 = vmatprep.subr.mxu0 0.0
    %677 = vmatpush1.msra.mxu0 0.0
    %678 = vmatprep.subr.mxu0 0.0
    %679 = vmatpush1.msra.mxu0 0.0
    %680 = vmatprep.subr.mxu0 0.0
    %681 = vmatpush1.msra.mxu0 0.0
    %682 = vmatprep.subr.mxu0 0.0
    %683 = vmatpush1.msra.mxu0 0.0
    %684 = vmatprep.mubr.f32.mxu0 0.0
    %685 = vmatmul.mubr.f32.gmra.mrb[0].mxu0 %v618
    %v686 = vpop.f32.mrb[0].mxu0
    %v687 = vadd.f32 0.0, %v686
    %v688 = vpop.f32.mrb[0].mxu0
    %689 = vdwg.mxu0
    %691 = vrot.lane.b32.xlu0 %v687, 32
    %v692 = vpop.permute.xlu0 %691
    %v694 = vsel %vm75, %v525, %v692
    %v696 = vsel %vm77, %v694, 0
    %698 = vmatprep.subr.mxu0 0.0
    %699 = vmatpush1.msra.mxu0 %v42
    %700 = vmatprep.subr.mxu0 0.0
    %701 = vmatpush1.msra.mxu0 %v43
    %702 = vmatprep.subr.mxu0 0.0
    %703 = vmatpush1.msra.mxu0 %v44
    %704 = vmatprep.subr.mxu0 0.0
    %705 = vmatpush1.msra.mxu0 %v45
    %706 = vmatprep.subr.mxu0 0.0
    %707 = vmatpush1.msra.mxu0 %v46
    %708 = vmatprep.subr.mxu0 0.0
    %709 = vmatpush1.msra.mxu0 %v47
    %710 = vmatprep.subr.mxu0 0.0
    %711 = vmatpush1.msra.mxu0 %v48
    %712 = vmatprep.subr.mxu0 0.0
    %713 = vmatpush1.msra.mxu0 %v49
    %714 = vmatprep.subr.mxu0 0.0
    %715 = vmatpush1.msra.mxu0 0.0
    %716 = vmatprep.subr.mxu0 0.0
    %717 = vmatpush1.msra.mxu0 0.0
    %718 = vmatprep.subr.mxu0 0.0
    %719 = vmatpush1.msra.mxu0 0.0
    %720 = vmatprep.subr.mxu0 0.0
    %721 = vmatpush1.msra.mxu0 0.0
    %722 = vmatprep.subr.mxu0 0.0
    %723 = vmatpush1.msra.mxu0 0.0
    %724 = vmatprep.subr.mxu0 0.0
    %725 = vmatpush1.msra.mxu0 0.0
    %726 = vmatprep.subr.mxu0 0.0
    %727 = vmatpush1.msra.mxu0 0.0
    %728 = vmatprep.subr.mxu0 0.0
    %729 = vmatpush1.msra.mxu0 0.0
    %730 = vmatprep.subr.mxu0 0.0
    %731 = vmatpush1.msra.mxu0 0.0
    %732 = vmatprep.subr.mxu0 0.0
    %733 = vmatpush1.msra.mxu0 0.0
    %734 = vmatprep.subr.mxu0 0.0
    %735 = vmatpush1.msra.mxu0 0.0
    %736 = vmatprep.subr.mxu0 0.0
    %737 = vmatpush1.msra.mxu0 0.0
    %738 = vmatprep.subr.mxu0 0.0
    %739 = vmatpush1.msra.mxu0 0.0
    %740 = vmatprep.subr.mxu0 0.0
    %741 = vmatpush1.msra.mxu0 0.0
    %742 = vmatprep.subr.mxu0 0.0
    %743 = vmatpush1.msra.mxu0 0.0
    %744 = vmatprep.subr.mxu0 0.0
    %745 = vmatpush1.msra.mxu0 0.0
    %746 = vmatprep.subr.mxu0 0.0
    %747 = vmatpush1.msra.mxu0 0.0
    %748 = vmatprep.subr.mxu0 0.0
    %749 = vmatpush1.msra.mxu0 0.0
    %750 = vmatprep.subr.mxu0 0.0
    %751 = vmatpush1.msra.mxu0 0.0
    %752 = vmatprep.subr.mxu0 0.0
    %753 = vmatpush1.msra.mxu0 0.0
    %754 = vmatprep.subr.mxu0 0.0
    %755 = vmatpush1.msra.mxu0 0.0
    %756 = vmatprep.subr.mxu0 0.0
    %757 = vmatpush1.msra.mxu0 0.0
    %758 = vmatprep.subr.mxu0 0.0
    %759 = vmatpush1.msra.mxu0 0.0
    %760 = vmatprep.subr.mxu0 0.0
    %761 = vmatpush1.msra.mxu0 0.0
    %762 = vmatprep.mubr.f32.mxu0 0.0
    %763 = vmatmul.mubr.f32.gmra.mrb[0].mxu0 %v696
    %v764 = vpop.f32.mrb[0].mxu0
    %v765 = vadd.f32 %v59, %v764
    %v766 = vpop.f32.mrb[0].mxu0
    %767 = vdwg.mxu0
    %v768 = vmax.f32 %v765, 0.0
    %v770 = vsel %vm75, %v768, 0
    %772 = vmatprep.subr.mxu0 0.0
    %773 = vmatpush1.msra.mxu0 %v50
    %774 = vmatprep.subr.mxu0 0.0
    %775 = vmatpush1.msra.mxu0 %v51
    %776 = vmatprep.subr.mxu0 0.0
    %777 = vmatpush1.msra.mxu0 %v52
    %778 = vmatprep.subr.mxu0 0.0
    %779 = vmatpush1.msra.mxu0 %v53
    %780 = vmatprep.subr.mxu0 0.0
    %781 = vmatpush1.msra.mxu0 0.0
    %782 = vmatprep.subr.mxu0 0.0
    %783 = vmatpush1.msra.mxu0 0.0
    %784 = vmatprep.subr.mxu0 0.0
    %785 = vmatpush1.msra.mxu0 0.0
    %786 = vmatprep.subr.mxu0 0.0
    %787 = vmatpush1.msra.mxu0 0.0
    %788 = vmatprep.subr.mxu0 0.0
    %789 = vmatpush1.msra.mxu0 0.0
    %790 = vmatprep.subr.mxu0 0.0
    %791 = vmatpush1.msra.mxu0 0.0
    %792 = vmatprep.subr.mxu0 0.0
    %793 = vmatpush1.msra.mxu0 0.0
    %794 = vmatprep.subr.mxu0 0.0
    %795 = vmatpush1.msra.mxu0 0.0
    %796 = vmatprep.subr.mxu0 0.0
    %797 = vmatpush1.msra.mxu0 0.0
    %798 = vmatprep.subr.mxu0 0.0
    %799 = vmatpush1.msra.mxu0 0.0
    %800 = vmatprep.subr.mxu0 0.0
    %801 = vmatpush1.msra.mxu0 0.0
    %802 = vmatprep.subr.mxu0 0.0
    %803 = vmatpush1.msra.mxu0 0.0
    %804 = vmatprep.subr.mxu0 0.0
    %805 = vmatpush1.msra.mxu0 0.0
    %806 = vmatprep.subr.mxu0 0.0
    %807 = vmatpush1.msra.mxu0 0.0
    %808 = vmatprep.subr.mxu0 0.0
    %809 = vmatpush1.msra.mxu0 0.0
    %810 = vmatprep.subr.mxu0 0.0
    %811 = vmatpush1.msra.mxu0 0.0
    %812 = vmatprep.subr.mxu0 0.0
    %813 = vmatpush1.msra.mxu0 0.0
    %814 = vmatprep.subr.mxu0 0.0
    %815 = vmatpush1.msra.mxu0 0.0
    %816 = vmatprep.subr.mxu0 0.0
    %817 = vmatpush1.msra.mxu0 0.0
    %818 = vmatprep.subr.mxu0 0.0
    %819 = vmatpush1.msra.mxu0 0.0
    %820 = vmatprep.subr.mxu0 0.0
    %821 = vmatpush1.msra.mxu0 0.0
    %822 = vmatprep.subr.mxu0 0.0
    %823 = vmatpush1.msra.mxu0 0.0
    %824 = vmatprep.subr.mxu0 0.0
    %825 = vmatpush1.msra.mxu0 0.0
    %826 = vmatprep.subr.mxu0 0.0
    %827 = vmatpush1.msra.mxu0 0.0
    %828 = vmatprep.subr.mxu0 0.0
    %829 = vmatpush1.msra.mxu0 0.0
    %830 = vmatprep.subr.mxu0 0.0
    %831 = vmatpush1.msra.mxu0 0.0
    %832 = vmatprep.subr.mxu0 0.0
    %833 = vmatpush1.msra.mxu0 0.0
    %834 = vmatprep.subr.mxu0 0.0
    %835 = vmatpush1.msra.mxu0 0.0
    %836 = vmatprep.mubr.f32.mxu0 0.0
    %837 = vmatmul.mubr.f32.gmra.mrb[0].mxu0 %v770
    %v838 = vpop.f32.mrb[0].mxu0
    %v839 = vadd.f32 %v60, %v838
    %v840 = vpop.f32.mrb[0].mxu0
    %841 = vdwg.mxu0
    %v842 = vadd.f32 %v839, %v597
    %v843 = vxor.u32 %v842, 2147483648
    %v844 = vmul.f32 %v843, 1.442695
    %v845 = vpow.pop %v844
    %v846 = vadd.f32 %v845, 1.0
    %v847 = vrcp.pop %v846
    %v848 = vmul.f32 1.0, %v847
    %850 = vrot.lane.b32.xlu0 %v597, 64
    %v851 = vpop.permute.xlu0 %850
    %v853 = vmul.f32 %v848, %v851
    %855 = vrot.lane.b32.xlu0 %v853, 64
    %v856 = vpop.permute.xlu0 %855
    %v858 = vadd.f32 %v839, %v856
    %v859 = vtanh.pop %v858
    %v860 = vsub.f32 1.0, %v848
    %862 = vrot.lane.b32.xlu0 %v859, 96
    %v863 = vpop.permute.xlu0 %862
    %v865 = vmul.f32 %v860, %v863
    %v866 = vmul.f32 %v848, %v425
    %v867 = vadd.f32 %v865, %v866
    %869 = vrot.lane.b32.xlu0 %v867, 96
    %v870 = vpop.permute.xlu0 %869
    %v871 = vsel %vm75, %v870, 0
    %873 = vmatprep.subr.mxu0 0.0
    %874 = vmatpush1.msra.mxu0 %v54
    %875 = vmatprep.subr.mxu0 0.0
    %876 = vmatpush1.msra.mxu0 %v55
    %877 = vmatprep.subr.mxu0 0.0
    %878 = vmatpush1.msra.mxu0 %v56
    %879 = vmatprep.subr.mxu0 0.0
    %880 = vmatpush1.msra.mxu0 %v57
    %881 = vmatprep.subr.mxu0 0.0
    %882 = vmatpush1.msra.mxu0 0.0
    %883 = vmatprep.subr.mxu0 0.0
    %884 = vmatpush1.msra.mxu0 0.0
    %885 = vmatprep.subr.mxu0 0.0
    %886 = vmatpush1.msra.mxu0 0.0
    %887 = vmatprep.subr.mxu0 0.0
    %888 = vmatpush1.msra.mxu0 0.0
    %889 = vmatprep.subr.mxu0 0.0
    %890 = vmatpush1.msra.mxu0 0.0
    %891 = vmatprep.subr.mxu0 0.0
    %892 = vmatpush1.msra.mxu0 0.0
    %893 = vmatprep.subr.mxu0 0.0
    %894 = vmatpush1.msra.mxu0 0.0
    %895 = vmatprep.subr.mxu0 0.0
    %896 = vmatpush1.msra.mxu0 0.0
    %897 = vmatprep.subr.mxu0 0.0
    %898 = vmatpush1.msra.mxu0 0.0
    %899 = vmatprep.subr.mxu0 0.0
    %900 = vmatpush1.msra.mxu0 0.0
    %901 = vmatprep.subr.mxu0 0.0
    %902 = vmatpush1.msra.mxu0 0.0
    %903 = vmatprep.subr.mxu0 0.0
    %904 = vmatpush1.msra.mxu0 0.0
    %905 = vmatprep.subr.mxu0 0.0
    %906 = vmatpush1.msra.mxu0 0.0
    %907 = vmatprep.subr.mxu0 0.0
    %908 = vmatpush1.msra.mxu0 0.0
    %909 = vmatprep.subr.mxu0 0.0
    %910 = vmatpush1.msra.mxu0 0.0
    %911 = vmatprep.subr.mxu0 0.0
    %912 = vmatpush1.msra.mxu0 0.0
    %913 = vmatprep.subr.mxu0 0.0
    %914 = vmatpush1.msra.mxu0 0.0
    %915 = vmatprep.subr.mxu0 0.0
    %916 = vmatpush1.msra.mxu0 0.0
    %917 = vmatprep.subr.mxu0 0.0
    %918 = vmatpush1.msra.mxu0 0.0
    %919 = vmatprep.subr.mxu0 0.0
    %920 = vmatpush1.msra.mxu0 0.0
    %921 = vmatprep.subr.mxu0 0.0
    %922 = vmatpush1.msra.mxu0 0.0
    %923 = vmatprep.subr.mxu0 0.0
    %924 = vmatpush1.msra.mxu0 0.0
    %925 = vmatprep.subr.mxu0 0.0
    %926 = vmatpush1.msra.mxu0 0.0
    %927 = vmatprep.subr.mxu0 0.0
    %928 = vmatpush1.msra.mxu0 0.0
    %929 = vmatprep.subr.mxu0 0.0
    %930 = vmatpush1.msra.mxu0 0.0
    %931 = vmatprep.subr.mxu0 0.0
    %932 = vmatpush1.msra.mxu0 0.0
    %933 = vmatprep.subr.mxu0 0.0
    %934 = vmatpush1.msra.mxu0 0.0
    %935 = vmatprep.subr.mxu0 0.0
    %936 = vmatpush1.msra.mxu0 0.0
    %937 = vmatprep.mubr.f32.mxu0 0.0
    %938 = vmatmul.mubr.f32.gmra.mrb[0].mxu0 %v871
    %v939 = vpop.f32.mrb[0].mxu0
    %v940 = vadd.f32 %v61, %v939
    %v941 = vpop.f32.mrb[0].mxu0
    %942 = vdwg.mxu0
    %v943 = vsel %vm501, %v940, -inf
    %944 = vmax.xlane.f32.xlu0 %v943
    %v945 = vpop.xlane.xlu0 %944
    %v946 = vsub.f32 %v940, %v945
    %v947 = vmul.f32 %v946, 1.442695
    %v948 = vpow.pop %v947
    %v949 = vsel %vm501, %v948, 0.0
    %950 = vadd.xlane.f32.xlu0 %v949
    %v951 = vpop.xlane.xlu0 %950
    %v952 = vlog2.pop %v951
    %v953 = vmul.f32 %v952, 0.6931472
    %v954 = vsub.f32 %v946, %v953
    %955 = vst.msk [vmem:[%s5 + $0x1] sm:$0x1] %vm501, %v954
    %956 = vrot.lane.b32.xlu0 %v867, 16
    %v957 = vpop.permute.xlu0 %956
    %959 = vst.msk [vmem:[%s5 + $0x1] sm:$0x1] %vm518, %v957
    %960 = vrot.lane.b32.xlu0 %v614, 112
    %v961 = vpop.permute.xlu0 %960
    %963 = vst.msk [vmem:[%s5 + $0x1] sm:$0x1] %vm523, %v961
    %v964 = vld [vmem:[%s0 + $0x2] sm:$0x1]
    %v965 = vsel %vm75, %v964, %v867
    %v967 = vsel %vm77, %v965, 0
    %969 = vmatprep.subr.mxu0 0.0
    %970 = vmatpush1.msra.mxu0 %v34
    %971 = vmatprep.subr.mxu0 0.0
    %972 = vmatpush1.msra.mxu0 %v35
    %973 = vmatprep.subr.mxu0 0.0
    %974 = vmatpush1.msra.mxu0 %v36
    %975 = vmatprep.subr.mxu0 0.0
    %976 = vmatpush1.msra.mxu0 %v37
    %977 = vmatprep.subr.mxu0 0.0
    %978 = vmatpush1.msra.mxu0 %v38
    %979 = vmatprep.subr.mxu0 0.0
    %980 = vmatpush1.msra.mxu0 %v39
    %981 = vmatprep.subr.mxu0 0.0
    %982 = vmatpush1.msra.mxu0 %v40
    %983 = vmatprep.subr.mxu0 0.0
    %984 = vmatpush1.msra.mxu0 %v41
    %985 = vmatprep.subr.mxu0 0.0
    %986 = vmatpush1.msra.mxu0 0.0
    %987 = vmatprep.subr.mxu0 0.0
    %988 = vmatpush1.msra.mxu0 0.0
    %989 = vmatprep.subr.mxu0 0.0
    %990 = vmatpush1.msra.mxu0 0.0
    %991 = vmatprep.subr.mxu0 0.0
    %992 = vmatpush1.msra.mxu0 0.0
    %993 = vmatprep.subr.mxu0 0.0
    %994 = vmatpush1.msra.mxu0 0.0
    %995 = vmatprep.subr.mxu0 0.0
    %996 = vmatpush1.msra.mxu0 0.0
    %997 = vmatprep.subr.mxu0 0.0
    %998 = vmatpush1.msra.mxu0 0.0
    %999 = vmatprep.subr.mxu0 0.0
    %1000 = vmatpush1.msra.mxu0 0.0
    %1001 = vmatprep.subr.mxu0 0.0
    %1002 = vmatpush1.msra.mxu0 0.0
    %1003 = vmatprep.subr.mxu0 0.0
    %1004 = vmatpush1.msra.mxu0 0.0
    %1005 = vmatprep.subr.mxu0 0.0
    %1006 = vmatpush1.msra.mxu0 0.0
    %1007 = vmatprep.subr.mxu0 0.0
    %1008 = vmatpush1.msra.mxu0 0.0
    %1009 = vmatprep.subr.mxu0 0.0
    %1010 = vmatpush1.msra.mxu0 0.0
    %1011 = vmatprep.subr.mxu0 0.0
    %1012 = vmatpush1.msra.mxu0 0.0
    %1013 = vmatprep.subr.mxu0 0.0
    %1014 = vmatpush1.msra.mxu0 0.0
    %1015 = vmatprep.subr.mxu0 0.0
    %1016 = vmatpush1.msra.mxu0 0.0
    %1017 = vmatprep.subr.mxu0 0.0
    %1018 = vmatpush1.msra.mxu0 0.0
    %1019 = vmatprep.subr.mxu0 0.0
    %1020 = vmatpush1.msra.mxu0 0.0
    %1021 = vmatprep.subr.mxu0 0.0
    %1022 = vmatpush1.msra.mxu0 0.0
    %1023 = vmatprep.subr.mxu0 0.0
    %1024 = vmatpush1.msra.mxu0 0.0
    %1025 = vmatprep.subr.mxu0 0.0
    %1026 = vmatpush1.msra.mxu0 0.0
    %1027 = vmatprep.subr.mxu0 0.0
    %1028 = vmatpush1.msra.mxu0 0.0
    %1029 = vmatprep.subr.mxu0 0.0
    %1030 = vmatpush1.msra.mxu0 0.0
    %1031 = vmatprep.subr.mxu0 0.0
    %1032 = vmatpush1.msra.mxu0 0.0
    %1033 = vmatprep.mubr.f32.mxu0 0.0
    %1034 = vmatmul.mubr.f32.gmra.mrb[0].mxu0 %v967
    %v1035 = vpop.f32.mrb[0].mxu0
    %v1036 = vadd.f32 %v58, %v1035
    %v1037 = vpop.f32.mrb[0].mxu0
    %1038 = vdwg.mxu0
    %v1039 = vsel %vm151, %v1036, -inf
    %1040 = vmax.xlane.f32.xlu0 %v1039
    %v1041 = vpop.xlane.xlu0 %1040
    %v1042 = vsub.f32 %v1036, %v1041
    %v1043 = vmul.f32 %v1042, 1.442695
    %v1044 = vpow.pop %v1043
    %1046 = vrot.lane.b32.xlu0 %v1044, 32
    %v1047 = vpop.permute.xlu0 %1046
    %v1049 = vsel %vm162, %v1047, 0.0
    %1050 = vadd.xlane.f32.xlu0 %v1049
    %v1051 = vpop.xlane.xlu0 %1050
    %v1052 = vrcp.pop %v1051
    %v1053 = vmul.f32 %v1044, %v1052
    %1055 = vrot.lane.b32.xlu0 %v1053, 32
    %v1056 = vpop.permute.xlu0 %1055
    %v1057 = vsel %vm171, %v1056, 0
    %1059 = vmatprep.subr.mxu0 0.0
    %1060 = vmatpush1.msra.mxu0 %v62
    %1061 = vmatprep.subr.mxu0 0.0
    %1062 = vmatpush1.msra.mxu0 %v176
    %1063 = vmatprep.subr.mxu0 0.0
    %1064 = vmatpush1.msra.mxu0 0.0
    %1065 = vmatprep.subr.mxu0 0.0
    %1066 = vmatpush1.msra.mxu0 0.0
    %1067 = vmatprep.subr.mxu0 0.0
    %1068 = vmatpush1.msra.mxu0 0.0
    %1069 = vmatprep.subr.mxu0 0.0
    %1070 = vmatpush1.msra.mxu0 0.0
    %1071 = vmatprep.subr.mxu0 0.0
    %1072 = vmatpush1.msra.mxu0 0.0
    %1073 = vmatprep.subr.mxu0 0.0
    %1074 = vmatpush1.msra.mxu0 0.0
    %1075 = vmatprep.subr.mxu0 0.0
    %1076 = vmatpush1.msra.mxu0 0.0
    %1077 = vmatprep.subr.mxu0 0.0
    %1078 = vmatpush1.msra.mxu0 0.0
    %1079 = vmatprep.subr.mxu0 0.0
    %1080 = vmatpush1.msra.mxu0 0.0
    %1081 = vmatprep.subr.mxu0 0.0
    %1082 = vmatpush1.msra.mxu0 0.0
    %1083 = vmatprep.subr.mxu0 0.0
    %1084 = vmatpush1.msra.mxu0 0.0
    %1085 = vmatprep.subr.mxu0 0.0
    %1086 = vmatpush1.msra.mxu0 0.0
    %1087 = vmatprep.subr.mxu0 0.0
    %1088 = vmatpush1.msra.mxu0 0.0
    %1089 = vmatprep.subr.mxu0 0.0
    %1090 = vmatpush1.msra.mxu0 0.0
    %1091 = vmatprep.subr.mxu0 0.0
    %1092 = vmatpush1.msra.mxu0 0.0
    %1093 = vmatprep.subr.mxu0 0.0
    %1094 = vmatpush1.msra.mxu0 0.0
    %1095 = vmatprep.subr.mxu0 0.0
    %1096 = vmatpush1.msra.mxu0 0.0
    %1097 = vmatprep.subr.mxu0 0.0
    %1098 = vmatpush1.msra.mxu0 0.0
    %1099 = vmatprep.subr.mxu0 0.0
    %1100 = vmatpush1.msra.mxu0 0.0
    %1101 = vmatprep.subr.mxu0 0.0
    %1102 = vmatpush1.msra.mxu0 0.0
    %1103 = vmatprep.subr.mxu0 0.0
    %1104 = vmatpush1.msra.mxu0 0.0
    %1105 = vmatprep.subr.mxu0 0.0
    %1106 = vmatpush1.msra.mxu0 0.0
    %1107 = vmatprep.subr.mxu0 0.0
    %1108 = vmatpush1.msra.mxu0 0.0
    %1109 = vmatprep.subr.mxu0 0.0
    %1110 = vmatpush1.msra.mxu0 0.0
    %1111 = vmatprep.subr.mxu0 0.0
    %1112 = vmatpush1.msra.mxu0 0.0
    %1113 = vmatprep.subr.mxu0 0.0
    %1114 = vmatpush1.msra.mxu0 0.0
    %1115 = vmatprep.subr.mxu0 0.0
    %1116 = vmatpush1.msra.mxu0 0.0
    %1117 = vmatprep.subr.mxu0 0.0
    %1118 = vmatpush1.msra.mxu0 0.0
    %1119 = vmatprep.subr.mxu0 0.0
    %1120 = vmatpush1.msra.mxu0 0.0
    %1121 = vmatprep.subr.mxu0 0.0
    %1122 = vmatpush1.msra.mxu0 0.0
    %1123 = vmatprep.mubr.f32.mxu0 0.0
    %1124 = vmatmul.mubr.f32.gmra.mrb[0].mxu0 %v1057
    %v1125 = vpop.f32.mrb[0].mxu0
    %v1126 = vadd.f32 0.0, %v1125
    %v1127 = vpop.f32.mrb[0].mxu0
    %1128 = vdwg.mxu0
    %1130 = vrot.lane.b32.xlu0 %v1126, 32
    %v1131 = vpop.permute.xlu0 %1130
    %v1133 = vsel %vm75, %v964, %v1131
    %v1135 = vsel %vm77, %v1133, 0
    %1137 = vmatprep.subr.mxu0 0.0
    %1138 = vmatpush1.msra.mxu0 %v42
    %1139 = vmatprep.subr.mxu0 0.0
    %1140 = vmatpush1.msra.mxu0 %v43
    %1141 = vmatprep.subr.mxu0 0.0
    %1142 = vmatpush1.msra.mxu0 %v44
    %1143 = vmatprep.subr.mxu0 0.0
    %1144 = vmatpush1.msra.mxu0 %v45
    %1145 = vmatprep.subr.mxu0 0.0
    %1146 = vmatpush1.msra.mxu0 %v46
    %1147 = vmatprep.subr.mxu0 0.0
    %1148 = vmatpush1.msra.mxu0 %v47
    %1149 = vmatprep.subr.mxu0 0.0
    %1150 = vmatpush1.msra.mxu0 %v48
    %1151 = vmatprep.subr.mxu0 0.0
    %1152 = vmatpush1.msra.mxu0 %v49
    %1153 = vmatprep.subr.mxu0 0.0
    %1154 = vmatpush1.msra.mxu0 0.0
    %1155 = vmatprep.subr.mxu0 0.0
    %1156 = vmatpush1.msra.mxu0 0.0
    %1157 = vmatprep.subr.mxu0 0.0
    %1158 = vmatpush1.msra.mxu0 0.0
    %1159 = vmatprep.subr.mxu0 0.0
    %1160 = vmatpush1.msra.mxu0 0.0
    %1161 = vmatprep.subr.mxu0 0.0
    %1162 = vmatpush1.msra.mxu0 0.0
    %1163 = vmatprep.subr.mxu0 0.0
    %1164 = vmatpush1.msra.mxu0 0.0
    %1165 = vmatprep.subr.mxu0 0.0
    %1166 = vmatpush1.msra.mxu0 0.0
    %1167 = vmatprep.subr.mxu0 0.0
    %1168 = vmatpush1.msra.mxu0 0.0
    %1169 = vmatprep.subr.mxu0 0.0
    %1170 = vmatpush1.msra.mxu0 0.0
    %1171 = vmatprep.subr.mxu0 0.0
    %1172 = vmatpush1.msra.mxu0 0.0
    %1173 = vmatprep.subr.mxu0 0.0
    %1174 = vmatpush1.msra.mxu0 0.0
    %1175 = vmatprep.subr.mxu0 0.0
    %1176 = vmatpush1.msra.mxu0 0.0
    %1177 = vmatprep.subr.mxu0 0.0
    %1178 = vmatpush1.msra.mxu0 0.0
    %1179 = vmatprep.subr.mxu0 0.0
    %1180 = vmatpush1.msra.mxu0 0.0
    %1181 = vmatprep.subr.mxu0 0.0
    %1182 = vmatpush1.msra.mxu0 0.0
    %1183 = vmatprep.subr.mxu0 0.0
    %1184 = vmatpush1.msra.mxu0 0.0
    %1185 = vmatprep.subr.mxu0 0.0
    %1186 = vmatpush1.msra.mxu0 0.0
    %1187 = vmatprep.subr.mxu0 0.0
    %1188 = vmatpush1.msra.mxu0 0.0
    %1189 = vmatprep.subr.mxu0 0.0
    %1190 = vmatpush1.msra.mxu0 0.0
    %1191 = vmatprep.subr.mxu0 0.0
    %1192 = vmatpush1.msra.mxu0 0.0
    %1193 = vmatprep.subr.mxu0 0.0
    %1194 = vmatpush1.msra.mxu0 0.0
    %1195 = vmatprep.subr.mxu0 0.0
    %1196 = vmatpush1.msra.mxu0 0.0
    %1197 = vmatprep.subr.mxu0 0.0
    %1198 = vmatpush1.msra.mxu0 0.0
    %1199 = vmatprep.subr.mxu0 0.0
    %1200 = vmatpush1.msra.mxu0 0.0
    %1201 = vmatprep.mubr.f32.mxu0 0.0
    %1202 = vmatmul.mubr.f32.gmra.mrb[0].mxu0 %v1135
    %v1203 = vpop.f32.mrb[0].mxu0
    %v1204 = vadd.f32 %v59, %v1203
    %v1205 = vpop.f32.mrb[0].mxu0
    %1206 = vdwg.mxu0
    %v1207 = vmax.f32 %v1204, 0.0
    %v1209 = vsel %vm75, %v1207, 0
    %1211 = vmatprep.subr.mxu0 0.0
    %1212 = vmatpush1.msra.mxu0 %v50
    %1213 = vmatprep.subr.mxu0 0.0
    %1214 = vmatpush1.msra.mxu0 %v51
    %1215 = vmatprep.subr.mxu0 0.0
    %1216 = vmatpush1.msra.mxu0 %v52
    %1217 = vmatprep.subr.mxu0 0.0
    %1218 = vmatpush1.msra.mxu0 %v53
    %1219 = vmatprep.subr.mxu0 0.0
    %1220 = vmatpush1.msra.mxu0 0.0
    %1221 = vmatprep.subr.mxu0 0.0
    %1222 = vmatpush1.msra.mxu0 0.0
    %1223 = vmatprep.subr.mxu0 0.0
    %1224 = vmatpush1.msra.mxu0 0.0
    %1225 = vmatprep.subr.mxu0 0.0
    %1226 = vmatpush1.msra.mxu0 0.0
    %1227 = vmatprep.subr.mxu0 0.0
    %1228 = vmatpush1.msra.mxu0 0.0
    %1229 = vmatprep.subr.mxu0 0.0
    %1230 = vmatpush1.msra.mxu0 0.0
    %1231 = vmatprep.subr.mxu0 0.0
    %1232 = vmatpush1.msra.mxu0 0.0
    %1233 = vmatprep.subr.mxu0 0.0
    %1234 = vmatpush1.msra.mxu0 0.0
    %1235 = vmatprep.subr.mxu0 0.0
    %1236 = vmatpush1.msra.mxu0 0.0
    %1237 = vmatprep.subr.mxu0 0.0
    %1238 = vmatpush1.msra.mxu0 0.0
    %1239 = vmatprep.subr.mxu0 0.0
    %1240 = vmatpush1.msra.mxu0 0.0
    %1241 = vmatprep.subr.mxu0 0.0
    %1242 = vmatpush1.msra.mxu0 0.0
    %1243 = vmatprep.subr.mxu0 0.0
    %1244 = vmatpush1.msra.mxu0 0.0
    %1245 = vmatprep.subr.mxu0 0.0
    %1246 = vmatpush1.msra.mxu0 0.0
    %1247 = vmatprep.subr.mxu0 0.0
    %1248 = vmatpush1.msra.mxu0 0.0
    %1249 = vmatprep.subr.mxu0 0.0
    %1250 = vmatpush1.msra.mxu0 0.0
    %1251 = vmatprep.subr.mxu0 0.0
    %1252 = vmatpush1.msra.mxu0 0.0
    %1253 = vmatprep.subr.mxu0 0.0
    %1254 = vmatpush1.msra.mxu0 0.0
    %1255 = vmatprep.subr.mxu0 0.0
    %1256 = vmatpush1.msra.mxu0 0.0
    %1257 = vmatprep.subr.mxu0 0.0
    %1258 = vmatpush1.msra.mxu0 0.0
    %1259 = vmatprep.subr.mxu0 0.0
    %1260 = vmatpush1.msra.mxu0 0.0
    %1261 = vmatprep.subr.mxu0 0.0
    %1262 = vmatpush1.msra.mxu0 0.0
    %1263 = vmatprep.subr.mxu0 0.0
    %1264 = vmatpush1.msra.mxu0 0.0
    %1265 = vmatprep.subr.mxu0 0.0
    %1266 = vmatpush1.msra.mxu0 0.0
    %1267 = vmatprep.subr.mxu0 0.0
    %1268 = vmatpush1.msra.mxu0 0.0
    %1269 = vmatprep.subr.mxu0 0.0
    %1270 = vmatpush1.msra.mxu0 0.0
    %1271 = vmatprep.subr.mxu0 0.0
    %1272 = vmatpush1.msra.mxu0 0.0
    %1273 = vmatprep.subr.mxu0 0.0
    %1274 = vmatpush1.msra.mxu0 0.0
    %1275 = vmatprep.mubr.f32.mxu0 0.0
    %1276 = vmatmul.mubr.f32.gmra.mrb[0].mxu0 %v1209
    %v1277 = vpop.f32.mrb[0].mxu0
    %v1278 = vadd.f32 %v60, %v1277
    %v1279 = vpop.f32.mrb[0].mxu0
    %1280 = vdwg.mxu0
    %v1281 = vadd.f32 %v1278, %v1036
    %v1282 = vxor.u32 %v1281, 2147483648
    %v1283 = vmul.f32 %v1282, 1.442695
    %v1284 = vpow.pop %v1283
    %v1285 = vadd.f32 %v1284, 1.0
    %v1286 = vrcp.pop %v1285
    %v1287 = vmul.f32 1.0, %v1286
    %1289 = vrot.lane.b32.xlu0 %v1036, 64
    %v1290 = vpop.permute.xlu0 %1289
    %v1292 = vmul.f32 %v1287, %v1290
    %1294 = vrot.lane.b32.xlu0 %v1292, 64
    %v1295 = vpop.permute.xlu0 %1294
    %v1297 = vadd.f32 %v1278, %v1295
    %v1298 = vtanh.pop %v1297
    %v1299 = vsub.f32 1.0, %v1287
    %1301 = vrot.lane.b32.xlu0 %v1298, 96
    %v1302 = vpop.permute.xlu0 %1301
    %v1304 = vmul.f32 %v1299, %v1302
    %v1305 = vmul.f32 %v1287, %v867
    %v1306 = vadd.f32 %v1304, %v1305
    %1308 = vrot.lane.b32.xlu0 %v1306, 96
    %v1309 = vpop.permute.xlu0 %1308
    %v1310 = vsel %vm75, %v1309, 0
    %1312 = vmatprep.subr.mxu0 0.0
    %1313 = vmatpush1.msra.mxu0 %v54
    %1314 = vmatprep.subr.mxu0 0.0
    %1315 = vmatpush1.msra.mxu0 %v55
    %1316 = vmatprep.subr.mxu0 0.0
    %1317 = vmatpush1.msra.mxu0 %v56
    %1318 = vmatprep.subr.mxu0 0.0
    %1319 = vmatpush1.msra.mxu0 %v57
    %1320 = vmatprep.subr.mxu0 0.0
    %1321 = vmatpush1.msra.mxu0 0.0
    %1322 = vmatprep.subr.mxu0 0.0
    %1323 = vmatpush1.msra.mxu0 0.0
    %1324 = vmatprep.subr.mxu0 0.0
    %1325 = vmatpush1.msra.mxu0 0.0
    %1326 = vmatprep.subr.mxu0 0.0
    %1327 = vmatpush1.msra.mxu0 0.0
    %1328 = vmatprep.subr.mxu0 0.0
    %1329 = vmatpush1.msra.mxu0 0.0
    %1330 = vmatprep.subr.mxu0 0.0
    %1331 = vmatpush1.msra.mxu0 0.0
    %1332 = vmatprep.subr.mxu0 0.0
    %1333 = vmatpush1.msra.mxu0 0.0
    %1334 = vmatprep.subr.mxu0 0.0
    %1335 = vmatpush1.msra.mxu0 0.0
    %1336 = vmatprep.subr.mxu0 0.0
    %1337 = vmatpush1.msra.mxu0 0.0
    %1338 = vmatprep.subr.mxu0 0.0
    %1339 = vmatpush1.msra.mxu0 0.0
    %1340 = vmatprep.subr.mxu0 0.0
    %1341 = vmatpush1.msra.mxu0 0.0
    %1342 = vmatprep.subr.mxu0 0.0
    %1343 = vmatpush1.msra.mxu0 0.0
    %1344 = vmatprep.subr.mxu0 0.0
    %1345 = vmatpush1.msra.mxu0 0.0
    %1346 = vmatprep.subr.mxu0 0.0
    %1347 = vmatpush1.msra.mxu0 0.0
    %1348 = vmatprep.subr.mxu0 0.0
    %1349 = vmatpush1.msra.mxu0 0.0
    %1350 = vmatprep.subr.mxu0 0.0
    %1351 = vmatpush1.msra.mxu0 0.0
    %1352 = vmatprep.subr.mxu0 0.0
    %1353 = vmatpush1.msra.mxu0 0.0
    %1354 = vmatprep.subr.mxu0 0.0
    %1355 = vmatpush1.msra.mxu0 0.0
    %1356 = vmatprep.subr.mxu0 0.0
    %1357 = vmatpush1.msra.mxu0 0.0
    %1358 = vmatprep.subr.mxu0 0.0
    %1359 = vmatpush1.msra.mxu0 0.0
    %1360 = vmatprep.subr.mxu0 0.0
    %1361 = vmatpush1.msra.mxu0 0.0
    %1362 = vmatprep.subr.mxu0 0.0
    %1363 = vmatpush1.msra.mxu0 0.0
    %1364 = vmatprep.subr.mxu0 0.0
    %1365 = vmatpush1.msra.mxu0 0.0
    %1366 = vmatprep.subr.mxu0 0.0
    %1367 = vmatpush1.msra.mxu0 0.0
    %1368 = vmatprep.subr.mxu0 0.0
    %1369 = vmatpush1.msra.mxu0 0.0
    %1370 = vmatprep.subr.mxu0 0.0
    %1371 = vmatpush1.msra.mxu0 0.0
    %1372 = vmatprep.subr.mxu0 0.0
    %1373 = vmatpush1.msra.mxu0 0.0
    %1374 = vmatprep.subr.mxu0 0.0
    %1375 = vmatpush1.msra.mxu0 0.0
    %1376 = vmatprep.mubr.f32.mxu0 0.0
    %1377 = vmatmul.mubr.f32.gmra.mrb[0].mxu0 %v1310
    %v1378 = vpop.f32.mrb[0].mxu0
    %v1379 = vadd.f32 %v61, %v1378
    %v1380 = vpop.f32.mrb[0].mxu0
    %1381 = vdwg.mxu0
    %v1382 = vsel %vm501, %v1379, -inf
    %1383 = vmax.xlane.f32.xlu0 %v1382
    %v1384 = vpop.xlane.xlu0 %1383
    %v1385 = vsub.f32 %v1379, %v1384
    %v1386 = vmul.f32 %v1385, 1.442695
    %v1387 = vpow.pop %v1386
    %v1388 = vsel %vm501, %v1387, 0.0
    %1389 = vadd.xlane.f32.xlu0 %v1388
    %v1390 = vpop.xlane.xlu0 %1389
    %v1391 = vlog2.pop %v1390
    %v1392 = vmul.f32 %v1391, 0.6931472
    %v1393 = vsub.f32 %v1385, %v1392
    %1394 = vst.msk [vmem:[%s5 + $0x2] sm:$0x1] %vm501, %v1393
    %1395 = vrot.lane.b32.xlu0 %v1306, 16
    %v1396 = vpop.permute.xlu0 %1395
    %1398 = vst.msk [vmem:[%s5 + $0x2] sm:$0x1] %vm518, %v1396
    %1399 = vrot.lane.b32.xlu0 %v1053, 112
    %v1400 = vpop.permute.xlu0 %1399
    %1402 = vst.msk [vmem:[%s5 + $0x2] sm:$0x1] %vm523, %v1400
    %v1403 = vld [vmem:[%s0 + $0x3] sm:$0x1]
    %v1404 = vsel %vm75, %v1403, %v1306
    %v1406 = vsel %vm77, %v1404, 0
    %1408 = vmatprep.subr.mxu0 0.0
    %1409 = vmatpush1.msra.mxu0 %v34
    %1410 = vmatprep.subr.mxu0 0.0
    %1411 = vmatpush1.msra.mxu0 %v35
    %1412 = vmatprep.subr.mxu0 0.0
    %1413 = vmatpush1.msra.mxu0 %v36
    %1414 = vmatprep.subr.mxu0 0.0
    %1415 = vmatpush1.msra.mxu0 %v37
    %1416 = vmatprep.subr.mxu0 0.0
    %1417 = vmatpush1.msra.mxu0 %v38
    %1418 = vmatprep.subr.mxu0 0.0
    %1419 = vmatpush1.msra.mxu0 %v39
    %1420 = vmatprep.subr.mxu0 0.0
    %1421 = vmatpush1.msra.mxu0 %v40
    %1422 = vmatprep.subr.mxu0 0.0
    %1423 = vmatpush1.msra.mxu0 %v41
    %1424 = vmatprep.subr.mxu0 0.0
    %1425 = vmatpush1.msra.mxu0 0.0
    %1426 = vmatprep.subr.mxu0 0.0
    %1427 = vmatpush1.msra.mxu0 0.0
    %1428 = vmatprep.subr.mxu0 0.0
    %1429 = vmatpush1.msra.mxu0 0.0
    %1430 = vmatprep.subr.mxu0 0.0
    %1431 = vmatpush1.msra.mxu0 0.0
    %1432 = vmatprep.subr.mxu0 0.0
    %1433 = vmatpush1.msra.mxu0 0.0
    %1434 = vmatprep.subr.mxu0 0.0
    %1435 = vmatpush1.msra.mxu0 0.0
    %1436 = vmatprep.subr.mxu0 0.0
    %1437 = vmatpush1.msra.mxu0 0.0
    %1438 = vmatprep.subr.mxu0 0.0
    %1439 = vmatpush1.msra.mxu0 0.0
    %1440 = vmatprep.subr.mxu0 0.0
    %1441 = vmatpush1.msra.mxu0 0.0
    %1442 = vmatprep.subr.mxu0 0.0
    %1443 = vmatpush1.msra.mxu0 0.0
    %1444 = vmatprep.subr.mxu0 0.0
    %1445 = vmatpush1.msra.mxu0 0.0
    %1446 = vmatprep.subr.mxu0 0.0
    %1447 = vmatpush1.msra.mxu0 0.0
    %1448 = vmatprep.subr.mxu0 0.0
    %1449 = vmatpush1.msra.mxu0 0.0
    %1450 = vmatprep.subr.mxu0 0.0
    %1451 = vmatpush1.msra.mxu0 0.0
    %1452 = vmatprep.subr.mxu0 0.0
    %1453 = vmatpush1.msra.mxu0 0.0
    %1454 = vmatprep.subr.mxu0 0.0
    %1455 = vmatpush1.msra.mxu0 0.0
    %1456 = vmatprep.subr.mxu0 0.0
    %1457 = vmatpush1.msra.mxu0 0.0
    %1458 = vmatprep.subr.mxu0 0.0
    %1459 = vmatpush1.msra.mxu0 0.0
    %1460 = vmatprep.subr.mxu0 0.0
    %1461 = vmatpush1.msra.mxu0 0.0
    %1462 = vmatprep.subr.mxu0 0.0
    %1463 = vmatpush1.msra.mxu0 0.0
    %1464 = vmatprep.subr.mxu0 0.0
    %1465 = vmatpush1.msra.mxu0 0.0
    %1466 = vmatprep.subr.mxu0 0.0
    %1467 = vmatpush1.msra.mxu0 0.0
    %1468 = vmatprep.subr.mxu0 0.0
    %1469 = vmatpush1.msra.mxu0 0.0
    %1470 = vmatprep.subr.mxu0 0.0
    %1471 = vmatpush1.msra.mxu0 0.0
    %1472 = vmatprep.mubr.f32.mxu0 0.0
    %1473 = vmatmul.mubr.f32.gmra.mrb[0].mxu0 %v1406
    %v1474 = vpop.f32.mrb[0].mxu0
    %v1475 = vadd.f32 %v58, %v1474
    %v1476 = vpop.f32.mrb[0].mxu0
    %1477 = vdwg.mxu0
    %v1478 = vsel %vm151, %v1475, -inf
    %1479 = vmax.xlane.f32.xlu0 %v1478
    %v1480 = vpop.xlane.xlu0 %1479
    %v1481 = vsub.f32 %v1475, %v1480
    %v1482 = vmul.f32 %v1481, 1.442695
    %v1483 = vpow.pop %v1482
    %1485 = vrot.lane.b32.xlu0 %v1483, 32
    %v1486 = vpop.permute.xlu0 %1485
    %v1488 = vsel %vm162, %v1486, 0.0
    %1489 = vadd.xlane.f32.xlu0 %v1488
    %v1490 = vpop.xlane.xlu0 %1489
    %v1491 = vrcp.pop %v1490
    %v1492 = vmul.f32 %v1483, %v1491
    %1494 = vrot.lane.b32.xlu0 %v1492, 32
    %v1495 = vpop.permute.xlu0 %1494
    %v1496 = vsel %vm171, %v1495, 0
    %1498 = vmatprep.subr.mxu0 0.0
    %1499 = vmatpush1.msra.mxu0 %v62
    %1500 = vmatprep.subr.mxu0 0.0
    %1501 = vmatpush1.msra.mxu0 %v176
    %1502 = vmatprep.subr.mxu0 0.0
    %1503 = vmatpush1.msra.mxu0 0.0
    %1504 = vmatprep.subr.mxu0 0.0
    %1505 = vmatpush1.msra.mxu0 0.0
    %1506 = vmatprep.subr.mxu0 0.0
    %1507 = vmatpush1.msra.mxu0 0.0
    %1508 = vmatprep.subr.mxu0 0.0
    %1509 = vmatpush1.msra.mxu0 0.0
    %1510 = vmatprep.subr.mxu0 0.0
    %1511 = vmatpush1.msra.mxu0 0.0
    %1512 = vmatprep.subr.mxu0 0.0
    %1513 = vmatpush1.msra.mxu0 0.0
    %1514 = vmatprep.subr.mxu0 0.0
    %1515 = vmatpush1.msra.mxu0 0.0
    %1516 = vmatprep.subr.mxu0 0.0
    %1517 = vmatpush1.msra.mxu0 0.0
    %1518 = vmatprep.subr.mxu0 0.0
    %1519 = vmatpush1.msra.mxu0 0.0
    %1520 = vmatprep.subr.mxu0 0.0
    %1521 = vmatpush1.msra.mxu0 0.0
    %1522 = vmatprep.subr.mxu0 0.0
    %1523 = vmatpush1.msra.mxu0 0.0
    %1524 = vmatprep.subr.mxu0 0.0
    %1525 = vmatpush1.msra.mxu0 0.0
    %1526 = vmatprep.subr.mxu0 0.0
    %1527 = vmatpush1.msra.mxu0 0.0
    %1528 = vmatprep.subr.mxu0 0.0
    %1529 = vmatpush1.msra.mxu0 0.0
    %1530 = vmatprep.subr.mxu0 0.0
    %1531 = vmatpush1.msra.mxu0 0.0
    %1532 = vmatprep.subr.mxu0 0.0
    %1533 = vmatpush1.msra.mxu0 0.0
    %1534 = vmatprep.subr.mxu0 0.0
    %1535 = vmatpush1.msra.mxu0 0.0
    %1536 = vmatprep.subr.mxu0 0.0
    %1537 = vmatpush1.msra.mxu0 0.0
    %1538 = vmatprep.subr.mxu0 0.0
    %1539 = vmatpush1.msra.mxu0 0.0
    %1540 = vmatprep.subr.mxu0 0.0
    %1541 = vmatpush1.msra.mxu0 0.0
    %1542 = vmatprep.subr.mxu0 0.0
    %1543 = vmatpush1.msra.mxu0 0.0
    %1544 = vmatprep.subr.mxu0 0.0
    %1545 = vmatpush1.msra.mxu0 0.0
    %1546 = vmatprep.subr.mxu0 0.0
    %1547 = vmatpush1.msra.mxu0 0.0
    %1548 = vmatprep.subr.mxu0 0.0
    %1549 = vmatpush1.msra.mxu0 0.0
    %1550 = vmatprep.subr.mxu0 0.0
    %1551 = vmatpush1.msra.mxu0 0.0
    %1552 = vmatprep.subr.mxu0 0.0
    %1553 = vmatpush1.msra.mxu0 0.0
    %1554 = vmatprep.subr.mxu0 0.0
    %1555 = vmatpush1.msra.mxu0 0.0
    %1556 = vmatprep.subr.mxu0 0.0
    %1557 = vmatpush1.msra.mxu0 0.0
    %1558 = vmatprep.subr.mxu0 0.0
    %1559 = vmatpush1.msra.mxu0 0.0
    %1560 = vmatprep.subr.mxu0 0.0
    %1561 = vmatpush1.msra.mxu0 0.0
    %1562 = vmatprep.mubr.f32.mxu0 0.0
    %1563 = vmatmul.mubr.f32.gmra.mrb[0].mxu0 %v1496
    %v1564 = vpop.f32.mrb[0].mxu0
    %v1565 = vadd.f32 0.0, %v1564
    %v1566 = vpop.f32.mrb[0].mxu0
    %1567 = vdwg.mxu0
    %1569 = vrot.lane.b32.xlu0 %v1565, 32
    %v1570 = vpop.permute.xlu0 %1569
    %v1572 = vsel %vm75, %v1403, %v1570
    %v1574 = vsel %vm77, %v1572, 0
    %1576 = vmatprep.subr.mxu0 0.0
    %1577 = vmatpush1.msra.mxu0 %v42
    %1578 = vmatprep.subr.mxu0 0.0
    %1579 = vmatpush1.msra.mxu0 %v43
    %1580 = vmatprep.subr.mxu0 0.0
    %1581 = vmatpush1.msra.mxu0 %v44
    %1582 = vmatprep.subr.mxu0 0.0
    %1583 = vmatpush1.msra.mxu0 %v45
    %1584 = vmatprep.subr.mxu0 0.0
    %1585 = vmatpush1.msra.mxu0 %v46
    %1586 = vmatprep.subr.mxu0 0.0
    %1587 = vmatpush1.msra.mxu0 %v47
    %1588 = vmatprep.subr.mxu0 0.0
    %1589 = vmatpush1.msra.mxu0 %v48
    %1590 = vmatprep.subr.mxu0 0.0
    %1591 = vmatpush1.msra.mxu0 %v49
    %1592 = vmatprep.subr.mxu0 0.0
    %1593 = vmatpush1.msra.mxu0 0.0
    %1594 = vmatprep.subr.mxu0 0.0
    %1595 = vmatpush1.msra.mxu0 0.0
    %1596 = vmatprep.subr.mxu0 0.0
    %1597 = vmatpush1.msra.mxu0 0.0
    %1598 = vmatprep.subr.mxu0 0.0
    %1599 = vmatpush1.msra.mxu0 0.0
    %1600 = vmatprep.subr.mxu0 0.0
    %1601 = vmatpush1.msra.mxu0 0.0
    %1602 = vmatprep.subr.mxu0 0.0
    %1603 = vmatpush1.msra.mxu0 0.0
    %1604 = vmatprep.subr.mxu0 0.0
    %1605 = vmatpush1.msra.mxu0 0.0
    %1606 = vmatprep.subr.mxu0 0.0
    %1607 = vmatpush1.msra.mxu0 0.0
    %1608 = vmatprep.subr.mxu0 0.0
    %1609 = vmatpush1.msra.mxu0 0.0
    %1610 = vmatprep.subr.mxu0 0.0
    %1611 = vmatpush1.msra.mxu0 0.0
    %1612 = vmatprep.subr.mxu0 0.0
    %1613 = vmatpush1.msra.mxu0 0.0
    %1614 = vmatprep.subr.mxu0 0.0
    %1615 = vmatpush1.msra.mxu0 0.0
    %1616 = vmatprep.subr.mxu0 0.0
    %1617 = vmatpush1.msra.mxu0 0.0
    %1618 = vmatprep.subr.mxu0 0.0
    %1619 = vmatpush1.msra.mxu0 0.0
    %1620 = vmatprep.subr.mxu0 0.0
    %1621 = vmatpush1.msra.mxu0 0.0
    %1622 = vmatprep.subr.mxu0 0.0
    %1623 = vmatpush1.msra.mxu0 0.0
    %1624 = vmatprep.subr.mxu0 0.0
    %1625 = vmatpush1.msra.mxu0 0.0
    %1626 = vmatprep.subr.mxu0 0.0
    %1627 = vmatpush1.msra.mxu0 0.0
    %1628 = vmatprep.subr.mxu0 0.0
    %1629 = vmatpush1.msra.mxu0 0.0
    %1630 = vmatprep.subr.mxu0 0.0
    %1631 = vmatpush1.msra.mxu0 0.0
    %1632 = vmatprep.subr.mxu0 0.0
    %1633 = vmatpush1.msra.mxu0 0.0
    %1634 = vmatprep.subr.mxu0 0.0
    %1635 = vmatpush1.msra.mxu0 0.0
    %1636 = vmatprep.subr.mxu0 0.0
    %1637 = vmatpush1.msra.mxu0 0.0
    %1638 = vmatprep.subr.mxu0 0.0
    %1639 = vmatpush1.msra.mxu0 0.0
    %1640 = vmatprep.mubr.f32.mxu0 0.0
    %1641 = vmatmul.mubr.f32.gmra.mrb[0].mxu0 %v1574
    %v1642 = vpop.f32.mrb[0].mxu0
    %v1643 = vadd.f32 %v59, %v1642
    %v1644 = vpop.f32.mrb[0].mxu0
    %1645 = vdwg.mxu0
    %v1646 = vmax.f32 %v1643, 0.0
    %v1648 = vsel %vm75, %v1646, 0
    %1650 = vmatprep.subr.mxu0 0.0
    %1651 = vmatpush1.msra.mxu0 %v50
    %1652 = vmatprep.subr.mxu0 0.0
    %1653 = vmatpush1.msra.mxu0 %v51
    %1654 = vmatprep.subr.mxu0 0.0
    %1655 = vmatpush1.msra.mxu0 %v52
    %1656 = vmatprep.subr.mxu0 0.0
    %1657 = vmatpush1.msra.mxu0 %v53
    %1658 = vmatprep.subr.mxu0 0.0
    %1659 = vmatpush1.msra.mxu0 0.0
    %1660 = vmatprep.subr.mxu0 0.0
    %1661 = vmatpush1.msra.mxu0 0.0
    %1662 = vmatprep.subr.mxu0 0.0
    %1663 = vmatpush1.msra.mxu0 0.0
    %1664 = vmatprep.subr.mxu0 0.0
    %1665 = vmatpush1.msra.mxu0 0.0
    %1666 = vmatprep.subr.mxu0 0.0
    %1667 = vmatpush1.msra.mxu0 0.0
    %1668 = vmatprep.subr.mxu0 0.0
    %1669 = vmatpush1.msra.mxu0 0.0
    %1670 = vmatprep.subr.mxu0 0.0
    %1671 = vmatpush1.msra.mxu0 0.0
    %1672 = vmatprep.subr.mxu0 0.0
    %1673 = vmatpush1.msra.mxu0 0.0
    %1674 = vmatprep.subr.mxu0 0.0
    %1675 = vmatpush1.msra.mxu0 0.0
    %1676 = vmatprep.subr.mxu0 0.0
    %1677 = vmatpush1.msra.mxu0 0.0
    %1678 = vmatprep.subr.mxu0 0.0
    %1679 = vmatpush1.msra.mxu0 0.0
    %1680 = vmatprep.subr.mxu0 0.0
    %1681 = vmatpush1.msra.mxu0 0.0
    %1682 = vmatprep.subr.mxu0 0.0
    %1683 = vmatpush1.msra.mxu0 0.0
    %1684 = vmatprep.subr.mxu0 0.0
    %1685 = vmatpush1.msra.mxu0 0.0
    %1686 = vmatprep.subr.mxu0 0.0
    %1687 = vmatpush1.msra.mxu0 0.0
    %1688 = vmatprep.subr.mxu0 0.0
    %1689 = vmatpush1.msra.mxu0 0.0
    %1690 = vmatprep.subr.mxu0 0.0
    %1691 = vmatpush1.msra.mxu0 0.0
    %1692 = vmatprep.subr.mxu0 0.0
    %1693 = vmatpush1.msra.mxu0 0.0
    %1694 = vmatprep.subr.mxu0 0.0
    %1695 = vmatpush1.msra.mxu0 0.0
    %1696 = vmatprep.subr.mxu0 0.0
    %1697 = vmatpush1.msra.mxu0 0.0
    %1698 = vmatprep.subr.mxu0 0.0
    %1699 = vmatpush1.msra.mxu0 0.0
    %1700 = vmatprep.subr.mxu0 0.0
    %1701 = vmatpush1.msra.mxu0 0.0
    %1702 = vmatprep.subr.mxu0 0.0
    %1703 = vmatpush1.msra.mxu0 0.0
    %1704 = vmatprep.subr.mxu0 0.0
    %1705 = vmatpush1.msra.mxu0 0.0
    %1706 = vmatprep.subr.mxu0 0.0
    %1707 = vmatpush1.msra.mxu0 0.0
    %1708 = vmatprep.subr.mxu0 0.0
    %1709 = vmatpush1.msra.mxu0 0.0
    %1710 = vmatprep.subr.mxu0 0.0
    %1711 = vmatpush1.msra.mxu0 0.0
    %1712 = vmatprep.subr.mxu0 0.0
    %1713 = vmatpush1.msra.mxu0 0.0
    %1714 = vmatprep.mubr.f32.mxu0 0.0
    %1715 = vmatmul.mubr.f32.gmra.mrb[0].mxu0 %v1648
    %v1716 = vpop.f32.mrb[0].mxu0
    %v1717 = vadd.f32 %v60, %v1716
    %v1718 = vpop.f32.mrb[0].mxu0
    %1719 = vdwg.mxu0
    %v1720 = vadd.f32 %v1717, %v1475
    %v1721 = vxor.u32 %v1720, 2147483648
    %v1722 = vmul.f32 %v1721, 1.442695
    %v1723 = vpow.pop %v1722
    %v1724 = vadd.f32 %v1723, 1.0
    %v1725 = vrcp.pop %v1724
    %v1726 = vmul.f32 1.0, %v1725
    %1728 = vrot.lane.b32.xlu0 %v1475, 64
    %v1729 = vpop.permute.xlu0 %1728
    %v1731 = vmul.f32 %v1726, %v1729
    %1733 = vrot.lane.b32.xlu0 %v1731, 64
    %v1734 = vpop.permute.xlu0 %1733
    %v1736 = vadd.f32 %v1717, %v1734
    %v1737 = vtanh.pop %v1736
    %v1738 = vsub.f32 1.0, %v1726
    %1740 = vrot.lane.b32.xlu0 %v1737, 96
    %v1741 = vpop.permute.xlu0 %1740
    %v1743 = vmul.f32 %v1738, %v1741
    %v1744 = vmul.f32 %v1726, %v1306
    %v1745 = vadd.f32 %v1743, %v1744
    %1747 = vrot.lane.b32.xlu0 %v1745, 96
    %v1748 = vpop.permute.xlu0 %1747
    %v1749 = vsel %vm75, %v1748, 0
    %1751 = vmatprep.subr.mxu0 0.0
    %1752 = vmatpush1.msra.mxu0 %v54
    %1753 = vmatprep.subr.mxu0 0.0
    %1754 = vmatpush1.msra.mxu0 %v55
    %1755 = vmatprep.subr.mxu0 0.0
    %1756 = vmatpush1.msra.mxu0 %v56
    %1757 = vmatprep.subr.mxu0 0.0
    %1758 = vmatpush1.msra.mxu0 %v57
    %1759 = vmatprep.subr.mxu0 0.0
    %1760 = vmatpush1.msra.mxu0 0.0
    %1761 = vmatprep.subr.mxu0 0.0
    %1762 = vmatpush1.msra.mxu0 0.0
    %1763 = vmatprep.subr.mxu0 0.0
    %1764 = vmatpush1.msra.mxu0 0.0
    %1765 = vmatprep.subr.mxu0 0.0
    %1766 = vmatpush1.msra.mxu0 0.0
    %1767 = vmatprep.subr.mxu0 0.0
    %1768 = vmatpush1.msra.mxu0 0.0
    %1769 = vmatprep.subr.mxu0 0.0
    %1770 = vmatpush1.msra.mxu0 0.0
    %1771 = vmatprep.subr.mxu0 0.0
    %1772 = vmatpush1.msra.mxu0 0.0
    %1773 = vmatprep.subr.mxu0 0.0
    %1774 = vmatpush1.msra.mxu0 0.0
    %1775 = vmatprep.subr.mxu0 0.0
    %1776 = vmatpush1.msra.mxu0 0.0
    %1777 = vmatprep.subr.mxu0 0.0
    %1778 = vmatpush1.msra.mxu0 0.0
    %1779 = vmatprep.subr.mxu0 0.0
    %1780 = vmatpush1.msra.mxu0 0.0
    %1781 = vmatprep.subr.mxu0 0.0
    %1782 = vmatpush1.msra.mxu0 0.0
    %1783 = vmatprep.subr.mxu0 0.0
    %1784 = vmatpush1.msra.mxu0 0.0
    %1785 = vmatprep.subr.mxu0 0.0
    %1786 = vmatpush1.msra.mxu0 0.0
    %1787 = vmatprep.subr.mxu0 0.0
    %1788 = vmatpush1.msra.mxu0 0.0
    %1789 = vmatprep.subr.mxu0 0.0
    %1790 = vmatpush1.msra.mxu0 0.0
    %1791 = vmatprep.subr.mxu0 0.0
    %1792 = vmatpush1.msra.mxu0 0.0
    %1793 = vmatprep.subr.mxu0 0.0
    %1794 = vmatpush1.msra.mxu0 0.0
    %1795 = vmatprep.subr.mxu0 0.0
    %1796 = vmatpush1.msra.mxu0 0.0
    %1797 = vmatprep.subr.mxu0 0.0
    %1798 = vmatpush1.msra.mxu0 0.0
    %1799 = vmatprep.subr.mxu0 0.0
    %1800 = vmatpush1.msra.mxu0 0.0
    %1801 = vmatprep.subr.mxu0 0.0
    %1802 = vmatpush1.msra.mxu0 0.0
    %1803 = vmatprep.subr.mxu0 0.0
    %1804 = vmatpush1.msra.mxu0 0.0
    %1805 = vmatprep.subr.mxu0 0.0
    %1806 = vmatpush1.msra.mxu0 0.0
    %1807 = vmatprep.subr.mxu0 0.0
    %1808 = vmatpush1.msra.mxu0 0.0
    %1809 = vmatprep.subr.mxu0 0.0
    %1810 = vmatpush1.msra.mxu0 0.0
    %1811 = vmatprep.subr.mxu0 0.0
    %1812 = vmatpush1.msra.mxu0 0.0
    %1813 = vmatprep.subr.mxu0 0.0
    %1814 = vmatpush1.msra.mxu0 0.0
    %1815 = vmatprep.mubr.f32.mxu0 0.0
    %1816 = vmatmul.mubr.f32.gmra.mrb[0].mxu0 %v1749
    %v1817 = vpop.f32.mrb[0].mxu0
    %v1818 = vadd.f32 %v61, %v1817
    %v1819 = vpop.f32.mrb[0].mxu0
    %1820 = vdwg.mxu0
    %v1821 = vsel %vm501, %v1818, -inf
    %1822 = vmax.xlane.f32.xlu0 %v1821
    %v1823 = vpop.xlane.xlu0 %1822
    %v1824 = vsub.f32 %v1818, %v1823
    %v1825 = vmul.f32 %v1824, 1.442695
    %v1826 = vpow.pop %v1825
    %v1827 = vsel %vm501, %v1826, 0.0
    %1828 = vadd.xlane.f32.xlu0 %v1827
    %v1829 = vpop.xlane.xlu0 %1828
    %v1830 = vlog2.pop %v1829
    %v1831 = vmul.f32 %v1830, 0.6931472
    %v1832 = vsub.f32 %v1824, %v1831
    %1833 = vst.msk [vmem:[%s5 + $0x3] sm:$0x1] %vm501, %v1832
    %1834 = vrot.lane.b32.xlu0 %v1745, 16
    %v1835 = vpop.permute.xlu0 %1834
    %1837 = vst.msk [vmem:[%s5 + $0x3] sm:$0x1] %vm518, %v1835
    %1838 = vrot.lane.b32.xlu0 %v1492, 112
    %v1839 = vpop.permute.xlu0 %1838
    %1841 = vst.msk [vmem:[%s5 + $0x3] sm:$0x1] %vm523, %v1839
    %v1842 = vld [vmem:[%s0 + $0x4] sm:$0x1]
    %v1843 = vsel %vm75, %v1842, %v1745
    %v1845 = vsel %vm77, %v1843, 0
    %1847 = vmatprep.subr.mxu0 0.0
    %1848 = vmatpush1.msra.mxu0 %v34
    %1849 = vmatprep.subr.mxu0 0.0
    %1850 = vmatpush1.msra.mxu0 %v35
    %1851 = vmatprep.subr.mxu0 0.0
    %1852 = vmatpush1.msra.mxu0 %v36
    %1853 = vmatprep.subr.mxu0 0.0
    %1854 = vmatpush1.msra.mxu0 %v37
    %1855 = vmatprep.subr.mxu0 0.0
    %1856 = vmatpush1.msra.mxu0 %v38
    %1857 = vmatprep.subr.mxu0 0.0
    %1858 = vmatpush1.msra.mxu0 %v39
    %1859 = vmatprep.subr.mxu0 0.0
    %1860 = vmatpush1.msra.mxu0 %v40
    %1861 = vmatprep.subr.mxu0 0.0
    %1862 = vmatpush1.msra.mxu0 %v41
    %1863 = vmatprep.subr.mxu0 0.0
    %1864 = vmatpush1.msra.mxu0 0.0
    %1865 = vmatprep.subr.mxu0 0.0
    %1866 = vmatpush1.msra.mxu0 0.0
    %1867 = vmatprep.subr.mxu0 0.0
    %1868 = vmatpush1.msra.mxu0 0.0
    %1869 = vmatprep.subr.mxu0 0.0
    %1870 = vmatpush1.msra.mxu0 0.0
    %1871 = vmatprep.subr.mxu0 0.0
    %1872 = vmatpush1.msra.mxu0 0.0
    %1873 = vmatprep.subr.mxu0 0.0
    %1874 = vmatpush1.msra.mxu0 0.0
    %1875 = vmatprep.subr.mxu0 0.0
    %1876 = vmatpush1.msra.mxu0 0.0
    %1877 = vmatprep.subr.mxu0 0.0
    %1878 = vmatpush1.msra.mxu0 0.0
    %1879 = vmatprep.subr.mxu0 0.0
    %1880 = vmatpush1.msra.mxu0 0.0
    %1881 = vmatprep.subr.mxu0 0.0
    %1882 = vmatpush1.msra.mxu0 0.0
    %1883 = vmatprep.subr.mxu0 0.0
    %1884 = vmatpush1.msra.mxu0 0.0
    %1885 = vmatprep.subr.mxu0 0.0
    %1886 = vmatpush1.msra.mxu0 0.0
    %1887 = vmatprep.subr.mxu0 0.0
    %1888 = vmatpush1.msra.mxu0 0.0
    %1889 = vmatprep.subr.mxu0 0.0
    %1890 = vmatpush1.msra.mxu0 0.0
    %1891 = vmatprep.subr.mxu0 0.0
    %1892 = vmatpush1.msra.mxu0 0.0
    %1893 = vmatprep.subr.mxu0 0.0
    %1894 = vmatpush1.msra.mxu0 0.0
    %1895 = vmatprep.subr.mxu0 0.0
    %1896 = vmatpush1.msra.mxu0 0.0
    %1897 = vmatprep.subr.mxu0 0.0
    %1898 = vmatpush1.msra.mxu0 0.0
    %1899 = vmatprep.subr.mxu0 0.0
    %1900 = vmatpush1.msra.mxu0 0.0
    %1901 = vmatprep.subr.mxu0 0.0
    %1902 = vmatpush1.msra.mxu0 0.0
    %1903 = vmatprep.subr.mxu0 0.0
    %1904 = vmatpush1.msra.mxu0 0.0
    %1905 = vmatprep.subr.mxu0 0.0
    %1906 = vmatpush1.msra.mxu0 0.0
    %1907 = vmatprep.subr.mxu0 0.0
    %1908 = vmatpush1.msra.mxu0 0.0
    %1909 = vmatprep.subr.mxu0 0.0
    %1910 = vmatpush1.msra.mxu0 0.0
    %1911 = vmatprep.mubr.f32.mxu0 0.0
    %1912 = vmatmul.mubr.f32.gmra.mrb[0].mxu0 %v1845
    %v1913 = vpop.f32.mrb[0].mxu0
    %v1914 = vadd.f32 %v58, %v1913
    %v1915 = vpop.f32.mrb[0].mxu0
    %1916 = vdwg.mxu0
    %v1917 = vsel %vm151, %v1914, -inf
    %1918 = vmax.xlane.f32.xlu0 %v1917
    %v1919 = vpop.xlane.xlu0 %1918
    %v1920 = vsub.f32 %v1914, %v1919
    %v1921 = vmul.f32 %v1920, 1.442695
    %v1922 = vpow.pop %v1921
    %1924 = vrot.lane.b32.xlu0 %v1922, 32
    %v1925 = vpop.permute.xlu0 %1924
    %v1927 = vsel %vm162, %v1925, 0.0
    %1928 = vadd.xlane.f32.xlu0 %v1927
    %v1929 = vpop.xlane.xlu0 %1928
    %v1930 = vrcp.pop %v1929
    %v1931 = vmul.f32 %v1922, %v1930
    %1933 = vrot.lane.b32.xlu0 %v1931, 32
    %v1934 = vpop.permute.xlu0 %1933
    %v1935 = vsel %vm171, %v1934, 0
    %1937 = vmatprep.subr.mxu0 0.0
    %1938 = vmatpush1.msra.mxu0 %v62
    %1939 = vmatprep.subr.mxu0 0.0
    %1940 = vmatpush1.msra.mxu0 %v176
    %1941 = vmatprep.subr.mxu0 0.0
    %1942 = vmatpush1.msra.mxu0 0.0
    %1943 = vmatprep.subr.mxu0 0.0
    %1944 = vmatpush1.msra.mxu0 0.0
    %1945 = vmatprep.subr.mxu0 0.0
    %1946 = vmatpush1.msra.mxu0 0.0
    %1947 = vmatprep.subr.mxu0 0.0
    %1948 = vmatpush1.msra.mxu0 0.0
    %1949 = vmatprep.subr.mxu0 0.0
    %1950 = vmatpush1.msra.mxu0 0.0
    %1951 = vmatprep.subr.mxu0 0.0
    %1952 = vmatpush1.msra.mxu0 0.0
    %1953 = vmatprep.subr.mxu0 0.0
    %1954 = vmatpush1.msra.mxu0 0.0
    %1955 = vmatprep.subr.mxu0 0.0
    %1956 = vmatpush1.msra.mxu0 0.0
    %1957 = vmatprep.subr.mxu0 0.0
    %1958 = vmatpush1.msra.mxu0 0.0
    %1959 = vmatprep.subr.mxu0 0.0
    %1960 = vmatpush1.msra.mxu0 0.0
    %1961 = vmatprep.subr.mxu0 0.0
    %1962 = vmatpush1.msra.mxu0 0.0
    %1963 = vmatprep.subr.mxu0 0.0
    %1964 = vmatpush1.msra.mxu0 0.0
    %1965 = vmatprep.subr.mxu0 0.0
    %1966 = vmatpush1.msra.mxu0 0.0
    %1967 = vmatprep.subr.mxu0 0.0
    %1968 = vmatpush1.msra.mxu0 0.0
    %1969 = vmatprep.subr.mxu0 0.0
    %1970 = vmatpush1.msra.mxu0 0.0
    %1971 = vmatprep.subr.mxu0 0.0
    %1972 = vmatpush1.msra.mxu0 0.0
    %1973 = vmatprep.subr.mxu0 0.0
    %1974 = vmatpush1.msra.mxu0 0.0
    %1975 = vmatprep.subr.mxu0 0.0
    %1976 = vmatpush1.msra.mxu0 0.0
    %1977 = vmatprep.subr.mxu0 0.0
    %1978 = vmatpush1.msra.mxu0 0.0
    %1979 = vmatprep.subr.mxu0 0.0
    %1980 = vmatpush1.msra.mxu0 0.0
    %1981 = vmatprep.subr.mxu0 0.0
    %1982 = vmatpush1.msra.mxu0 0.0
    %1983 = vmatprep.subr.mxu0 0.0
    %1984 = vmatpush1.msra.mxu0 0.0
    %1985 = vmatprep.subr.mxu0 0.0
    %1986 = vmatpush1.msra.mxu0 0.0
    %1987 = vmatprep.subr.mxu0 0.0
    %1988 = vmatpush1.msra.mxu0 0.0
    %1989 = vmatprep.subr.mxu0 0.0
    %1990 = vmatpush1.msra.mxu0 0.0
    %1991 = vmatprep.subr.mxu0 0.0
    %1992 = vmatpush1.msra.mxu0 0.0
    %1993 = vmatprep.subr.mxu0 0.0
    %1994 = vmatpush1.msra.mxu0 0.0
    %1995 = vmatprep.subr.mxu0 0.0
    %1996 = vmatpush1.msra.mxu0 0.0
    %1997 = vmatprep.subr.mxu0 0.0
    %1998 = vmatpush1.msra.mxu0 0.0
    %1999 = vmatprep.subr.mxu0 0.0
    %2000 = vmatpush1.msra.mxu0 0.0
    %2001 = vmatprep.mubr.f32.mxu0 0.0
    %2002 = vmatmul.mubr.f32.gmra.mrb[0].mxu0 %v1935
    %v2003 = vpop.f32.mrb[0].mxu0
    %v2004 = vadd.f32 0.0, %v2003
    %v2005 = vpop.f32.mrb[0].mxu0
    %2006 = vdwg.mxu0
    %2008 = vrot.lane.b32.xlu0 %v2004, 32
    %v2009 = vpop.permute.xlu0 %2008
    %v2011 = vsel %vm75, %v1842, %v2009
    %v2013 = vsel %vm77, %v2011, 0
    %2015 = vmatprep.subr.mxu0 0.0
    %2016 = vmatpush1.msra.mxu0 %v42
    %2017 = vmatprep.subr.mxu0 0.0
    %2018 = vmatpush1.msra.mxu0 %v43
    %2019 = vmatprep.subr.mxu0 0.0
    %2020 = vmatpush1.msra.mxu0 %v44
    %2021 = vmatprep.subr.mxu0 0.0
    %2022 = vmatpush1.msra.mxu0 %v45
    %2023 = vmatprep.subr.mxu0 0.0
    %2024 = vmatpush1.msra.mxu0 %v46
    %2025 = vmatprep.subr.mxu0 0.0
    %2026 = vmatpush1.msra.mxu0 %v47
    %2027 = vmatprep.subr.mxu0 0.0
    %2028 = vmatpush1.msra.mxu0 %v48
    %2029 = vmatprep.subr.mxu0 0.0
    %2030 = vmatpush1.msra.mxu0 %v49
    %2031 = vmatprep.subr.mxu0 0.0
    %2032 = vmatpush1.msra.mxu0 0.0
    %2033 = vmatprep.subr.mxu0 0.0
    %2034 = vmatpush1.msra.mxu0 0.0
    %2035 = vmatprep.subr.mxu0 0.0
    %2036 = vmatpush1.msra.mxu0 0.0
    %2037 = vmatprep.subr.mxu0 0.0
    %2038 = vmatpush1.msra.mxu0 0.0
    %2039 = vmatprep.subr.mxu0 0.0
    %2040 = vmatpush1.msra.mxu0 0.0
    %2041 = vmatprep.subr.mxu0 0.0
    %2042 = vmatpush1.msra.mxu0 0.0
    %2043 = vmatprep.subr.mxu0 0.0
    %2044 = vmatpush1.msra.mxu0 0.0
    %2045 = vmatprep.subr.mxu0 0.0
    %2046 = vmatpush1.msra.mxu0 0.0
    %2047 = vmatprep.subr.mxu0 0.0
    %2048 = vmatpush1.msra.mxu0 0.0
    %2049 = vmatprep.subr.mxu0 0.0
    %2050 = vmatpush1.msra.mxu0 0.0
    %2051 = vmatprep.subr.mxu0 0.0
    %2052 = vmatpush1.msra.mxu0 0.0
    %2053 = vmatprep.subr.mxu0 0.0
    %2054 = vmatpush1.msra.mxu0 0.0
    %2055 = vmatprep.subr.mxu0 0.0
    %2056 = vmatpush1.msra.mxu0 0.0
    %2057 = vmatprep.subr.mxu0 0.0
    %2058 = vmatpush1.msra.mxu0 0.0
    %2059 = vmatprep.subr.mxu0 0.0
    %2060 = vmatpush1.msra.mxu0 0.0
    %2061 = vmatprep.subr.mxu0 0.0
    %2062 = vmatpush1.msra.mxu0 0.0
    %2063 = vmatprep.subr.mxu0 0.0
    %2064 = vmatpush1.msra.mxu0 0.0
    %2065 = vmatprep.subr.mxu0 0.0
    %2066 = vmatpush1.msra.mxu0 0.0
    %2067 = vmatprep.subr.mxu0 0.0
    %2068 = vmatpush1.msra.mxu0 0.0
    %2069 = vmatprep.subr.mxu0 0.0
    %2070 = vmatpush1.msra.mxu0 0.0
    %2071 = vmatprep.subr.mxu0 0.0
    %2072 = vmatpush1.msra.mxu0 0.0
    %2073 = vmatprep.subr.mxu0 0.0
    %2074 = vmatpush1.msra.mxu0 0.0
    %2075 = vmatprep.subr.mxu0 0.0
    %2076 = vmatpush1.msra.mxu0 0.0
    %2077 = vmatprep.subr.mxu0 0.0
    %2078 = vmatpush1.msra.mxu0 0.0
    %2079 = vmatprep.mubr.f32.mxu0 0.0
    %2080 = vmatmul.mubr.f32.gmra.mrb[0].mxu0 %v2013
    %v2081 = vpop.f32.mrb[0].mxu0
    %v2082 = vadd.f32 %v59, %v2081
    %v2083 = vpop.f32.mrb[0].mxu0
    %2084 = vdwg.mxu0
    %v2085 = vmax.f32 %v2082, 0.0
    %v2087 = vsel %vm75, %v2085, 0
    %2089 = vmatprep.subr.mxu0 0.0
    %2090 = vmatpush1.msra.mxu0 %v50
    %2091 = vmatprep.subr.mxu0 0.0
    %2092 = vmatpush1.msra.mxu0 %v51
    %2093 = vmatprep.subr.mxu0 0.0
    %2094 = vmatpush1.msra.mxu0 %v52
    %2095 = vmatprep.subr.mxu0 0.0
    %2096 = vmatpush1.msra.mxu0 %v53
    %2097 = vmatprep.subr.mxu0 0.0
    %2098 = vmatpush1.msra.mxu0 0.0
    %2099 = vmatprep.subr.mxu0 0.0
    %2100 = vmatpush1.msra.mxu0 0.0
    %2101 = vmatprep.subr.mxu0 0.0
    %2102 = vmatpush1.msra.mxu0 0.0
    %2103 = vmatprep.subr.mxu0 0.0
    %2104 = vmatpush1.msra.mxu0 0.0
    %2105 = vmatprep.subr.mxu0 0.0
    %2106 = vmatpush1.msra.mxu0 0.0
    %2107 = vmatprep.subr.mxu0 0.0
    %2108 = vmatpush1.msra.mxu0 0.0
    %2109 = vmatprep.subr.mxu0 0.0
    %2110 = vmatpush1.msra.mxu0 0.0
    %2111 = vmatprep.subr.mxu0 0.0
    %2112 = vmatpush1.msra.mxu0 0.0
    %2113 = vmatprep.subr.mxu0 0.0
    %2114 = vmatpush1.msra.mxu0 0.0
    %2115 = vmatprep.subr.mxu0 0.0
    %2116 = vmatpush1.msra.mxu0 0.0
    %2117 = vmatprep.subr.mxu0 0.0
    %2118 = vmatpush1.msra.mxu0 0.0
    %2119 = vmatprep.subr.mxu0 0.0
    %2120 = vmatpush1.msra.mxu0 0.0
    %2121 = vmatprep.subr.mxu0 0.0
    %2122 = vmatpush1.msra.mxu0 0.0
    %2123 = vmatprep.subr.mxu0 0.0
    %2124 = vmatpush1.msra.mxu0 0.0
    %2125 = vmatprep.subr.mxu0 0.0
    %2126 = vmatpush1.msra.mxu0 0.0
    %2127 = vmatprep.subr.mxu0 0.0
    %2128 = vmatpush1.msra.mxu0 0.0
    %2129 = vmatprep.subr.mxu0 0.0
    %2130 = vmatpush1.msra.mxu0 0.0
    %2131 = vmatprep.subr.mxu0 0.0
    %2132 = vmatpush1.msra.mxu0 0.0
    %2133 = vmatprep.subr.mxu0 0.0
    %2134 = vmatpush1.msra.mxu0 0.0
    %2135 = vmatprep.subr.mxu0 0.0
    %2136 = vmatpush1.msra.mxu0 0.0
    %2137 = vmatprep.subr.mxu0 0.0
    %2138 = vmatpush1.msra.mxu0 0.0
    %2139 = vmatprep.subr.mxu0 0.0
    %2140 = vmatpush1.msra.mxu0 0.0
    %2141 = vmatprep.subr.mxu0 0.0
    %2142 = vmatpush1.msra.mxu0 0.0
    %2143 = vmatprep.subr.mxu0 0.0
    %2144 = vmatpush1.msra.mxu0 0.0
    %2145 = vmatprep.subr.mxu0 0.0
    %2146 = vmatpush1.msra.mxu0 0.0
    %2147 = vmatprep.subr.mxu0 0.0
    %2148 = vmatpush1.msra.mxu0 0.0
    %2149 = vmatprep.subr.mxu0 0.0
    %2150 = vmatpush1.msra.mxu0 0.0
    %2151 = vmatprep.subr.mxu0 0.0
    %2152 = vmatpush1.msra.mxu0 0.0
    %2153 = vmatprep.mubr.f32.mxu0 0.0
    %2154 = vmatmul.mubr.f32.gmra.mrb[0].mxu0 %v2087
    %v2155 = vpop.f32.mrb[0].mxu0
    %v2156 = vadd.f32 %v60, %v2155
    %v2157 = vpop.f32.mrb[0].mxu0
    %2158 = vdwg.mxu0
    %v2159 = vadd.f32 %v2156, %v1914
    %v2160 = vxor.u32 %v2159, 2147483648
    %v2161 = vmul.f32 %v2160, 1.442695
    %v2162 = vpow.pop %v2161
    %v2163 = vadd.f32 %v2162, 1.0
    %v2164 = vrcp.pop %v2163
    %v2165 = vmul.f32 1.0, %v2164
    %2167 = vrot.lane.b32.xlu0 %v1914, 64
    %v2168 = vpop.permute.xlu0 %2167
    %v2170 = vmul.f32 %v2165, %v2168
    %2172 = vrot.lane.b32.xlu0 %v2170, 64
    %v2173 = vpop.permute.xlu0 %2172
    %v2175 = vadd.f32 %v2156, %v2173
    %v2176 = vtanh.pop %v2175
    %v2177 = vsub.f32 1.0, %v2165
    %2179 = vrot.lane.b32.xlu0 %v2176, 96
    %v2180 = vpop.permute.xlu0 %2179
    %v2182 = vmul.f32 %v2177, %v2180
    %v2183 = vmul.f32 %v2165, %v1745
    %v2184 = vadd.f32 %v2182, %v2183
    %2186 = vrot.lane.b32.xlu0 %v2184, 96
    %v2187 = vpop.permute.xlu0 %2186
    %v2188 = vsel %vm75, %v2187, 0
    %2190 = vmatprep.subr.mxu0 0.0
    %2191 = vmatpush1.msra.mxu0 %v54
    %2192 = vmatprep.subr.mxu0 0.0
    %2193 = vmatpush1.msra.mxu0 %v55
    %2194 = vmatprep.subr.mxu0 0.0
    %2195 = vmatpush1.msra.mxu0 %v56
    %2196 = vmatprep.subr.mxu0 0.0
    %2197 = vmatpush1.msra.mxu0 %v57
    %2198 = vmatprep.subr.mxu0 0.0
    %2199 = vmatpush1.msra.mxu0 0.0
    %2200 = vmatprep.subr.mxu0 0.0
    %2201 = vmatpush1.msra.mxu0 0.0
    %2202 = vmatprep.subr.mxu0 0.0
    %2203 = vmatpush1.msra.mxu0 0.0
    %2204 = vmatprep.subr.mxu0 0.0
    %2205 = vmatpush1.msra.mxu0 0.0
    %2206 = vmatprep.subr.mxu0 0.0
    %2207 = vmatpush1.msra.mxu0 0.0
    %2208 = vmatprep.subr.mxu0 0.0
    %2209 = vmatpush1.msra.mxu0 0.0
    %2210 = vmatprep.subr.mxu0 0.0
    %2211 = vmatpush1.msra.mxu0 0.0
    %2212 = vmatprep.subr.mxu0 0.0
    %2213 = vmatpush1.msra.mxu0 0.0
    %2214 = vmatprep.subr.mxu0 0.0
    %2215 = vmatpush1.msra.mxu0 0.0
    %2216 = vmatprep.subr.mxu0 0.0
    %2217 = vmatpush1.msra.mxu0 0.0
    %2218 = vmatprep.subr.mxu0 0.0
    %2219 = vmatpush1.msra.mxu0 0.0
    %2220 = vmatprep.subr.mxu0 0.0
    %2221 = vmatpush1.msra.mxu0 0.0
    %2222 = vmatprep.subr.mxu0 0.0
    %2223 = vmatpush1.msra.mxu0 0.0
    %2224 = vmatprep.subr.mxu0 0.0
    %2225 = vmatpush1.msra.mxu0 0.0
    %2226 = vmatprep.subr.mxu0 0.0
    %2227 = vmatpush1.msra.mxu0 0.0
    %2228 = vmatprep.subr.mxu0 0.0
    %2229 = vmatpush1.msra.mxu0 0.0
    %2230 = vmatprep.subr.mxu0 0.0
    %2231 = vmatpush1.msra.mxu0 0.0
    %2232 = vmatprep.subr.mxu0 0.0
    %2233 = vmatpush1.msra.mxu0 0.0
    %2234 = vmatprep.subr.mxu0 0.0
    %2235 = vmatpush1.msra.mxu0 0.0
    %2236 = vmatprep.subr.mxu0 0.0
    %2237 = vmatpush1.msra.mxu0 0.0
    %2238 = vmatprep.subr.mxu0 0.0
    %2239 = vmatpush1.msra.mxu0 0.0
    %2240 = vmatprep.subr.mxu0 0.0
    %2241 = vmatpush1.msra.mxu0 0.0
    %2242 = vmatprep.subr.mxu0 0.0
    %2243 = vmatpush1.msra.mxu0 0.0
    %2244 = vmatprep.subr.mxu0 0.0
    %2245 = vmatpush1.msra.mxu0 0.0
    %2246 = vmatprep.subr.mxu0 0.0
    %2247 = vmatpush1.msra.mxu0 0.0
    %2248 = vmatprep.subr.mxu0 0.0
    %2249 = vmatpush1.msra.mxu0 0.0
    %2250 = vmatprep.subr.mxu0 0.0
    %2251 = vmatpush1.msra.mxu0 0.0
    %2252 = vmatprep.subr.mxu0 0.0
    %2253 = vmatpush1.msra.mxu0 0.0
    %2254 = vmatprep.mubr.f32.mxu0 0.0
    %2255 = vmatmul.mubr.f32.gmra.mrb[0].mxu0 %v2188
    %v2256 = vpop.f32.mrb[0].mxu0
    %v2257 = vadd.f32 %v61, %v2256
    %v2258 = vpop.f32.mrb[0].mxu0
    %2259 = vdwg.mxu0
    %v2260 = vsel %vm501, %v2257, -inf
    %2261 = vmax.xlane.f32.xlu0 %v2260
    %v2262 = vpop.xlane.xlu0 %2261
    %v2263 = vsub.f32 %v2257, %v2262
    %v2264 = vmul.f32 %v2263, 1.442695
    %v2265 = vpow.pop %v2264
    %v2266 = vsel %vm501, %v2265, 0.0
    %2267 = vadd.xlane.f32.xlu0 %v2266
    %v2268 = vpop.xlane.xlu0 %2267
    %v2269 = vlog2.pop %v2268
    %v2270 = vmul.f32 %v2269, 0.6931472
    %v2271 = vsub.f32 %v2263, %v2270
    %2272 = vst.msk [vmem:[%s5 + $0x4] sm:$0x1] %vm501, %v2271
    %2273 = vrot.lane.b32.xlu0 %v2184, 16
    %v2274 = vpop.permute.xlu0 %2273
    %2276 = vst.msk [vmem:[%s5 + $0x4] sm:$0x1] %vm518, %v2274
    %2277 = vrot.lane.b32.xlu0 %v1931, 112
    %v2278 = vpop.permute.xlu0 %2277
    %2280 = vst.msk [vmem:[%s5 + $0x4] sm:$0x1] %vm523, %v2278
    %v2281 = vld [vmem:[%s0 + $0x5] sm:$0x1]
    %v2282 = vsel %vm75, %v2281, %v2184
    %v2284 = vsel %vm77, %v2282, 0
    %2286 = vmatprep.subr.mxu0 0.0
    %2287 = vmatpush1.msra.mxu0 %v34
    %2288 = vmatprep.subr.mxu0 0.0
    %2289 = vmatpush1.msra.mxu0 %v35
    %2290 = vmatprep.subr.mxu0 0.0
    %2291 = vmatpush1.msra.mxu0 %v36
    %2292 = vmatprep.subr.mxu0 0.0
    %2293 = vmatpush1.msra.mxu0 %v37
    %2294 = vmatprep.subr.mxu0 0.0
    %2295 = vmatpush1.msra.mxu0 %v38
    %2296 = vmatprep.subr.mxu0 0.0
    %2297 = vmatpush1.msra.mxu0 %v39
    %2298 = vmatprep.subr.mxu0 0.0
    %2299 = vmatpush1.msra.mxu0 %v40
    %2300 = vmatprep.subr.mxu0 0.0
    %2301 = vmatpush1.msra.mxu0 %v41
    %2302 = vmatprep.subr.mxu0 0.0
    %2303 = vmatpush1.msra.mxu0 0.0
    %2304 = vmatprep.subr.mxu0 0.0
    %2305 = vmatpush1.msra.mxu0 0.0
    %2306 = vmatprep.subr.mxu0 0.0
    %2307 = vmatpush1.msra.mxu0 0.0
    %2308 = vmatprep.subr.mxu0 0.0
    %2309 = vmatpush1.msra.mxu0 0.0
    %2310 = vmatprep.subr.mxu0 0.0
    %2311 = vmatpush1.msra.mxu0 0.0
    %2312 = vmatprep.subr.mxu0 0.0
    %2313 = vmatpush1.msra.mxu0 0.0
    %2314 = vmatprep.subr.mxu0 0.0
    %2315 = vmatpush1.msra.mxu0 0.0
    %2316 = vmatprep.subr.mxu0 0.0
    %2317 = vmatpush1.msra.mxu0 0.0
    %2318 = vmatprep.subr.mxu0 0.0
    %2319 = vmatpush1.msra.mxu0 0.0
    %2320 = vmatprep.subr.mxu0 0.0
    %2321 = vmatpush1.msra.mxu0 0.0
    %2322 = vmatprep.subr.mxu0 0.0
    %2323 = vmatpush1.msra.mxu0 0.0
    %2324 = vmatprep.subr.mxu0 0.0
    %2325 = vmatpush1.msra.mxu0 0.0
    %2326 = vmatprep.subr.mxu0 0.0
    %2327 = vmatpush1.msra.mxu0 0.0
    %2328 = vmatprep.subr.mxu0 0.0
    %2329 = vmatpush1.msra.mxu0 0.0
    %2330 = vmatprep.subr.mxu0 0.0
    %2331 = vmatpush1.msra.mxu0 0.0
    %2332 = vmatprep.subr.mxu0 0.0
    %2333 = vmatpush1.msra.mxu0 0.0
    %2334 = vmatprep.subr.mxu0 0.0
    %2335 = vmatpush1.msra.mxu0 0.0
    %2336 = vmatprep.subr.mxu0 0.0
    %2337 = vmatpush1.msra.mxu0 0.0
    %2338 = vmatprep.subr.mxu0 0.0
    %2339 = vmatpush1.msra.mxu0 0.0
    %2340 = vmatprep.subr.mxu0 0.0
    %2341 = vmatpush1.msra.mxu0 0.0
    %2342 = vmatprep.subr.mxu0 0.0
    %2343 = vmatpush1.msra.mxu0 0.0
    %2344 = vmatprep.subr.mxu0 0.0
    %2345 = vmatpush1.msra.mxu0 0.0
    %2346 = vmatprep.subr.mxu0 0.0
    %2347 = vmatpush1.msra.mxu0 0.0
    %2348 = vmatprep.subr.mxu0 0.0
    %2349 = vmatpush1.msra.mxu0 0.0
    %2350 = vmatprep.mubr.f32.mxu0 0.0
    %2351 = vmatmul.mubr.f32.gmra.mrb[0].mxu0 %v2284
    %v2352 = vpop.f32.mrb[0].mxu0
    %v2353 = vadd.f32 %v58, %v2352
    %v2354 = vpop.f32.mrb[0].mxu0
    %2355 = vdwg.mxu0
    %v2356 = vsel %vm151, %v2353, -inf
    %2357 = vmax.xlane.f32.xlu0 %v2356
    %v2358 = vpop.xlane.xlu0 %2357
    %v2359 = vsub.f32 %v2353, %v2358
    %v2360 = vmul.f32 %v2359, 1.442695
    %v2361 = vpow.pop %v2360
    %2363 = vrot.lane.b32.xlu0 %v2361, 32
    %v2364 = vpop.permute.xlu0 %2363
    %v2366 = vsel %vm162, %v2364, 0.0
    %2367 = vadd.xlane.f32.xlu0 %v2366
    %v2368 = vpop.xlane.xlu0 %2367
    %v2369 = vrcp.pop %v2368
    %v2370 = vmul.f32 %v2361, %v2369
    %2372 = vrot.lane.b32.xlu0 %v2370, 32
    %v2373 = vpop.permute.xlu0 %2372
    %v2374 = vsel %vm171, %v2373, 0
    %2376 = vmatprep.subr.mxu0 0.0
    %2377 = vmatpush1.msra.mxu0 %v62
    %2378 = vmatprep.subr.mxu0 0.0
    %2379 = vmatpush1.msra.mxu0 %v176
    %2380 = vmatprep.subr.mxu0 0.0
    %2381 = vmatpush1.msra.mxu0 0.0
    %2382 = vmatprep.subr.mxu0 0.0
    %2383 = vmatpush1.msra.mxu0 0.0
    %2384 = vmatprep.subr.mxu0 0.0
    %2385 = vmatpush1.msra.mxu0 0.0
    %2386 = vmatprep.subr.mxu0 0.0
    %2387 = vmatpush1.msra.mxu0 0.0
    %2388 = vmatprep.subr.mxu0 0.0
    %2389 = vmatpush1.msra.mxu0 0.0
    %2390 = vmatprep.subr.mxu0 0.0
    %2391 = vmatpush1.msra.mxu0 0.0
    %2392 = vmatprep.subr.mxu0 0.0
    %2393 = vmatpush1.msra.mxu0 0.0
    %2394 = vmatprep.subr.mxu0 0.0
    %2395 = vmatpush1.msra.mxu0 0.0
    %2396 = vmatprep.subr.mxu0 0.0
    %2397 = vmatpush1.msra.mxu0 0.0
    %2398 = vmatprep.subr.mxu0 0.0
    %2399 = vmatpush1.msra.mxu0 0.0
    %2400 = vmatprep.subr.mxu0 0.0
    %2401 = vmatpush1.msra.mxu0 0.0
    %2402 = vmatprep.subr.mxu0 0.0
    %2403 = vmatpush1.msra.mxu0 0.0
    %2404 = vmatprep.subr.mxu0 0.0
    %2405 = vmatpush1.msra.mxu0 0.0
    %2406 = vmatprep.subr.mxu0 0.0
    %2407 = vmatpush1.msra.mxu0 0.0
    %2408 = vmatprep.subr.mxu0 0.0
    %2409 = vmatpush1.msra.mxu0 0.0
    %2410 = vmatprep.subr.mxu0 0.0
    %2411 = vmatpush1.msra.mxu0 0.0
    %2412 = vmatprep.subr.mxu0 0.0
    %2413 = vmatpush1.msra.mxu0 0.0
    %2414 = vmatprep.subr.mxu0 0.0
    %2415 = vmatpush1.msra.mxu0 0.0
    %2416 = vmatprep.subr.mxu0 0.0
    %2417 = vmatpush1.msra.mxu0 0.0
    %2418 = vmatprep.subr.mxu0 0.0
    %2419 = vmatpush1.msra.mxu0 0.0
    %2420 = vmatprep.subr.mxu0 0.0
    %2421 = vmatpush1.msra.mxu0 0.0
    %2422 = vmatprep.subr.mxu0 0.0
    %2423 = vmatpush1.msra.mxu0 0.0
    %2424 = vmatprep.subr.mxu0 0.0
    %2425 = vmatpush1.msra.mxu0 0.0
    %2426 = vmatprep.subr.mxu0 0.0
    %2427 = vmatpush1.msra.mxu0 0.0
    %2428 = vmatprep.subr.mxu0 0.0
    %2429 = vmatpush1.msra.mxu0 0.0
    %2430 = vmatprep.subr.mxu0 0.0
    %2431 = vmatpush1.msra.mxu0 0.0
    %2432 = vmatprep.subr.mxu0 0.0
    %2433 = vmatpush1.msra.mxu0 0.0
    %2434 = vmatprep.subr.mxu0 0.0
    %2435 = vmatpush1.msra.mxu0 0.0
    %2436 = vmatprep.subr.mxu0 0.0
    %2437 = vmatpush1.msra.mxu0 0.0
    %2438 = vmatprep.subr.mxu0 0.0
    %2439 = vmatpush1.msra.mxu0 0.0
    %2440 = vmatprep.mubr.f32.mxu0 0.0
    %2441 = vmatmul.mubr.f32.gmra.mrb[0].mxu0 %v2374
    %v2442 = vpop.f32.mrb[0].mxu0
    %v2443 = vadd.f32 0.0, %v2442
    %v2444 = vpop.f32.mrb[0].mxu0
    %2445 = vdwg.mxu0
    %2447 = vrot.lane.b32.xlu0 %v2443, 32
    %v2448 = vpop.permute.xlu0 %2447
    %v2450 = vsel %vm75, %v2281, %v2448
    %v2452 = vsel %vm77, %v2450, 0
    %2454 = vmatprep.subr.mxu0 0.0
    %2455 = vmatpush1.msra.mxu0 %v42
    %2456 = vmatprep.subr.mxu0 0.0
    %2457 = vmatpush1.msra.mxu0 %v43
    %2458 = vmatprep.subr.mxu0 0.0
    %2459 = vmatpush1.msra.mxu0 %v44
    %2460 = vmatprep.subr.mxu0 0.0
    %2461 = vmatpush1.msra.mxu0 %v45
    %2462 = vmatprep.subr.mxu0 0.0
    %2463 = vmatpush1.msra.mxu0 %v46
    %2464 = vmatprep.subr.mxu0 0.0
    %2465 = vmatpush1.msra.mxu0 %v47
    %2466 = vmatprep.subr.mxu0 0.0
    %2467 = vmatpush1.msra.mxu0 %v48
    %2468 = vmatprep.subr.mxu0 0.0
    %2469 = vmatpush1.msra.mxu0 %v49
    %2470 = vmatprep.subr.mxu0 0.0
    %2471 = vmatpush1.msra.mxu0 0.0
    %2472 = vmatprep.subr.mxu0 0.0
    %2473 = vmatpush1.msra.mxu0 0.0
    %2474 = vmatprep.subr.mxu0 0.0
    %2475 = vmatpush1.msra.mxu0 0.0
    %2476 = vmatprep.subr.mxu0 0.0
    %2477 = vmatpush1.msra.mxu0 0.0
    %2478 = vmatprep.subr.mxu0 0.0
    %2479 = vmatpush1.msra.mxu0 0.0
    %2480 = vmatprep.subr.mxu0 0.0
    %2481 = vmatpush1.msra.mxu0 0.0
    %2482 = vmatprep.subr.mxu0 0.0
    %2483 = vmatpush1.msra.mxu0 0.0
    %2484 = vmatprep.subr.mxu0 0.0
    %2485 = vmatpush1.msra.mxu0 0.0
    %2486 = vmatprep.subr.mxu0 0.0
    %2487 = vmatpush1.msra.mxu0 0.0
    %2488 = vmatprep.subr.mxu0 0.0
    %2489 = vmatpush1.msra.mxu0 0.0
    %2490 = vmatprep.subr.mxu0 0.0
    %2491 = vmatpush1.msra.mxu0 0.0
    %2492 = vmatprep.subr.mxu0 0.0
    %2493 = vmatpush1.msra.mxu0 0.0
    %2494 = vmatprep.subr.mxu0 0.0
    %2495 = vmatpush1.msra.mxu0 0.0
    %2496 = vmatprep.subr.mxu0 0.0
    %2497 = vmatpush1.msra.mxu0 0.0
    %2498 = vmatprep.subr.mxu0 0.0
    %2499 = vmatpush1.msra.mxu0 0.0
    %2500 = vmatprep.subr.mxu0 0.0
    %2501 = vmatpush1.msra.mxu0 0.0
    %2502 = vmatprep.subr.mxu0 0.0
    %2503 = vmatpush1.msra.mxu0 0.0
    %2504 = vmatprep.subr.mxu0 0.0
    %2505 = vmatpush1.msra.mxu0 0.0
    %2506 = vmatprep.subr.mxu0 0.0
    %2507 = vmatpush1.msra.mxu0 0.0
    %2508 = vmatprep.subr.mxu0 0.0
    %2509 = vmatpush1.msra.mxu0 0.0
    %2510 = vmatprep.subr.mxu0 0.0
    %2511 = vmatpush1.msra.mxu0 0.0
    %2512 = vmatprep.subr.mxu0 0.0
    %2513 = vmatpush1.msra.mxu0 0.0
    %2514 = vmatprep.subr.mxu0 0.0
    %2515 = vmatpush1.msra.mxu0 0.0
    %2516 = vmatprep.subr.mxu0 0.0
    %2517 = vmatpush1.msra.mxu0 0.0
    %2518 = vmatprep.mubr.f32.mxu0 0.0
    %2519 = vmatmul.mubr.f32.gmra.mrb[0].mxu0 %v2452
    %v2520 = vpop.f32.mrb[0].mxu0
    %v2521 = vadd.f32 %v59, %v2520
    %v2522 = vpop.f32.mrb[0].mxu0
    %2523 = vdwg.mxu0
    %v2524 = vmax.f32 %v2521, 0.0
    %v2526 = vsel %vm75, %v2524, 0
    %2528 = vmatprep.subr.mxu0 0.0
    %2529 = vmatpush1.msra.mxu0 %v50
    %2530 = vmatprep.subr.mxu0 0.0
    %2531 = vmatpush1.msra.mxu0 %v51
    %2532 = vmatprep.subr.mxu0 0.0
    %2533 = vmatpush1.msra.mxu0 %v52
    %2534 = vmatprep.subr.mxu0 0.0
    %2535 = vmatpush1.msra.mxu0 %v53
    %2536 = vmatprep.subr.mxu0 0.0
    %2537 = vmatpush1.msra.mxu0 0.0
    %2538 = vmatprep.subr.mxu0 0.0
    %2539 = vmatpush1.msra.mxu0 0.0
    %2540 = vmatprep.subr.mxu0 0.0
    %2541 = vmatpush1.msra.mxu0 0.0
    %2542 = vmatprep.subr.mxu0 0.0
    %2543 = vmatpush1.msra.mxu0 0.0
    %2544 = vmatprep.subr.mxu0 0.0
    %2545 = vmatpush1.msra.mxu0 0.0
    %2546 = vmatprep.subr.mxu0 0.0
    %2547 = vmatpush1.msra.mxu0 0.0
    %2548 = vmatprep.subr.mxu0 0.0
    %2549 = vmatpush1.msra.mxu0 0.0
    %2550 = vmatprep.subr.mxu0 0.0
    %2551 = vmatpush1.msra.mxu0 0.0
    %2552 = vmatprep.subr.mxu0 0.0
    %2553 = vmatpush1.msra.mxu0 0.0
    %2554 = vmatprep.subr.mxu0 0.0
    %2555 = vmatpush1.msra.mxu0 0.0
    %2556 = vmatprep.subr.mxu0 0.0
    %2557 = vmatpush1.msra.mxu0 0.0
    %2558 = vmatprep.subr.mxu0 0.0
    %2559 = vmatpush1.msra.mxu0 0.0
    %2560 = vmatprep.subr.mxu0 0.0
    %2561 = vmatpush1.msra.mxu0 0.0
    %2562 = vmatprep.subr.mxu0 0.0
    %2563 = vmatpush1.msra.mxu0 0.0
    %2564 = vmatprep.subr.mxu0 0.0
    %2565 = vmatpush1.msra.mxu0 0.0
    %2566 = vmatprep.subr.mxu0 0.0
    %2567 = vmatpush1.msra.mxu0 0.0
    %2568 = vmatprep.subr.mxu0 0.0
    %2569 = vmatpush1.msra.mxu0 0.0
    %2570 = vmatprep.subr.mxu0 0.0
    %2571 = vmatpush1.msra.mxu0 0.0
    %2572 = vmatprep.subr.mxu0 0.0
    %2573 = vmatpush1.msra.mxu0 0.0
    %2574 = vmatprep.subr.mxu0 0.0
    %2575 = vmatpush1.msra.mxu0 0.0
    %2576 = vmatprep.subr.mxu0 0.0
    %2577 = vmatpush1.msra.mxu0 0.0
    %2578 = vmatprep.subr.mxu0 0.0
    %2579 = vmatpush1.msra.mxu0 0.0
    %2580 = vmatprep.subr.mxu0 0.0
    %2581 = vmatpush1.msra.mxu0 0.0
    %2582 = vmatprep.subr.mxu0 0.0
    %2583 = vmatpush1.msra.mxu0 0.0
    %2584 = vmatprep.subr.mxu0 0.0
    %2585 = vmatpush1.msra.mxu0 0.0
    %2586 = vmatprep.subr.mxu0 0.0
    %2587 = vmatpush1.msra.mxu0 0.0
    %2588 = vmatprep.subr.mxu0 0.0
    %2589 = vmatpush1.msra.mxu0 0.0
    %2590 = vmatprep.subr.mxu0 0.0
    %2591 = vmatpush1.msra.mxu0 0.0
    %2592 = vmatprep.mubr.f32.mxu0 0.0
    %2593 = vmatmul.mubr.f32.gmra.mrb[0].mxu0 %v2526
    %v2594 = vpop.f32.mrb[0].mxu0
    %v2595 = vadd.f32 %v60, %v2594
    %v2596 = vpop.f32.mrb[0].mxu0
    %2597 = vdwg.mxu0
    %v2598 = vadd.f32 %v2595, %v2353
    %v2599 = vxor.u32 %v2598, 2147483648
    %v2600 = vmul.f32 %v2599, 1.442695
    %v2601 = vpow.pop %v2600
    %v2602 = vadd.f32 %v2601, 1.0
    %v2603 = vrcp.pop %v2602
    %v2604 = vmul.f32 1.0, %v2603
    %2606 = vrot.lane.b32.xlu0 %v2353, 64
    %v2607 = vpop.permute.xlu0 %2606
    %v2609 = vmul.f32 %v2604, %v2607
    %2611 = vrot.lane.b32.xlu0 %v2609, 64
    %v2612 = vpop.permute.xlu0 %2611
    %v2614 = vadd.f32 %v2595, %v2612
    %v2615 = vtanh.pop %v2614
    %v2616 = vsub.f32 1.0, %v2604
    %2618 = vrot.lane.b32.xlu0 %v2615, 96
    %v2619 = vpop.permute.xlu0 %2618
    %v2621 = vmul.f32 %v2616, %v2619
    %v2622 = vmul.f32 %v2604, %v2184
    %v2623 = vadd.f32 %v2621, %v2622
    %2625 = vrot.lane.b32.xlu0 %v2623, 96
    %v2626 = vpop.permute.xlu0 %2625
    %v2627 = vsel %vm75, %v2626, 0
    %2629 = vmatprep.subr.mxu0 0.0
    %2630 = vmatpush1.msra.mxu0 %v54
    %2631 = vmatprep.subr.mxu0 0.0
    %2632 = vmatpush1.msra.mxu0 %v55
    %2633 = vmatprep.subr.mxu0 0.0
    %2634 = vmatpush1.msra.mxu0 %v56
    %2635 = vmatprep.subr.mxu0 0.0
    %2636 = vmatpush1.msra.mxu0 %v57
    %2637 = vmatprep.subr.mxu0 0.0
    %2638 = vmatpush1.msra.mxu0 0.0
    %2639 = vmatprep.subr.mxu0 0.0
    %2640 = vmatpush1.msra.mxu0 0.0
    %2641 = vmatprep.subr.mxu0 0.0
    %2642 = vmatpush1.msra.mxu0 0.0
    %2643 = vmatprep.subr.mxu0 0.0
    %2644 = vmatpush1.msra.mxu0 0.0
    %2645 = vmatprep.subr.mxu0 0.0
    %2646 = vmatpush1.msra.mxu0 0.0
    %2647 = vmatprep.subr.mxu0 0.0
    %2648 = vmatpush1.msra.mxu0 0.0
    %2649 = vmatprep.subr.mxu0 0.0
    %2650 = vmatpush1.msra.mxu0 0.0
    %2651 = vmatprep.subr.mxu0 0.0
    %2652 = vmatpush1.msra.mxu0 0.0
    %2653 = vmatprep.subr.mxu0 0.0
    %2654 = vmatpush1.msra.mxu0 0.0
    %2655 = vmatprep.subr.mxu0 0.0
    %2656 = vmatpush1.msra.mxu0 0.0
    %2657 = vmatprep.subr.mxu0 0.0
    %2658 = vmatpush1.msra.mxu0 0.0
    %2659 = vmatprep.subr.mxu0 0.0
    %2660 = vmatpush1.msra.mxu0 0.0
    %2661 = vmatprep.subr.mxu0 0.0
    %2662 = vmatpush1.msra.mxu0 0.0
    %2663 = vmatprep.subr.mxu0 0.0
    %2664 = vmatpush1.msra.mxu0 0.0
    %2665 = vmatprep.subr.mxu0 0.0
    %2666 = vmatpush1.msra.mxu0 0.0
    %2667 = vmatprep.subr.mxu0 0.0
    %2668 = vmatpush1.msra.mxu0 0.0
    %2669 = vmatprep.subr.mxu0 0.0
    %2670 = vmatpush1.msra.mxu0 0.0
    %2671 = vmatprep.subr.mxu0 0.0
    %2672 = vmatpush1.msra.mxu0 0.0
    %2673 = vmatprep.subr.mxu0 0.0
    %2674 = vmatpush1.msra.mxu0 0.0
    %2675 = vmatprep.subr.mxu0 0.0
    %2676 = vmatpush1.msra.mxu0 0.0
    %2677 = vmatprep.subr.mxu0 0.0
    %2678 = vmatpush1.msra.mxu0 0.0
    %2679 = vmatprep.subr.mxu0 0.0
    %2680 = vmatpush1.msra.mxu0 0.0
    %2681 = vmatprep.subr.mxu0 0.0
    %2682 = vmatpush1.msra.mxu0 0.0
    %2683 = vmatprep.subr.mxu0 0.0
    %2684 = vmatpush1.msra.mxu0 0.0
    %2685 = vmatprep.subr.mxu0 0.0
    %2686 = vmatpush1.msra.mxu0 0.0
    %2687 = vmatprep.subr.mxu0 0.0
    %2688 = vmatpush1.msra.mxu0 0.0
    %2689 = vmatprep.subr.mxu0 0.0
    %2690 = vmatpush1.msra.mxu0 0.0
    %2691 = vmatprep.subr.mxu0 0.0
    %2692 = vmatpush1.msra.mxu0 0.0
    %2693 = vmatprep.mubr.f32.mxu0 0.0
    %2694 = vmatmul.mubr.f32.gmra.mrb[0].mxu0 %v2627
    %v2695 = vpop.f32.mrb[0].mxu0
    %v2696 = vadd.f32 %v61, %v2695
    %v2697 = vpop.f32.mrb[0].mxu0
    %2698 = vdwg.mxu0
    %v2699 = vsel %vm501, %v2696, -inf
    %2700 = vmax.xlane.f32.xlu0 %v2699
    %v2701 = vpop.xlane.xlu0 %2700
    %v2702 = vsub.f32 %v2696, %v2701
    %v2703 = vmul.f32 %v2702, 1.442695
    %v2704 = vpow.pop %v2703
    %v2705 = vsel %vm501, %v2704, 0.0
    %2706 = vadd.xlane.f32.xlu0 %v2705
    %v2707 = vpop.xlane.xlu0 %2706
    %v2708 = vlog2.pop %v2707
    %v2709 = vmul.f32 %v2708, 0.6931472
    %v2710 = vsub.f32 %v2702, %v2709
    %2711 = vst.msk [vmem:[%s5 + $0x5] sm:$0x1] %vm501, %v2710
    %2712 = vrot.lane.b32.xlu0 %v2623, 16
    %v2713 = vpop.permute.xlu0 %2712
    %2715 = vst.msk [vmem:[%s5 + $0x5] sm:$0x1] %vm518, %v2713
    %2716 = vrot.lane.b32.xlu0 %v2370, 112
    %v2717 = vpop.permute.xlu0 %2716
    %2719 = vst.msk [vmem:[%s5 + $0x5] sm:$0x1] %vm523, %v2717
    %v2720 = vld [vmem:[%s0 + $0x6] sm:$0x1]
    %v2721 = vsel %vm75, %v2720, %v2623
    %v2723 = vsel %vm77, %v2721, 0
    %2725 = vmatprep.subr.mxu0 0.0
    %2726 = vmatpush1.msra.mxu0 %v34
    %2727 = vmatprep.subr.mxu0 0.0
    %2728 = vmatpush1.msra.mxu0 %v35
    %2729 = vmatprep.subr.mxu0 0.0
    %2730 = vmatpush1.msra.mxu0 %v36
    %2731 = vmatprep.subr.mxu0 0.0
    %2732 = vmatpush1.msra.mxu0 %v37
    %2733 = vmatprep.subr.mxu0 0.0
    %2734 = vmatpush1.msra.mxu0 %v38
    %2735 = vmatprep.subr.mxu0 0.0
    %2736 = vmatpush1.msra.mxu0 %v39
    %2737 = vmatprep.subr.mxu0 0.0
    %2738 = vmatpush1.msra.mxu0 %v40
    %2739 = vmatprep.subr.mxu0 0.0
    %2740 = vmatpush1.msra.mxu0 %v41
    %2741 = vmatprep.subr.mxu0 0.0
    %2742 = vmatpush1.msra.mxu0 0.0
    %2743 = vmatprep.subr.mxu0 0.0
    %2744 = vmatpush1.msra.mxu0 0.0
    %2745 = vmatprep.subr.mxu0 0.0
    %2746 = vmatpush1.msra.mxu0 0.0
    %2747 = vmatprep.subr.mxu0 0.0
    %2748 = vmatpush1.msra.mxu0 0.0
    %2749 = vmatprep.subr.mxu0 0.0
    %2750 = vmatpush1.msra.mxu0 0.0
    %2751 = vmatprep.subr.mxu0 0.0
    %2752 = vmatpush1.msra.mxu0 0.0
    %2753 = vmatprep.subr.mxu0 0.0
    %2754 = vmatpush1.msra.mxu0 0.0
    %2755 = vmatprep.subr.mxu0 0.0
    %2756 = vmatpush1.msra.mxu0 0.0
    %2757 = vmatprep.subr.mxu0 0.0
    %2758 = vmatpush1.msra.mxu0 0.0
    %2759 = vmatprep.subr.mxu0 0.0
    %2760 = vmatpush1.msra.mxu0 0.0
    %2761 = vmatprep.subr.mxu0 0.0
    %2762 = vmatpush1.msra.mxu0 0.0
    %2763 = vmatprep.subr.mxu0 0.0
    %2764 = vmatpush1.msra.mxu0 0.0
    %2765 = vmatprep.subr.mxu0 0.0
    %2766 = vmatpush1.msra.mxu0 0.0
    %2767 = vmatprep.subr.mxu0 0.0
    %2768 = vmatpush1.msra.mxu0 0.0
    %2769 = vmatprep.subr.mxu0 0.0
    %2770 = vmatpush1.msra.mxu0 0.0
    %2771 = vmatprep.subr.mxu0 0.0
    %2772 = vmatpush1.msra.mxu0 0.0
    %2773 = vmatprep.subr.mxu0 0.0
    %2774 = vmatpush1.msra.mxu0 0.0
    %2775 = vmatprep.subr.mxu0 0.0
    %2776 = vmatpush1.msra.mxu0 0.0
    %2777 = vmatprep.subr.mxu0 0.0
    %2778 = vmatpush1.msra.mxu0 0.0
    %2779 = vmatprep.subr.mxu0 0.0
    %2780 = vmatpush1.msra.mxu0 0.0
    %2781 = vmatprep.subr.mxu0 0.0
    %2782 = vmatpush1.msra.mxu0 0.0
    %2783 = vmatprep.subr.mxu0 0.0
    %2784 = vmatpush1.msra.mxu0 0.0
    %2785 = vmatprep.subr.mxu0 0.0
    %2786 = vmatpush1.msra.mxu0 0.0
    %2787 = vmatprep.subr.mxu0 0.0
    %2788 = vmatpush1.msra.mxu0 0.0
    %2789 = vmatprep.mubr.f32.mxu0 0.0
    %2790 = vmatmul.mubr.f32.gmra.mrb[0].mxu0 %v2723
    %v2791 = vpop.f32.mrb[0].mxu0
    %v2792 = vadd.f32 %v58, %v2791
    %v2793 = vpop.f32.mrb[0].mxu0
    %2794 = vdwg.mxu0
    %v2795 = vsel %vm151, %v2792, -inf
    %2796 = vmax.xlane.f32.xlu0 %v2795
    %v2797 = vpop.xlane.xlu0 %2796
    %v2798 = vsub.f32 %v2792, %v2797
    %v2799 = vmul.f32 %v2798, 1.442695
    %v2800 = vpow.pop %v2799
    %2802 = vrot.lane.b32.xlu0 %v2800, 32
    %v2803 = vpop.permute.xlu0 %2802
    %v2805 = vsel %vm162, %v2803, 0.0
    %2806 = vadd.xlane.f32.xlu0 %v2805
    %v2807 = vpop.xlane.xlu0 %2806
    %v2808 = vrcp.pop %v2807
    %v2809 = vmul.f32 %v2800, %v2808
    %2811 = vrot.lane.b32.xlu0 %v2809, 32
    %v2812 = vpop.permute.xlu0 %2811
    %v2813 = vsel %vm171, %v2812, 0
    %2815 = vmatprep.subr.mxu0 0.0
    %2816 = vmatpush1.msra.mxu0 %v62
    %2817 = vmatprep.subr.mxu0 0.0
    %2818 = vmatpush1.msra.mxu0 %v176
    %2819 = vmatprep.subr.mxu0 0.0
    %2820 = vmatpush1.msra.mxu0 0.0
    %2821 = vmatprep.subr.mxu0 0.0
    %2822 = vmatpush1.msra.mxu0 0.0
    %2823 = vmatprep.subr.mxu0 0.0
    %2824 = vmatpush1.msra.mxu0 0.0
    %2825 = vmatprep.subr.mxu0 0.0
    %2826 = vmatpush1.msra.mxu0 0.0
    %2827 = vmatprep.subr.mxu0 0.0
    %2828 = vmatpush1.msra.mxu0 0.0
    %2829 = vmatprep.subr.mxu0 0.0
    %2830 = vmatpush1.msra.mxu0 0.0
    %2831 = vmatprep.subr.mxu0 0.0
    %2832 = vmatpush1.msra.mxu0 0.0
    %2833 = vmatprep.subr.mxu0 0.0
    %2834 = vmatpush1.msra.mxu0 0.0
    %2835 = vmatprep.subr.mxu0 0.0
    %2836 = vmatpush1.msra.mxu0 0.0
    %2837 = vmatprep.subr.mxu0 0.0
    %2838 = vmatpush1.msra.mxu0 0.0
    %2839 = vmatprep.subr.mxu0 0.0
    %2840 = vmatpush1.msra.mxu0 0.0
    %2841 = vmatprep.subr.mxu0 0.0
    %2842 = vmatpush1.msra.mxu0 0.0
    %2843 = vmatprep.subr.mxu0 0.0
    %2844 = vmatpush1.msra.mxu0 0.0
    %2845 = vmatprep.subr.mxu0 0.0
    %2846 = vmatpush1.msra.mxu0 0.0
    %2847 = vmatprep.subr.mxu0 0.0
    %2848 = vmatpush1.msra.mxu0 0.0
    %2849 = vmatprep.subr.mxu0 0.0
    %2850 = vmatpush1.msra.mxu0 0.0
    %2851 = vmatprep.subr.mxu0 0.0
    %2852 = vmatpush1.msra.mxu0 0.0
    %2853 = vmatprep.subr.mxu0 0.0
    %2854 = vmatpush1.msra.mxu0 0.0
    %2855 = vmatprep.subr.mxu0 0.0
    %2856 = vmatpush1.msra.mxu0 0.0
    %2857 = vmatprep.subr.mxu0 0.0
    %2858 = vmatpush1.msra.mxu0 0.0
    %2859 = vmatprep.subr.mxu0 0.0
    %2860 = vmatpush1.msra.mxu0 0.0
    %2861 = vmatprep.subr.mxu0 0.0
    %2862 = vmatpush1.msra.mxu0 0.0
    %2863 = vmatprep.subr.mxu0 0.0
    %2864 = vmatpush1.msra.mxu0 0.0
    %2865 = vmatprep.subr.mxu0 0.0
    %2866 = vmatpush1.msra.mxu0 0.0
    %2867 = vmatprep.subr.mxu0 0.0
    %2868 = vmatpush1.msra.mxu0 0.0
    %2869 = vmatprep.subr.mxu0 0.0
    %2870 = vmatpush1.msra.mxu0 0.0
    %2871 = vmatprep.subr.mxu0 0.0
    %2872 = vmatpush1.msra.mxu0 0.0
    %2873 = vmatprep.subr.mxu0 0.0
    %2874 = vmatpush1.msra.mxu0 0.0
    %2875 = vmatprep.subr.mxu0 0.0
    %2876 = vmatpush1.msra.mxu0 0.0
    %2877 = vmatprep.subr.mxu0 0.0
    %2878 = vmatpush1.msra.mxu0 0.0
    %2879 = vmatprep.mubr.f32.mxu0 0.0
    %2880 = vmatmul.mubr.f32.gmra.mrb[0].mxu0 %v2813
    %v2881 = vpop.f32.mrb[0].mxu0
    %v2882 = vadd.f32 0.0, %v2881
    %v2883 = vpop.f32.mrb[0].mxu0
    %2884 = vdwg.mxu0
    %2886 = vrot.lane.b32.xlu0 %v2882, 32
    %v2887 = vpop.permute.xlu0 %2886
    %v2889 = vsel %vm75, %v2720, %v2887
    %v2891 = vsel %vm77, %v2889, 0
    %2893 = vmatprep.subr.mxu0 0.0
    %2894 = vmatpush1.msra.mxu0 %v42
    %2895 = vmatprep.subr.mxu0 0.0
    %2896 = vmatpush1.msra.mxu0 %v43
    %2897 = vmatprep.subr.mxu0 0.0
    %2898 = vmatpush1.msra.mxu0 %v44
    %2899 = vmatprep.subr.mxu0 0.0
    %2900 = vmatpush1.msra.mxu0 %v45
    %2901 = vmatprep.subr.mxu0 0.0
    %2902 = vmatpush1.msra.mxu0 %v46
    %2903 = vmatprep.subr.mxu0 0.0
    %2904 = vmatpush1.msra.mxu0 %v47
    %2905 = vmatprep.subr.mxu0 0.0
    %2906 = vmatpush1.msra.mxu0 %v48
    %2907 = vmatprep.subr.mxu0 0.0
    %2908 = vmatpush1.msra.mxu0 %v49
    %2909 = vmatprep.subr.mxu0 0.0
    %2910 = vmatpush1.msra.mxu0 0.0
    %2911 = vmatprep.subr.mxu0 0.0
    %2912 = vmatpush1.msra.mxu0 0.0
    %2913 = vmatprep.subr.mxu0 0.0
    %2914 = vmatpush1.msra.mxu0 0.0
    %2915 = vmatprep.subr.mxu0 0.0
    %2916 = vmatpush1.msra.mxu0 0.0
    %2917 = vmatprep.subr.mxu0 0.0
    %2918 = vmatpush1.msra.mxu0 0.0
    %2919 = vmatprep.subr.mxu0 0.0
    %2920 = vmatpush1.msra.mxu0 0.0
    %2921 = vmatprep.subr.mxu0 0.0
    %2922 = vmatpush1.msra.mxu0 0.0
    %2923 = vmatprep.subr.mxu0 0.0
    %2924 = vmatpush1.msra.mxu0 0.0
    %2925 = vmatprep.subr.mxu0 0.0
    %2926 = vmatpush1.msra.mxu0 0.0
    %2927 = vmatprep.subr.mxu0 0.0
    %2928 = vmatpush1.msra.mxu0 0.0
    %2929 = vmatprep.subr.mxu0 0.0
    %2930 = vmatpush1.msra.mxu0 0.0
    %2931 = vmatprep.subr.mxu0 0.0
    %2932 = vmatpush1.msra.mxu0 0.0
    %2933 = vmatprep.subr.mxu0 0.0
    %2934 = vmatpush1.msra.mxu0 0.0
    %2935 = vmatprep.subr.mxu0 0.0
    %2936 = vmatpush1.msra.mxu0 0.0
    %2937 = vmatprep.subr.mxu0 0.0
    %2938 = vmatpush1.msra.mxu0 0.0
    %2939 = vmatprep.subr.mxu0 0.0
    %2940 = vmatpush1.msra.mxu0 0.0
    %2941 = vmatprep.subr.mxu0 0.0
    %2942 = vmatpush1.msra.mxu0 0.0
    %2943 = vmatprep.subr.mxu0 0.0
    %2944 = vmatpush1.msra.mxu0 0.0
    %2945 = vmatprep.subr.mxu0 0.0
    %2946 = vmatpush1.msra.mxu0 0.0
    %2947 = vmatprep.subr.mxu0 0.0
    %2948 = vmatpush1.msra.mxu0 0.0
    %2949 = vmatprep.subr.mxu0 0.0
    %2950 = vmatpush1.msra.mxu0 0.0
    %2951 = vmatprep.subr.mxu0 0.0
    %2952 = vmatpush1.msra.mxu0 0.0
    %2953 = vmatprep.subr.mxu0 0.0
    %2954 = vmatpush1.msra.mxu0 0.0
    %2955 = vmatprep.subr.mxu0 0.0
    %2956 = vmatpush1.msra.mxu0 0.0
    %2957 = vmatprep.mubr.f32.mxu0 0.0
    %2958 = vmatmul.mubr.f32.gmra.mrb[0].mxu0 %v2891
    %v2959 = vpop.f32.mrb[0].mxu0
    %v2960 = vadd.f32 %v59, %v2959
    %v2961 = vpop.f32.mrb[0].mxu0
    %2962 = vdwg.mxu0
    %v2963 = vmax.f32 %v2960, 0.0
    %v2965 = vsel %vm75, %v2963, 0
    %2967 = vmatprep.subr.mxu0 0.0
    %2968 = vmatpush1.msra.mxu0 %v50
    %2969 = vmatprep.subr.mxu0 0.0
    %2970 = vmatpush1.msra.mxu0 %v51
    %2971 = vmatprep.subr.mxu0 0.0
    %2972 = vmatpush1.msra.mxu0 %v52
    %2973 = vmatprep.subr.mxu0 0.0
    %2974 = vmatpush1.msra.mxu0 %v53
    %2975 = vmatprep.subr.mxu0 0.0
    %2976 = vmatpush1.msra.mxu0 0.0
    %2977 = vmatprep.subr.mxu0 0.0
    %2978 = vmatpush1.msra.mxu0 0.0
    %2979 = vmatprep.subr.mxu0 0.0
    %2980 = vmatpush1.msra.mxu0 0.0
    %2981 = vmatprep.subr.mxu0 0.0
    %2982 = vmatpush1.msra.mxu0 0.0
    %2983 = vmatprep.subr.mxu0 0.0
    %2984 = vmatpush1.msra.mxu0 0.0
    %2985 = vmatprep.subr.mxu0 0.0
    %2986 = vmatpush1.msra.mxu0 0.0
    %2987 = vmatprep.subr.mxu0 0.0
    %2988 = vmatpush1.msra.mxu0 0.0
    %2989 = vmatprep.subr.mxu0 0.0
    %2990 = vmatpush1.msra.mxu0 0.0
    %2991 = vmatprep.subr.mxu0 0.0
    %2992 = vmatpush1.msra.mxu0 0.0
    %2993 = vmatprep.subr.mxu0 0.0
    %2994 = vmatpush1.msra.mxu0 0.0
    %2995 = vmatprep.subr.mxu0 0.0
    %2996 = vmatpush1.msra.mxu0 0.0
    %2997 = vmatprep.subr.mxu0 0.0
    %2998 = vmatpush1.msra.mxu0 0.0
    %2999 = vmatprep.subr.mxu0 0.0
    %3000 = vmatpush1.msra.mxu0 0.0
    %3001 = vmatprep.subr.mxu0 0.0
    %3002 = vmatpush1.msra.mxu0 0.0
    %3003 = vmatprep.subr.mxu0 0.0
    %3004 = vmatpush1.msra.mxu0 0.0
    %3005 = vmatprep.subr.mxu0 0.0
    %3006 = vmatpush1.msra.mxu0 0.0
    %3007 = vmatprep.subr.mxu0 0.0
    %3008 = vmatpush1.msra.mxu0 0.0
    %3009 = vmatprep.subr.mxu0 0.0
    %3010 = vmatpush1.msra.mxu0 0.0
    %3011 = vmatprep.subr.mxu0 0.0
    %3012 = vmatpush1.msra.mxu0 0.0
    %3013 = vmatprep.subr.mxu0 0.0
    %3014 = vmatpush1.msra.mxu0 0.0
    %3015 = vmatprep.subr.mxu0 0.0
    %3016 = vmatpush1.msra.mxu0 0.0
    %3017 = vmatprep.subr.mxu0 0.0
    %3018 = vmatpush1.msra.mxu0 0.0
    %3019 = vmatprep.subr.mxu0 0.0
    %3020 = vmatpush1.msra.mxu0 0.0
    %3021 = vmatprep.subr.mxu0 0.0
    %3022 = vmatpush1.msra.mxu0 0.0
    %3023 = vmatprep.subr.mxu0 0.0
    %3024 = vmatpush1.msra.mxu0 0.0
    %3025 = vmatprep.subr.mxu0 0.0
    %3026 = vmatpush1.msra.mxu0 0.0
    %3027 = vmatprep.subr.mxu0 0.0
    %3028 = vmatpush1.msra.mxu0 0.0
    %3029 = vmatprep.subr.mxu0 0.0
    %3030 = vmatpush1.msra.mxu0 0.0
    %3031 = vmatprep.mubr.f32.mxu0 0.0
    %3032 = vmatmul.mubr.f32.gmra.mrb[0].mxu0 %v2965
    %v3033 = vpop.f32.mrb[0].mxu0
    %v3034 = vadd.f32 %v60, %v3033
    %v3035 = vpop.f32.mrb[0].mxu0
    %3036 = vdwg.mxu0
    %v3037 = vadd.f32 %v3034, %v2792
    %v3038 = vxor.u32 %v3037, 2147483648
    %v3039 = vmul.f32 %v3038, 1.442695
    %v3040 = vpow.pop %v3039
    %v3041 = vadd.f32 %v3040, 1.0
    %v3042 = vrcp.pop %v3041
    %v3043 = vmul.f32 1.0, %v3042
    %3045 = vrot.lane.b32.xlu0 %v2792, 64
    %v3046 = vpop.permute.xlu0 %3045
    %v3048 = vmul.f32 %v3043, %v3046
    %3050 = vrot.lane.b32.xlu0 %v3048, 64
    %v3051 = vpop.permute.xlu0 %3050
    %v3053 = vadd.f32 %v3034, %v3051
    %v3054 = vtanh.pop %v3053
    %v3055 = vsub.f32 1.0, %v3043
    %3057 = vrot.lane.b32.xlu0 %v3054, 96
    %v3058 = vpop.permute.xlu0 %3057
    %v3060 = vmul.f32 %v3055, %v3058
    %v3061 = vmul.f32 %v3043, %v2623
    %v3062 = vadd.f32 %v3060, %v3061
    %3064 = vrot.lane.b32.xlu0 %v3062, 96
    %v3065 = vpop.permute.xlu0 %3064
    %v3066 = vsel %vm75, %v3065, 0
    %3068 = vmatprep.subr.mxu0 0.0
    %3069 = vmatpush1.msra.mxu0 %v54
    %3070 = vmatprep.subr.mxu0 0.0
    %3071 = vmatpush1.msra.mxu0 %v55
    %3072 = vmatprep.subr.mxu0 0.0
    %3073 = vmatpush1.msra.mxu0 %v56
    %3074 = vmatprep.subr.mxu0 0.0
    %3075 = vmatpush1.msra.mxu0 %v57
    %3076 = vmatprep.subr.mxu0 0.0
    %3077 = vmatpush1.msra.mxu0 0.0
    %3078 = vmatprep.subr.mxu0 0.0
    %3079 = vmatpush1.msra.mxu0 0.0
    %3080 = vmatprep.subr.mxu0 0.0
    %3081 = vmatpush1.msra.mxu0 0.0
    %3082 = vmatprep.subr.mxu0 0.0
    %3083 = vmatpush1.msra.mxu0 0.0
    %3084 = vmatprep.subr.mxu0 0.0
    %3085 = vmatpush1.msra.mxu0 0.0
    %3086 = vmatprep.subr.mxu0 0.0
    %3087 = vmatpush1.msra.mxu0 0.0
    %3088 = vmatprep.subr.mxu0 0.0
    %3089 = vmatpush1.msra.mxu0 0.0
    %3090 = vmatprep.subr.mxu0 0.0
    %3091 = vmatpush1.msra.mxu0 0.0
    %3092 = vmatprep.subr.mxu0 0.0
    %3093 = vmatpush1.msra.mxu0 0.0
    %3094 = vmatprep.subr.mxu0 0.0
    %3095 = vmatpush1.msra.mxu0 0.0
    %3096 = vmatprep.subr.mxu0 0.0
    %3097 = vmatpush1.msra.mxu0 0.0
    %3098 = vmatprep.subr.mxu0 0.0
    %3099 = vmatpush1.msra.mxu0 0.0
    %3100 = vmatprep.subr.mxu0 0.0
    %3101 = vmatpush1.msra.mxu0 0.0
    %3102 = vmatprep.subr.mxu0 0.0
    %3103 = vmatpush1.msra.mxu0 0.0
    %3104 = vmatprep.subr.mxu0 0.0
    %3105 = vmatpush1.msra.mxu0 0.0
    %3106 = vmatprep.subr.mxu0 0.0
    %3107 = vmatpush1.msra.mxu0 0.0
    %3108 = vmatprep.subr.mxu0 0.0
    %3109 = vmatpush1.msra.mxu0 0.0
    %3110 = vmatprep.subr.mxu0 0.0
    %3111 = vmatpush1.msra.mxu0 0.0
    %3112 = vmatprep.subr.mxu0 0.0
    %3113 = vmatpush1.msra.mxu0 0.0
    %3114 = vmatprep.subr.mxu0 0.0
    %3115 = vmatpush1.msra.mxu0 0.0
    %3116 = vmatprep.subr.mxu0 0.0
    %3117 = vmatpush1.msra.mxu0 0.0
    %3118 = vmatprep.subr.mxu0 0.0
    %3119 = vmatpush1.msra.mxu0 0.0
    %3120 = vmatprep.subr.mxu0 0.0
    %3121 = vmatpush1.msra.mxu0 0.0
    %3122 = vmatprep.subr.mxu0 0.0
    %3123 = vmatpush1.msra.mxu0 0.0
    %3124 = vmatprep.subr.mxu0 0.0
    %3125 = vmatpush1.msra.mxu0 0.0
    %3126 = vmatprep.subr.mxu0 0.0
    %3127 = vmatpush1.msra.mxu0 0.0
    %3128 = vmatprep.subr.mxu0 0.0
    %3129 = vmatpush1.msra.mxu0 0.0
    %3130 = vmatprep.subr.mxu0 0.0
    %3131 = vmatpush1.msra.mxu0 0.0
    %3132 = vmatprep.mubr.f32.mxu0 0.0
    %3133 = vmatmul.mubr.f32.gmra.mrb[0].mxu0 %v3066
    %v3134 = vpop.f32.mrb[0].mxu0
    %v3135 = vadd.f32 %v61, %v3134
    %v3136 = vpop.f32.mrb[0].mxu0
    %3137 = vdwg.mxu0
    %v3138 = vsel %vm501, %v3135, -inf
    %3139 = vmax.xlane.f32.xlu0 %v3138
    %v3140 = vpop.xlane.xlu0 %3139
    %v3141 = vsub.f32 %v3135, %v3140
    %v3142 = vmul.f32 %v3141, 1.442695
    %v3143 = vpow.pop %v3142
    %v3144 = vsel %vm501, %v3143, 0.0
    %3145 = vadd.xlane.f32.xlu0 %v3144
    %v3146 = vpop.xlane.xlu0 %3145
    %v3147 = vlog2.pop %v3146
    %v3148 = vmul.f32 %v3147, 0.6931472
    %v3149 = vsub.f32 %v3141, %v3148
    %3150 = vst.msk [vmem:[%s5 + $0x6] sm:$0x1] %vm501, %v3149
    %3151 = vrot.lane.b32.xlu0 %v3062, 16
    %v3152 = vpop.permute.xlu0 %3151
    %3154 = vst.msk [vmem:[%s5 + $0x6] sm:$0x1] %vm518, %v3152
    %3155 = vrot.lane.b32.xlu0 %v2809, 112
    %v3156 = vpop.permute.xlu0 %3155
    %3158 = vst.msk [vmem:[%s5 + $0x6] sm:$0x1] %vm523, %v3156
    %v3159 = vld [vmem:[%s0 + $0x7] sm:$0x1]
    %v3160 = vsel %vm75, %v3159, %v3062
    %v3162 = vsel %vm77, %v3160, 0
    %3164 = vmatprep.subr.mxu0 0.0
    %3165 = vmatpush1.msra.mxu0 %v34
    %3166 = vmatprep.subr.mxu0 0.0
    %3167 = vmatpush1.msra.mxu0 %v35
    %3168 = vmatprep.subr.mxu0 0.0
    %3169 = vmatpush1.msra.mxu0 %v36
    %3170 = vmatprep.subr.mxu0 0.0
    %3171 = vmatpush1.msra.mxu0 %v37
    %3172 = vmatprep.subr.mxu0 0.0
    %3173 = vmatpush1.msra.mxu0 %v38
    %3174 = vmatprep.subr.mxu0 0.0
    %3175 = vmatpush1.msra.mxu0 %v39
    %3176 = vmatprep.subr.mxu0 0.0
    %3177 = vmatpush1.msra.mxu0 %v40
    %3178 = vmatprep.subr.mxu0 0.0
    %3179 = vmatpush1.msra.mxu0 %v41
    %3180 = vmatprep.subr.mxu0 0.0
    %3181 = vmatpush1.msra.mxu0 0.0
    %3182 = vmatprep.subr.mxu0 0.0
    %3183 = vmatpush1.msra.mxu0 0.0
    %3184 = vmatprep.subr.mxu0 0.0
    %3185 = vmatpush1.msra.mxu0 0.0
    %3186 = vmatprep.subr.mxu0 0.0
    %3187 = vmatpush1.msra.mxu0 0.0
    %3188 = vmatprep.subr.mxu0 0.0
    %3189 = vmatpush1.msra.mxu0 0.0
    %3190 = vmatprep.subr.mxu0 0.0
    %3191 = vmatpush1.msra.mxu0 0.0
    %3192 = vmatprep.subr.mxu0 0.0
    %3193 = vmatpush1.msra.mxu0 0.0
    %3194 = vmatprep.subr.mxu0 0.0
    %3195 = vmatpush1.msra.mxu0 0.0
    %3196 = vmatprep.subr.mxu0 0.0
    %3197 = vmatpush1.msra.mxu0 0.0
    %3198 = vmatprep.subr.mxu0 0.0
    %3199 = vmatpush1.msra.mxu0 0.0
    %3200 = vmatprep.subr.mxu0 0.0
    %3201 = vmatpush1.msra.mxu0 0.0
    %3202 = vmatprep.subr.mxu0 0.0
    %3203 = vmatpush1.msra.mxu0 0.0
    %3204 = vmatprep.subr.mxu0 0.0
    %3205 = vmatpush1.msra.mxu0 0.0
    %3206 = vmatprep.subr.mxu0 0.0
    %3207 = vmatpush1.msra.mxu0 0.0
    %3208 = vmatprep.subr.mxu0 0.0
    %3209 = vmatpush1.msra.mxu0 0.0
    %3210 = vmatprep.subr.mxu0 0.0
    %3211 = vmatpush1.msra.mxu0 0.0
    %3212 = vmatprep.subr.mxu0 0.0
    %3213 = vmatpush1.msra.mxu0 0.0
    %3214 = vmatprep.subr.mxu0 0.0
    %3215 = vmatpush1.msra.mxu0 0.0
    %3216 = vmatprep.subr.mxu0 0.0
    %3217 = vmatpush1.msra.mxu0 0.0
    %3218 = vmatprep.subr.mxu0 0.0
    %3219 = vmatpush1.msra.mxu0 0.0
    %3220 = vmatprep.subr.mxu0 0.0
    %3221 = vmatpush1.msra.mxu0 0.0
    %3222 = vmatprep.subr.mxu0 0.0
    %3223 = vmatpush1.msra.mxu0 0.0
    %3224 = vmatprep.subr.mxu0 0.0
    %3225 = vmatpush1.msra.mxu0 0.0
    %3226 = vmatprep.subr.mxu0 0.0
    %3227 = vmatpush1.msra.mxu0 0.0
    %3228 = vmatprep.mubr.f32.mxu0 0.0
    %3229 = vmatmul.mubr.f32.gmra.mrb[0].mxu0 %v3162
    %v3230 = vpop.f32.mrb[0].mxu0
    %v3231 = vadd.f32 %v58, %v3230
    %v3232 = vpop.f32.mrb[0].mxu0
    %3233 = vdwg.mxu0
    %v3234 = vsel %vm151, %v3231, -inf
    %3235 = vmax.xlane.f32.xlu0 %v3234
    %v3236 = vpop.xlane.xlu0 %3235
    %v3237 = vsub.f32 %v3231, %v3236
    %v3238 = vmul.f32 %v3237, 1.442695
    %v3239 = vpow.pop %v3238
    %3241 = vrot.lane.b32.xlu0 %v3239, 32
    %v3242 = vpop.permute.xlu0 %3241
    %v3244 = vsel %vm162, %v3242, 0.0
    %3245 = vadd.xlane.f32.xlu0 %v3244
    %v3246 = vpop.xlane.xlu0 %3245
    %v3247 = vrcp.pop %v3246
    %v3248 = vmul.f32 %v3239, %v3247
    %3250 = vrot.lane.b32.xlu0 %v3248, 32
    %v3251 = vpop.permute.xlu0 %3250
    %v3252 = vsel %vm171, %v3251, 0
    %3254 = vmatprep.subr.mxu0 0.0
    %3255 = vmatpush1.msra.mxu0 %v62
    %3256 = vmatprep.subr.mxu0 0.0
    %3257 = vmatpush1.msra.mxu0 %v176
    %3258 = vmatprep.subr.mxu0 0.0
    %3259 = vmatpush1.msra.mxu0 0.0
    %3260 = vmatprep.subr.mxu0 0.0
    %3261 = vmatpush1.msra.mxu0 0.0
    %3262 = vmatprep.subr.mxu0 0.0
    %3263 = vmatpush1.msra.mxu0 0.0
    %3264 = vmatprep.subr.mxu0 0.0
    %3265 = vmatpush1.msra.mxu0 0.0
    %3266 = vmatprep.subr.mxu0 0.0
    %3267 = vmatpush1.msra.mxu0 0.0
    %3268 = vmatprep.subr.mxu0 0.0
    %3269 = vmatpush1.msra.mxu0 0.0
    %3270 = vmatprep.subr.mxu0 0.0
    %3271 = vmatpush1.msra.mxu0 0.0
    %3272 = vmatprep.subr.mxu0 0.0
    %3273 = vmatpush1.msra.mxu0 0.0
    %3274 = vmatprep.subr.mxu0 0.0
    %3275 = vmatpush1.msra.mxu0 0.0
    %3276 = vmatprep.subr.mxu0 0.0
    %3277 = vmatpush1.msra.mxu0 0.0
    %3278 = vmatprep.subr.mxu0 0.0
    %3279 = vmatpush1.msra.mxu0 0.0
    %3280 = vmatprep.subr.mxu0 0.0
    %3281 = vmatpush1.msra.mxu0 0.0
    %3282 = vmatprep.subr.mxu0 0.0
    %3283 = vmatpush1.msra.mxu0 0.0
    %3284 = vmatprep.subr.mxu0 0.0
    %3285 = vmatpush1.msra.mxu0 0.0
    %3286 = vmatprep.subr.mxu0 0.0
    %3287 = vmatpush1.msra.mxu0 0.0
    %3288 = vmatprep.subr.mxu0 0.0
    %3289 = vmatpush1.msra.mxu0 0.0
    %3290 = vmatprep.subr.mxu0 0.0
    %3291 = vmatpush1.msra.mxu0 0.0
    %3292 = vmatprep.subr.mxu0 0.0
    %3293 = vmatpush1.msra.mxu0 0.0
    %3294 = vmatprep.subr.mxu0 0.0
    %3295 = vmatpush1.msra.mxu0 0.0
    %3296 = vmatprep.subr.mxu0 0.0
    %3297 = vmatpush1.msra.mxu0 0.0
    %3298 = vmatprep.subr.mxu0 0.0
    %3299 = vmatpush1.msra.mxu0 0.0
    %3300 = vmatprep.subr.mxu0 0.0
    %3301 = vmatpush1.msra.mxu0 0.0
    %3302 = vmatprep.subr.mxu0 0.0
    %3303 = vmatpush1.msra.mxu0 0.0
    %3304 = vmatprep.subr.mxu0 0.0
    %3305 = vmatpush1.msra.mxu0 0.0
    %3306 = vmatprep.subr.mxu0 0.0
    %3307 = vmatpush1.msra.mxu0 0.0
    %3308 = vmatprep.subr.mxu0 0.0
    %3309 = vmatpush1.msra.mxu0 0.0
    %3310 = vmatprep.subr.mxu0 0.0
    %3311 = vmatpush1.msra.mxu0 0.0
    %3312 = vmatprep.subr.mxu0 0.0
    %3313 = vmatpush1.msra.mxu0 0.0
    %3314 = vmatprep.subr.mxu0 0.0
    %3315 = vmatpush1.msra.mxu0 0.0
    %3316 = vmatprep.subr.mxu0 0.0
    %3317 = vmatpush1.msra.mxu0 0.0
    %3318 = vmatprep.mubr.f32.mxu0 0.0
    %3319 = vmatmul.mubr.f32.gmra.mrb[0].mxu0 %v3252
    %v3320 = vpop.f32.mrb[0].mxu0
    %v3321 = vadd.f32 0.0, %v3320
    %v3322 = vpop.f32.mrb[0].mxu0
    %3323 = vdwg.mxu0
    %3325 = vrot.lane.b32.xlu0 %v3321, 32
    %v3326 = vpop.permute.xlu0 %3325
    %v3328 = vsel %vm75, %v3159, %v3326
    %v3330 = vsel %vm77, %v3328, 0
    %3332 = vmatprep.subr.mxu0 0.0
    %3333 = vmatpush1.msra.mxu0 %v42
    %3334 = vmatprep.subr.mxu0 0.0
    %3335 = vmatpush1.msra.mxu0 %v43
    %3336 = vmatprep.subr.mxu0 0.0
    %3337 = vmatpush1.msra.mxu0 %v44
    %3338 = vmatprep.subr.mxu0 0.0
    %3339 = vmatpush1.msra.mxu0 %v45
    %3340 = vmatprep.subr.mxu0 0.0
    %3341 = vmatpush1.msra.mxu0 %v46
    %3342 = vmatprep.subr.mxu0 0.0
    %3343 = vmatpush1.msra.mxu0 %v47
    %3344 = vmatprep.subr.mxu0 0.0
    %3345 = vmatpush1.msra.mxu0 %v48
    %3346 = vmatprep.subr.mxu0 0.0
    %3347 = vmatpush1.msra.mxu0 %v49
    %3348 = vmatprep.subr.mxu0 0.0
    %3349 = vmatpush1.msra.mxu0 0.0
    %3350 = vmatprep.subr.mxu0 0.0
    %3351 = vmatpush1.msra.mxu0 0.0
    %3352 = vmatprep.subr.mxu0 0.0
    %3353 = vmatpush1.msra.mxu0 0.0
    %3354 = vmatprep.subr.mxu0 0.0
    %3355 = vmatpush1.msra.mxu0 0.0
    %3356 = vmatprep.subr.mxu0 0.0
    %3357 = vmatpush1.msra.mxu0 0.0
    %3358 = vmatprep.subr.mxu0 0.0
    %3359 = vmatpush1.msra.mxu0 0.0
    %3360 = vmatprep.subr.mxu0 0.0
    %3361 = vmatpush1.msra.mxu0 0.0
    %3362 = vmatprep.subr.mxu0 0.0
    %3363 = vmatpush1.msra.mxu0 0.0
    %3364 = vmatprep.subr.mxu0 0.0
    %3365 = vmatpush1.msra.mxu0 0.0
    %3366 = vmatprep.subr.mxu0 0.0
    %3367 = vmatpush1.msra.mxu0 0.0
    %3368 = vmatprep.subr.mxu0 0.0
    %3369 = vmatpush1.msra.mxu0 0.0
    %3370 = vmatprep.subr.mxu0 0.0
    %3371 = vmatpush1.msra.mxu0 0.0
    %3372 = vmatprep.subr.mxu0 0.0
    %3373 = vmatpush1.msra.mxu0 0.0
    %3374 = vmatprep.subr.mxu0 0.0
    %3375 = vmatpush1.msra.mxu0 0.0
    %3376 = vmatprep.subr.mxu0 0.0
    %3377 = vmatpush1.msra.mxu0 0.0
    %3378 = vmatprep.subr.mxu0 0.0
    %3379 = vmatpush1.msra.mxu0 0.0
    %3380 = vmatprep.subr.mxu0 0.0
    %3381 = vmatpush1.msra.mxu0 0.0
    %3382 = vmatprep.subr.mxu0 0.0
    %3383 = vmatpush1.msra.mxu0 0.0
    %3384 = vmatprep.subr.mxu0 0.0
    %3385 = vmatpush1.msra.mxu0 0.0
    %3386 = vmatprep.subr.mxu0 0.0
    %3387 = vmatpush1.msra.mxu0 0.0
    %3388 = vmatprep.subr.mxu0 0.0
    %3389 = vmatpush1.msra.mxu0 0.0
    %3390 = vmatprep.subr.mxu0 0.0
    %3391 = vmatpush1.msra.mxu0 0.0
    %3392 = vmatprep.subr.mxu0 0.0
    %3393 = vmatpush1.msra.mxu0 0.0
    %3394 = vmatprep.subr.mxu0 0.0
    %3395 = vmatpush1.msra.mxu0 0.0
    %3396 = vmatprep.mubr.f32.mxu0 0.0
    %3397 = vmatmul.mubr.f32.gmra.mrb[0].mxu0 %v3330
    %v3398 = vpop.f32.mrb[0].mxu0
    %v3399 = vadd.f32 %v59, %v3398
    %v3400 = vpop.f32.mrb[0].mxu0
    %3401 = vdwg.mxu0
    %v3402 = vmax.f32 %v3399, 0.0
    %v3404 = vsel %vm75, %v3402, 0
    %3406 = vmatprep.subr.mxu0 0.0
    %3407 = vmatpush1.msra.mxu0 %v50
    %3408 = vmatprep.subr.mxu0 0.0
    %3409 = vmatpush1.msra.mxu0 %v51
    %3410 = vmatprep.subr.mxu0 0.0
    %3411 = vmatpush1.msra.mxu0 %v52
    %3412 = vmatprep.subr.mxu0 0.0
    %3413 = vmatpush1.msra.mxu0 %v53
    %3414 = vmatprep.subr.mxu0 0.0
    %3415 = vmatpush1.msra.mxu0 0.0
    %3416 = vmatprep.subr.mxu0 0.0
    %3417 = vmatpush1.msra.mxu0 0.0
    %3418 = vmatprep.subr.mxu0 0.0
    %3419 = vmatpush1.msra.mxu0 0.0
    %3420 = vmatprep.subr.mxu0 0.0
    %3421 = vmatpush1.msra.mxu0 0.0
    %3422 = vmatprep.subr.mxu0 0.0
    %3423 = vmatpush1.msra.mxu0 0.0
    %3424 = vmatprep.subr.mxu0 0.0
    %3425 = vmatpush1.msra.mxu0 0.0
    %3426 = vmatprep.subr.mxu0 0.0
    %3427 = vmatpush1.msra.mxu0 0.0
    %3428 = vmatprep.subr.mxu0 0.0
    %3429 = vmatpush1.msra.mxu0 0.0
    %3430 = vmatprep.subr.mxu0 0.0
    %3431 = vmatpush1.msra.mxu0 0.0
    %3432 = vmatprep.subr.mxu0 0.0
    %3433 = vmatpush1.msra.mxu0 0.0
    %3434 = vmatprep.subr.mxu0 0.0
    %3435 = vmatpush1.msra.mxu0 0.0
    %3436 = vmatprep.subr.mxu0 0.0
    %3437 = vmatpush1.msra.mxu0 0.0
    %3438 = vmatprep.subr.mxu0 0.0
    %3439 = vmatpush1.msra.mxu0 0.0
    %3440 = vmatprep.subr.mxu0 0.0
    %3441 = vmatpush1.msra.mxu0 0.0
    %3442 = vmatprep.subr.mxu0 0.0
    %3443 = vmatpush1.msra.mxu0 0.0
    %3444 = vmatprep.subr.mxu0 0.0
    %3445 = vmatpush1.msra.mxu0 0.0
    %3446 = vmatprep.subr.mxu0 0.0
    %3447 = vmatpush1.msra.mxu0 0.0
    %3448 = vmatprep.subr.mxu0 0.0
    %3449 = vmatpush1.msra.mxu0 0.0
    %3450 = vmatprep.subr.mxu0 0.0
    %3451 = vmatpush1.msra.mxu0 0.0
    %3452 = vmatprep.subr.mxu0 0.0
    %3453 = vmatpush1.msra.mxu0 0.0
    %3454 = vmatprep.subr.mxu0 0.0
    %3455 = vmatpush1.msra.mxu0 0.0
    %3456 = vmatprep.subr.mxu0 0.0
    %3457 = vmatpush1.msra.mxu0 0.0
    %3458 = vmatprep.subr.mxu0 0.0
    %3459 = vmatpush1.msra.mxu0 0.0
    %3460 = vmatprep.subr.mxu0 0.0
    %3461 = vmatpush1.msra.mxu0 0.0
    %3462 = vmatprep.subr.mxu0 0.0
    %3463 = vmatpush1.msra.mxu0 0.0
    %3464 = vmatprep.subr.mxu0 0.0
    %3465 = vmatpush1.msra.mxu0 0.0
    %3466 = vmatprep.subr.mxu0 0.0
    %3467 = vmatpush1.msra.mxu0 0.0
    %3468 = vmatprep.subr.mxu0 0.0
    %3469 = vmatpush1.msra.mxu0 0.0
    %3470 = vmatprep.mubr.f32.mxu0 0.0
    %3471 = vmatmul.mubr.f32.gmra.mrb[0].mxu0 %v3404
    %v3472 = vpop.f32.mrb[0].mxu0
    %v3473 = vadd.f32 %v60, %v3472
    %v3474 = vpop.f32.mrb[0].mxu0
    %3475 = vdwg.mxu0
    %v3476 = vadd.f32 %v3473, %v3231
    %v3477 = vxor.u32 %v3476, 2147483648
    %v3478 = vmul.f32 %v3477, 1.442695
    %v3479 = vpow.pop %v3478
    %v3480 = vadd.f32 %v3479, 1.0
    %v3481 = vrcp.pop %v3480
    %v3482 = vmul.f32 1.0, %v3481
    %3484 = vrot.lane.b32.xlu0 %v3231, 64
    %v3485 = vpop.permute.xlu0 %3484
    %v3487 = vmul.f32 %v3482, %v3485
    %3489 = vrot.lane.b32.xlu0 %v3487, 64
    %v3490 = vpop.permute.xlu0 %3489
    %v3492 = vadd.f32 %v3473, %v3490
    %v3493 = vtanh.pop %v3492
    %v3494 = vsub.f32 1.0, %v3482
    %3496 = vrot.lane.b32.xlu0 %v3493, 96
    %v3497 = vpop.permute.xlu0 %3496
    %v3499 = vmul.f32 %v3494, %v3497
    %v3500 = vmul.f32 %v3482, %v3062
    %v3501 = vadd.f32 %v3499, %v3500
    %3503 = vrot.lane.b32.xlu0 %v3501, 96
    %v3504 = vpop.permute.xlu0 %3503
    %v3505 = vsel %vm75, %v3504, 0
    %3507 = vmatprep.subr.mxu0 0.0
    %3508 = vmatpush1.msra.mxu0 %v54
    %3509 = vmatprep.subr.mxu0 0.0
    %3510 = vmatpush1.msra.mxu0 %v55
    %3511 = vmatprep.subr.mxu0 0.0
    %3512 = vmatpush1.msra.mxu0 %v56
    %3513 = vmatprep.subr.mxu0 0.0
    %3514 = vmatpush1.msra.mxu0 %v57
    %3515 = vmatprep.subr.mxu0 0.0
    %3516 = vmatpush1.msra.mxu0 0.0
    %3517 = vmatprep.subr.mxu0 0.0
    %3518 = vmatpush1.msra.mxu0 0.0
    %3519 = vmatprep.subr.mxu0 0.0
    %3520 = vmatpush1.msra.mxu0 0.0
    %3521 = vmatprep.subr.mxu0 0.0
    %3522 = vmatpush1.msra.mxu0 0.0
    %3523 = vmatprep.subr.mxu0 0.0
    %3524 = vmatpush1.msra.mxu0 0.0
    %3525 = vmatprep.subr.mxu0 0.0
    %3526 = vmatpush1.msra.mxu0 0.0
    %3527 = vmatprep.subr.mxu0 0.0
    %3528 = vmatpush1.msra.mxu0 0.0
    %3529 = vmatprep.subr.mxu0 0.0
    %3530 = vmatpush1.msra.mxu0 0.0
    %3531 = vmatprep.subr.mxu0 0.0
    %3532 = vmatpush1.msra.mxu0 0.0
    %3533 = vmatprep.subr.mxu0 0.0
    %3534 = vmatpush1.msra.mxu0 0.0
    %3535 = vmatprep.subr.mxu0 0.0
    %3536 = vmatpush1.msra.mxu0 0.0
    %3537 = vmatprep.subr.mxu0 0.0
    %3538 = vmatpush1.msra.mxu0 0.0
    %3539 = vmatprep.subr.mxu0 0.0
    %3540 = vmatpush1.msra.mxu0 0.0
    %3541 = vmatprep.subr.mxu0 0.0
    %3542 = vmatpush1.msra.mxu0 0.0
    %3543 = vmatprep.subr.mxu0 0.0
    %3544 = vmatpush1.msra.mxu0 0.0
    %3545 = vmatprep.subr.mxu0 0.0
    %3546 = vmatpush1.msra.mxu0 0.0
    %3547 = vmatprep.subr.mxu0 0.0
    %3548 = vmatpush1.msra.mxu0 0.0
    %3549 = vmatprep.subr.mxu0 0.0
    %3550 = vmatpush1.msra.mxu0 0.0
    %3551 = vmatprep.subr.mxu0 0.0
    %3552 = vmatpush1.msra.mxu0 0.0
    %3553 = vmatprep.subr.mxu0 0.0
    %3554 = vmatpush1.msra.mxu0 0.0
    %3555 = vmatprep.subr.mxu0 0.0
    %3556 = vmatpush1.msra.mxu0 0.0
    %3557 = vmatprep.subr.mxu0 0.0
    %3558 = vmatpush1.msra.mxu0 0.0
    %3559 = vmatprep.subr.mxu0 0.0
    %3560 = vmatpush1.msra.mxu0 0.0
    %3561 = vmatprep.subr.mxu0 0.0
    %3562 = vmatpush1.msra.mxu0 0.0
    %3563 = vmatprep.subr.mxu0 0.0
    %3564 = vmatpush1.msra.mxu0 0.0
    %3565 = vmatprep.subr.mxu0 0.0
    %3566 = vmatpush1.msra.mxu0 0.0
    %3567 = vmatprep.subr.mxu0 0.0
    %3568 = vmatpush1.msra.mxu0 0.0
    %3569 = vmatprep.subr.mxu0 0.0
    %3570 = vmatpush1.msra.mxu0 0.0
    %3571 = vmatprep.mubr.f32.mxu0 0.0
    %3572 = vmatmul.mubr.f32.gmra.mrb[0].mxu0 %v3505
    %v3573 = vpop.f32.mrb[0].mxu0
    %v3574 = vadd.f32 %v61, %v3573
    %v3575 = vpop.f32.mrb[0].mxu0
    %3576 = vdwg.mxu0
    %v3577 = vsel %vm501, %v3574, -inf
    %3578 = vmax.xlane.f32.xlu0 %v3577
    %v3579 = vpop.xlane.xlu0 %3578
    %v3580 = vsub.f32 %v3574, %v3579
    %v3581 = vmul.f32 %v3580, 1.442695
    %v3582 = vpow.pop %v3581
    %v3583 = vsel %vm501, %v3582, 0.0
    %3584 = vadd.xlane.f32.xlu0 %v3583
    %v3585 = vpop.xlane.xlu0 %3584
    %v3586 = vlog2.pop %v3585
    %v3587 = vmul.f32 %v3586, 0.6931472
    %v3588 = vsub.f32 %v3580, %v3587
    %3589 = vst.msk [vmem:[%s5 + $0x7] sm:$0x1] %vm501, %v3588
    %3590 = vrot.lane.b32.xlu0 %v3501, 16
    %v3591 = vpop.permute.xlu0 %3590
    %3593 = vst.msk [vmem:[%s5 + $0x7] sm:$0x1] %vm518, %v3591
    %3594 = vrot.lane.b32.xlu0 %v3248, 112
    %v3595 = vpop.permute.xlu0 %3594
    %3597 = vst.msk [vmem:[%s5 + $0x7] sm:$0x1] %vm523, %v3595
    // Predicated region
    $region26: #{_decode_impl.1} parent=1 // pred_check
      _
    $region27: #{_decode_impl.1} parent=1 // pred_check_branch
      %3599 = sbr.rel (0) target = $region29
    $region28: #{_decode_impl.1} parent=1 // pred_region
      _
    $region29: #{_decode_impl.1} parent=1 // pred_fallthru
      _
    // Predicated region
    $region30: #{_decode_impl.1} parent=1 // pred_check
      _
    $region31: #{_decode_impl.1} parent=1 // pred_check_branch
      %3601 = sbr.rel (0) target = $region33
    $region32: #{_decode_impl.1} parent=1 // pred_region
      _
    $region33: #{_decode_impl.1} parent=1 // pred_fallthru
      _
    %3602 = vsyncpa [#allocation3], 1

</llo_original>
